<compile_context>
chip_gen: v7x
topology: tpu7x:2x2x1
jax: 0.10.0
libtpu: 0.0.40
codegen_flags: <defaults>
</compile_context>

<pallas_src>
import jax
import jax.numpy as jnp
from jax import lax
from jax.experimental import pallas as pl
from jax.experimental.pallas import tpu as pltpu


KERNEL_SIZES = (3, 5, 7, 9)
NUM_GROUPS = (1, 4, 8, 16)


def _round_up(x, m):
    return (x + m - 1) // m * m


# ----------------------------------------------------------------------------
# Fused Pallas kernel: all pyramid levels, one batch element per grid step.
# ----------------------------------------------------------------------------
def _make_pyconv_kernel(*, kmax, h, w, cin, ck, ck_pad, compute_dtype):
    hw = h * w
    pad = kmax // 2
    off0 = pad * w + pad          # start of the real image in the guard buffer

    def kernel(x_ref, w_ref, m_ref, o_ref, p_ref, xpf_ref, col_ref):
        # x_ref  : (1, Cin, H*W)      bf16  flattened NCHW input block
        # w_ref  : (Cout, CKpad)      bf16  fused weights (+ bias column)
        # m_ref  : (KMAX, H*W)        bf16  per-kj width-validity masks
        # o_ref  : (1, Cout, H*W)     f32   conv output (lane-dense)
        # p_ref  : (1, Cout, 1)       f32   global average pool
        # xpf_ref: VMEM (Cin, L)      bf16  zero-guarded flat input
        # col_ref: VMEM (CKpad, H*W)  bf16  im2col slab (taps folded into K)

        # Zero-guarded copy of the input (replaces the padded HBM copy).
        xpf_ref[...] = jnp.zeros_like(xpf_ref)
        xpf_ref[:, off0:off0 + hw] = x_ref[0]

        # Inert padded contraction rows + the "ones" row that pairs with the
        # bias column of w_ref (bias folded into the MXU matmul).
        col_ref[ck:, :] = jnp.zeros((ck_pad - ck, hw), compute_dtype)
        col_ref[ck:ck + 1, :] = jnp.ones((1, hw), compute_dtype)

        # Build the im2col slab: one masked, shifted copy per tap.
        # A 2-D shift of (ki-pad, kj-pad) is a shift of ki*W + kj in the
        # zero-guarded flat buffer; width wrap-around is killed by m_ref[kj].
        # TODO(synk): replace the static ki unroll with a lax.fori_loop once
        # dynamic lane-offset slicing is validated on all target generations.
        for ki in range(kmax):
            for kj in range(kmax):
                s0 = ki * w + kj
                r0 = (ki * kmax + kj) * cin
                col_ref[r0:r0 + cin, :] = (
                    xpf_ref[:, s0:s0 + hw] * m_ref[kj:kj + 1, :])

        # Single MXU matmul: taps + channels + bias folded into the
        # contraction dim, all pyramid levels folded into Cout.
        out = jnp.dot(w_ref[...], col_ref[...],
                      preferred_element_type=jnp.float32)     # (Cout, H*W) f32

        o_ref[0] = out.astype(o_ref.dtype)
        # Fused AdaptiveAvgPool2d(1): mean over the lane-dense spatial axis.
        p_ref[0] = jnp.mean(out, axis=1, keepdims=True).astype(p_ref.dtype)

    return kernel


def pyconv_gpool_forward(x_nchw, fused):
    """Fused PyGConvGPool forward. x: (N, Cin, H, W) NCHW, as in PyTorch."""
    n, cin, h, w = x_nchw.shape
    kmax = fused["kmax"]
    pad = kmax // 2
    hw = h * w
    ck = kmax * kmax * cin
    cout, ck_pad = fused["w_mat"].shape
    compute_dtype = fused["w_mat"].dtype
    buf_len = hw + 2 * (pad * w + pad)   # guard rows above/below +- pad lanes

    # Free reshape (NCHW is row-major over (H, W)); bf16 cast per perf review.
    x_flat = x_nchw.reshape(n, cin, hw).astype(compute_dtype)

    # Per-kj width-validity masks (shared by every level and every ki).
    wcoord = jnp.arange(hw, dtype=jnp.int32) % w
    masks = jnp.stack(
        [((wcoord + (kj - pad) >= 0) & (wcoord + (kj - pad) < w))
         for kj in range(kmax)], axis=0).astype(compute_dtype)     # (KMAX, HW)

    kernel = _make_pyconv_kernel(kmax=kmax, h=h, w=w, cin=cin, ck=ck,
                                 ck_pad=ck_pad, compute_dtype=compute_dtype)

    out_flat, pooled = pl.pallas_call(
        kernel,
        out_shape=(jax.ShapeDtypeStruct((n, cout, hw), jnp.float32),
                   jax.ShapeDtypeStruct((n, cout, 1), jnp.float32)),
        grid_spec=pltpu.PrefetchScalarGridSpec(
            num_scalar_prefetch=0,
            grid=(n,),
            in_specs=[
                pl.BlockSpec((1, cin, hw), lambda i: (i, 0, 0)),
                pl.BlockSpec((cout, ck_pad), lambda i: (0, 0)),
                pl.BlockSpec((kmax, hw), lambda i: (0, 0)),
            ],
            out_specs=(
                pl.BlockSpec((1, cout, hw), lambda i: (i, 0, 0)),
                pl.BlockSpec((1, cout, 1), lambda i: (i, 0, 0)),
            ),
            scratch_shapes=[
                pltpu.VMEM((cin, buf_len), compute_dtype),
                pltpu.VMEM((ck_pad, hw), compute_dtype),
            ],
        ),
        # VMEM use is ~1.5 MiB/step here (well under every generation's
        # default scoped limit).  TODO(synk): at production H/W/Cin, tile the
        # spatial axis (grid=(N, H//TH) with a TH+KMAX-1 halo) and set
        # vmem_limit_bytes per generation (16/32 MiB defaults).
        compiler_params=pltpu.CompilerParams(
            dimension_semantics=("parallel",)),
    )(x_flat, fused["w_mat"], masks)

    return {
        "out_feature": out_flat.reshape(n, cout, h, w),
        "global_feature": pooled.reshape(n, cout, 1, 1),
    }


# ----------------------------------------------------------------------------
# Parameter setup (mirrors nn.Conv2d shapes / init bounds) + level fusion glue.
# ----------------------------------------------------------------------------
def pyconv_level_config(out_channels, num_levels):
    assert out_channels % 4 == 0 and num_levels <= 4
    if num_levels == 4:
        pyr = [out_channels // 4] * 4
    elif num_levels == 3:
        pyr = [out_channels // 4] * 2 + [out_channels // 2]
    elif num_levels == 2:
        pyr = [out_channels // 2] * 2
    else:
        pyr = [out_channels]
    return list(KERNEL_SIZES[:num_levels]), list(NUM_GROUPS[:num_levels]), pyr


def init_pyconv_params(key, in_channels, out_channels, num_levels):
    ks, gs, cos = pyconv_level_config(out_channels, num_levels)
    levels = []
    for k, g, co in zip(ks, gs, cos):
        assert co % g == 0 and in_channels % g == 0
        key, k1, k2 = jax.random.split(key, 3)
        fan_in = (in_channels // g) * k * k
        bound = 1.0 / (fan_in ** 0.5)
        # PyTorch grouped Conv2d weight layout: (Cout, Cin//g, K, K)
        w_grp = jax.random.uniform(k1, (co, in_channels // g, k, k),
                                   jnp.float32, -bound, bound)
        b = jax.random.uniform(k2, (co,), jnp.float32, -bound, bound)
        levels.append(dict(K=k, groups=g, w_grp=w_grp, bias=b))
    return levels


def build_fused_weights(levels, in_channels, *, compute_dtype=jnp.bfloat16):
    """Fold all pyramid levels into one (Cout_total, CKpad) matmul weight."""
    # TODO(synk): at large Cin the dense zero-expansion of grouped weights
    # wastes MXU FLOPs / weight bandwidth by the group count; switch to
    # per-group matmuls there (fine while Cin <= ~128).
    kmax = max(lv["K"] for lv in levels)
    ck = kmax * kmax * in_channels
    ck_pad = _round_up(ck + 1, 128)          # +1 contraction row for the bias
    rows, biases = [], []
    for lv in levels:
        k, g = lv["K"], lv["groups"]
        co = lv["w_grp"].shape[0]
        cpg_o, cpg_i = co // g, in_channels // g
        # Exact dense expansion of the grouped weight (zeros across groups).
        w_dense = jnp.zeros((co, in_channels, k, k), jnp.float32)
        for gi in range(g):
            w_dense = w_dense.at[gi * cpg_o:(gi + 1) * cpg_o,
                                 gi * cpg_i:(gi + 1) * cpg_i].set(
                lv["w_grp"][gi * cpg_o:(gi + 1) * cpg_o])
        off = (kmax - k) // 2                # center this level's taps
        w_full = jnp.zeros((co, in_channels, kmax, kmax), jnp.float32)
        w_full = w_full.at[:, :, off:off + k, off:off + k].set(w_dense)
        # (co, Cin, KMAX, KMAX) -> (co, KMAX, KMAX, Cin) -> (co, CK)
        rows.append(jnp.transpose(w_full, (0, 2, 3, 1)).reshape(co, ck))
        biases.append(lv["bias"])
    w_mat = jnp.concatenate(rows, axis=0)
    bias = jnp.concatenate(biases, axis=0)
    cout = w_mat.shape[0]
    w_pad = jnp.zeros((cout, ck_pad), jnp.float32)
    w_pad = w_pad.at[:, :ck].set(w_mat)
    w_pad = w_pad.at[:, ck].set(bias)        # pairs with the 'ones' col row
    return dict(kmax=kmax, w_mat=w_pad.astype(compute_dtype))


# ----------------------------------------------------------------------------
# Pure-JAX reference (true grouped conv + global avg pool).
# ----------------------------------------------------------------------------
def pyconv_gpool_reference(x_nchw, levels, *, cast_dtype=None):
    """If cast_dtype is set, inputs/weights are rounded to it first (to match
    the kernel's bf16 operand rounding) and then convolved in f32."""
    def rd(a):
        return a.astype(cast_dtype).astype(jnp.float32) if cast_dtype else a
    x = rd(x_nchw)
    outs = []
    for lv in levels:
        pad = lv["K"] // 2
        y = lax.conv_general_dilated(
            x, rd(lv["w_grp"]),
            window_strides=(1, 1),
            padding=[(pad, pad), (pad, pad)],
            dimension_numbers=("NCHW", "OIHW", "NCHW"),
            feature_group_count=lv["groups"],
            precision=lax.Precision.HIGHEST)
        outs.append(y + rd(lv["bias"])[None, :, None, None])
    out = jnp.concatenate(outs, axis=1)
    glob = jnp.mean(out, axis=(2, 3), keepdims=True)
    return {"out_feature": out, "global_feature": glob}


if __name__ == "__main__":
    # Module constraints: num_levels=4 -> per-level Cout % 16 == 0 (so
    # out_channels % 64 == 0) and in_channels % 16 == 0.  stride=1.
    # TODO(synk): stride > 1 (a constructor arg of the module) not implemented.
    N, Cin, H, W = 2, 16, 16, 16
    Cout, num_levels = 64, 4

    key = jax.random.PRNGKey(0)
    kx, kp = jax.random.split(key)
    x = jax.random.normal(kx, (N, Cin, H, W), jnp.float32)    # NCHW as PyTorch
    levels = init_pyconv_params(kp, Cin, Cout, num_levels)
    fused = build_fused_weights(levels, Cin, compute_dtype=jnp.bfloat16)

    out = pyconv_gpool_forward(x, fused)
    out = jax.block_until_ready(out)
    assert out["out_feature"].shape == (N, Cout, H, W)
    assert out["global_feature"].shape == (N, Cout, 1, 1)

    # Matched-precision reference (same bf16 rounding of x / weights / bias):
    # tight check of the kernel math itself.
    ref_m = jax.block_until_ready(
        pyconv_gpool_reference(x, levels, cast_dtype=jnp.bfloat16))
    assert jnp.allclose(out["out_feature"], ref_m["out_feature"],
                        atol=2e-3, rtol=2e-3), float(
        jnp.max(jnp.abs(out["out_feature"] - ref_m["out_feature"])))
    assert jnp.allclose(out["global_feature"], ref_m["global_feature"],
                        atol=2e-3, rtol=2e-3)

    # Loose sanity check vs. the full-f32 reference (bf16 operand rounding).
    ref_f = jax.block_until_ready(pyconv_gpool_reference(x, levels))
    assert jnp.allclose(out["out_feature"], ref_f["out_feature"],
                        atol=1e-1, rtol=1e-1)
    assert jnp.allclose(out["global_feature"], ref_f["global_feature"],
                        atol=1e-1, rtol=1e-1)

    print("KERNEL_OK")
</pallas_src>

<mosaic_0001>
module attributes {stable_mosaic.version = 11 : i64} {
  func.func @kernel(%arg0: i32, %arg1: memref<1x16x256xbf16, #tpu.memory_space<vmem>>, %arg2: memref<64x1408xbf16, #tpu.memory_space<vmem>>, %arg3: memref<9x256xbf16, #tpu.memory_space<vmem>>, %arg4: memref<1x64x256xf32, #tpu.memory_space<vmem>>, %arg5: memref<1x64x1xf32, #tpu.memory_space<vmem>>, %arg6: memref<16x392xbf16, #tpu.memory_space<vmem>>, %arg7: memref<1408x256xbf16, #tpu.memory_space<vmem>>) attributes {dimension_semantics = [#tpu.dimension_semantics<parallel>], iteration_bounds = array<i64: 2>, scalar_prefetch = 0 : i64, scratch_operands = 2 : i64, tpu.core_type = #tpu.core_type<tc>, window_params = [{transform_indices = @transform_0, window_bounds = array<i64: 1, 16, 256>}, {pipeline_mode = #tpu.pipeline_mode<synchronous>, transform_indices = @transform_1, window_bounds = array<i64: 64, 1408>}, {pipeline_mode = #tpu.pipeline_mode<synchronous>, transform_indices = @transform_2, window_bounds = array<i64: 9, 256>}, {transform_indices = @transform_3, window_bounds = array<i64: 1, 64, 256>}, {transform_indices = @transform_4, window_bounds = array<i64: 1, 64, 1>}]} {
    %cst = arith.constant 0.000000e+00 : bf16
    %0 = vector.broadcast %cst : bf16 to vector<16x392xbf16>
    %c0 = arith.constant 0 : index
    %c0_0 = arith.constant 0 : index
    %1 = vector.load %arg6[%c0, %c0_0] : memref<16x392xbf16, #tpu.memory_space<vmem>>, vector<16x392xbf16>
    tpu.vector_store %arg6[%c0, %c0_0], %0 {strides = array<i32>} : memref<16x392xbf16, #tpu.memory_space<vmem>>, vector<16x392xbf16>,
    %c0_1 = arith.constant 0 : index
    %c0_2 = arith.constant 0 : index
    %c0_3 = arith.constant 0 : index
    %2 = vector.load %arg1[%c0_1, %c0_2, %c0_3] : memref<1x16x256xbf16, #tpu.memory_space<vmem>>, vector<1x16x256xbf16>
    %3 = vector.shape_cast %2 : vector<1x16x256xbf16> to vector<16x256xbf16>
    %c0_4 = arith.constant 0 : index
    %c68 = arith.constant 68 : index
    %4 = vector.load %arg6[%c0_4, %c68] : memref<16x392xbf16, #tpu.memory_space<vmem>>, vector<16x256xbf16>
    tpu.vector_store %arg6[%c0_4, %c68], %3 {strides = array<i32>} : memref<16x392xbf16, #tpu.memory_space<vmem>>, vector<16x256xbf16>,
    %cst_5 = arith.constant 0.000000e+00 : bf16
    %5 = vector.broadcast %cst_5 : bf16 to vector<112x256xbf16>
    %c1296 = arith.constant 1296 : index
    %c0_6 = arith.constant 0 : index
    %6 = vector.load %arg7[%c1296, %c0_6] : memref<1408x256xbf16, #tpu.memory_space<vmem>>, vector<112x256xbf16>
    tpu.vector_store %arg7[%c1296, %c0_6], %5 {strides = array<i32>} : memref<1408x256xbf16, #tpu.memory_space<vmem>>, vector<112x256xbf16>,
    %cst_7 = arith.constant 1.000000e+00 : bf16
    %7 = vector.broadcast %cst_7 : bf16 to vector<1x256xbf16>
    %c1296_8 = arith.constant 1296 : index
    %c0_9 = arith.constant 0 : index
    %8 = vector.load %arg7[%c1296_8, %c0_9] : memref<1408x256xbf16, #tpu.memory_space<vmem>>, vector<1x256xbf16>
    tpu.vector_store %arg7[%c1296_8, %c0_9], %7 {strides = array<i32>} : memref<1408x256xbf16, #tpu.memory_space<vmem>>, vector<1x256xbf16>,
    %c0_10 = arith.constant 0 : index
    %c0_11 = arith.constant 0 : index
    %9 = vector.load %arg6[%c0_10, %c0_11] : memref<16x392xbf16, #tpu.memory_space<vmem>>, vector<16x256xbf16>
    %c0_12 = arith.constant 0 : index
    %c0_13 = arith.constant 0 : index
    %10 = vector.load %arg3[%c0_12, %c0_13] : memref<9x256xbf16, #tpu.memory_space<vmem>>, vector<1x256xbf16>
    %11 = vector.broadcast %10 : vector<1x256xbf16> to vector<16x256xbf16>
    %12 = arith.mulf %9, %11 : vector<16x256xbf16>
    %c0_14 = arith.constant 0 : index
    %c0_15 = arith.constant 0 : index
    %13 = vector.load %arg7[%c0_14, %c0_15] : memref<1408x256xbf16, #tpu.memory_space<vmem>>, vector<16x256xbf16>
    tpu.vector_store %arg7[%c0_14, %c0_15], %12 {strides = array<i32>} : memref<1408x256xbf16, #tpu.memory_space<vmem>>, vector<16x256xbf16>,
    %c0_16 = arith.constant 0 : index
    %c1 = arith.constant 1 : index
    %14 = vector.load %arg6[%c0_16, %c1] : memref<16x392xbf16, #tpu.memory_space<vmem>>, vector<16x256xbf16>
    %c1_17 = arith.constant 1 : index
    %c0_18 = arith.constant 0 : index
    %15 = vector.load %arg3[%c1_17, %c0_18] : memref<9x256xbf16, #tpu.memory_space<vmem>>, vector<1x256xbf16>
    %16 = vector.broadcast %15 : vector<1x256xbf16> to vector<16x256xbf16>
    %17 = arith.mulf %14, %16 : vector<16x256xbf16>
    %c16 = arith.constant 16 : index
    %c0_19 = arith.constant 0 : index
    %18 = vector.load %arg7[%c16, %c0_19] : memref<1408x256xbf16, #tpu.memory_space<vmem>>, vector<16x256xbf16>
    tpu.vector_store %arg7[%c16, %c0_19], %17 {strides = array<i32>} : memref<1408x256xbf16, #tpu.memory_space<vmem>>, vector<16x256xbf16>,
    %c0_20 = arith.constant 0 : index
    %c2 = arith.constant 2 : index
    %19 = vector.load %arg6[%c0_20, %c2] : memref<16x392xbf16, #tpu.memory_space<vmem>>, vector<16x256xbf16>
    %c2_21 = arith.constant 2 : index
    %c0_22 = arith.constant 0 : index
    %20 = vector.load %arg3[%c2_21, %c0_22] : memref<9x256xbf16, #tpu.memory_space<vmem>>, vector<1x256xbf16>
    %21 = vector.broadcast %20 : vector<1x256xbf16> to vector<16x256xbf16>
    %22 = arith.mulf %19, %21 : vector<16x256xbf16>
    %c32 = arith.constant 32 : index
    %c0_23 = arith.constant 0 : index
    %23 = vector.load %arg7[%c32, %c0_23] : memref<1408x256xbf16, #tpu.memory_space<vmem>>, vector<16x256xbf16>
    tpu.vector_store %arg7[%c32, %c0_23], %22 {strides = array<i32>} : memref<1408x256xbf16, #tpu.memory_space<vmem>>, vector<16x256xbf16>,
    %c0_24 = arith.constant 0 : index
    %c3 = arith.constant 3 : index
    %24 = vector.load %arg6[%c0_24, %c3] : memref<16x392xbf16, #tpu.memory_space<vmem>>, vector<16x256xbf16>
    %c3_25 = arith.constant 3 : index
    %c0_26 = arith.constant 0 : index
    %25 = vector.load %arg3[%c3_25, %c0_26] : memref<9x256xbf16, #tpu.memory_space<vmem>>, vector<1x256xbf16>
    %26 = vector.broadcast %25 : vector<1x256xbf16> to vector<16x256xbf16>
    %27 = arith.mulf %24, %26 : vector<16x256xbf16>
    %c48 = arith.constant 48 : index
    %c0_27 = arith.constant 0 : index
    %28 = vector.load %arg7[%c48, %c0_27] : memref<1408x256xbf16, #tpu.memory_space<vmem>>, vector<16x256xbf16>
    tpu.vector_store %arg7[%c48, %c0_27], %27 {strides = array<i32>} : memref<1408x256xbf16, #tpu.memory_space<vmem>>, vector<16x256xbf16>,
    %c0_28 = arith.constant 0 : index
    %c4 = arith.constant 4 : index
    %29 = vector.load %arg6[%c0_28, %c4] : memref<16x392xbf16, #tpu.memory_space<vmem>>, vector<16x256xbf16>
    %c4_29 = arith.constant 4 : index
    %c0_30 = arith.constant 0 : index
    %30 = vector.load %arg3[%c4_29, %c0_30] : memref<9x256xbf16, #tpu.memory_space<vmem>>, vector<1x256xbf16>
    %31 = vector.broadcast %30 : vector<1x256xbf16> to vector<16x256xbf16>
    %32 = arith.mulf %29, %31 : vector<16x256xbf16>
    %c64 = arith.constant 64 : index
    %c0_31 = arith.constant 0 : index
    %33 = vector.load %arg7[%c64, %c0_31] : memref<1408x256xbf16, #tpu.memory_space<vmem>>, vector<16x256xbf16>
    tpu.vector_store %arg7[%c64, %c0_31], %32 {strides = array<i32>} : memref<1408x256xbf16, #tpu.memory_space<vmem>>, vector<16x256xbf16>,
    %c0_32 = arith.constant 0 : index
    %c5 = arith.constant 5 : index
    %34 = vector.load %arg6[%c0_32, %c5] : memref<16x392xbf16, #tpu.memory_space<vmem>>, vector<16x256xbf16>
    %c5_33 = arith.constant 5 : index
    %c0_34 = arith.constant 0 : index
    %35 = vector.load %arg3[%c5_33, %c0_34] : memref<9x256xbf16, #tpu.memory_space<vmem>>, vector<1x256xbf16>
    %36 = vector.broadcast %35 : vector<1x256xbf16> to vector<16x256xbf16>
    %37 = arith.mulf %34, %36 : vector<16x256xbf16>
    %c80 = arith.constant 80 : index
    %c0_35 = arith.constant 0 : index
    %38 = vector.load %arg7[%c80, %c0_35] : memref<1408x256xbf16, #tpu.memory_space<vmem>>, vector<16x256xbf16>
    tpu.vector_store %arg7[%c80, %c0_35], %37 {strides = array<i32>} : memref<1408x256xbf16, #tpu.memory_space<vmem>>, vector<16x256xbf16>,
    %c0_36 = arith.constant 0 : index
    %c6 = arith.constant 6 : index
    %39 = vector.load %arg6[%c0_36, %c6] : memref<16x392xbf16, #tpu.memory_space<vmem>>, vector<16x256xbf16>
    %c6_37 = arith.constant 6 : index
    %c0_38 = arith.constant 0 : index
    %40 = vector.load %arg3[%c6_37, %c0_38] : memref<9x256xbf16, #tpu.memory_space<vmem>>, vector<1x256xbf16>
    %41 = vector.broadcast %40 : vector<1x256xbf16> to vector<16x256xbf16>
    %42 = arith.mulf %39, %41 : vector<16x256xbf16>
    %c96 = arith.constant 96 : index
    %c0_39 = arith.constant 0 : index
    %43 = vector.load %arg7[%c96, %c0_39] : memref<1408x256xbf16, #tpu.memory_space<vmem>>, vector<16x256xbf16>
    tpu.vector_store %arg7[%c96, %c0_39], %42 {strides = array<i32>} : memref<1408x256xbf16, #tpu.memory_space<vmem>>, vector<16x256xbf16>,
    %c0_40 = arith.constant 0 : index
    %c7 = arith.constant 7 : index
    %44 = vector.load %arg6[%c0_40, %c7] : memref<16x392xbf16, #tpu.memory_space<vmem>>, vector<16x256xbf16>
    %c7_41 = arith.constant 7 : index
    %c0_42 = arith.constant 0 : index
    %45 = vector.load %arg3[%c7_41, %c0_42] : memref<9x256xbf16, #tpu.memory_space<vmem>>, vector<1x256xbf16>
    %46 = vector.broadcast %45 : vector<1x256xbf16> to vector<16x256xbf16>
    %47 = arith.mulf %44, %46 : vector<16x256xbf16>
    %c112 = arith.constant 112 : index
    %c0_43 = arith.constant 0 : index
    %48 = vector.load %arg7[%c112, %c0_43] : memref<1408x256xbf16, #tpu.memory_space<vmem>>, vector<16x256xbf16>
    tpu.vector_store %arg7[%c112, %c0_43], %47 {strides = array<i32>} : memref<1408x256xbf16, #tpu.memory_space<vmem>>, vector<16x256xbf16>,
    %c0_44 = arith.constant 0 : index
    %c8 = arith.constant 8 : index
    %49 = vector.load %arg6[%c0_44, %c8] : memref<16x392xbf16, #tpu.memory_space<vmem>>, vector<16x256xbf16>
    %c8_45 = arith.constant 8 : index
    %c0_46 = arith.constant 0 : index
    %50 = vector.load %arg3[%c8_45, %c0_46] : memref<9x256xbf16, #tpu.memory_space<vmem>>, vector<1x256xbf16>
    %51 = vector.broadcast %50 : vector<1x256xbf16> to vector<16x256xbf16>
    %52 = arith.mulf %49, %51 : vector<16x256xbf16>
    %c128 = arith.constant 128 : index
    %c0_47 = arith.constant 0 : index
    %53 = vector.load %arg7[%c128, %c0_47] : memref<1408x256xbf16, #tpu.memory_space<vmem>>, vector<16x256xbf16>
    tpu.vector_store %arg7[%c128, %c0_47], %52 {strides = array<i32>} : memref<1408x256xbf16, #tpu.memory_space<vmem>>, vector<16x256xbf16>,
    %c0_48 = arith.constant 0 : index
    %c16_49 = arith.constant 16 : index
    %54 = vector.load %arg6[%c0_48, %c16_49] : memref<16x392xbf16, #tpu.memory_space<vmem>>, vector<16x256xbf16>
    %c0_50 = arith.constant 0 : index
    %c0_51 = arith.constant 0 : index
    %55 = vector.load %arg3[%c0_50, %c0_51] : memref<9x256xbf16, #tpu.memory_space<vmem>>, vector<1x256xbf16>
    %56 = vector.broadcast %55 : vector<1x256xbf16> to vector<16x256xbf16>
    %57 = arith.mulf %54, %56 : vector<16x256xbf16>
    %c144 = arith.constant 144 : index
    %c0_52 = arith.constant 0 : index
    %58 = vector.load %arg7[%c144, %c0_52] : memref<1408x256xbf16, #tpu.memory_space<vmem>>, vector<16x256xbf16>
    tpu.vector_store %arg7[%c144, %c0_52], %57 {strides = array<i32>} : memref<1408x256xbf16, #tpu.memory_space<vmem>>, vector<16x256xbf16>,
    %c0_53 = arith.constant 0 : index
    %c17 = arith.constant 17 : index
    %59 = vector.load %arg6[%c0_53, %c17] : memref<16x392xbf16, #tpu.memory_space<vmem>>, vector<16x256xbf16>
    %c1_54 = arith.constant 1 : index
    %c0_55 = arith.constant 0 : index
    %60 = vector.load %arg3[%c1_54, %c0_55] : memref<9x256xbf16, #tpu.memory_space<vmem>>, vector<1x256xbf16>
    %61 = vector.broadcast %60 : vector<1x256xbf16> to vector<16x256xbf16>
    %62 = arith.mulf %59, %61 : vector<16x256xbf16>
    %c160 = arith.constant 160 : index
    %c0_56 = arith.constant 0 : index
    %63 = vector.load %arg7[%c160, %c0_56] : memref<1408x256xbf16, #tpu.memory_space<vmem>>, vector<16x256xbf16>
    tpu.vector_store %arg7[%c160, %c0_56], %62 {strides = array<i32>} : memref<1408x256xbf16, #tpu.memory_space<vmem>>, vector<16x256xbf16>,
    %c0_57 = arith.constant 0 : index
    %c18 = arith.constant 18 : index
    %64 = vector.load %arg6[%c0_57, %c18] : memref<16x392xbf16, #tpu.memory_space<vmem>>, vector<16x256xbf16>
    %c2_58 = arith.constant 2 : index
    %c0_59 = arith.constant 0 : index
    %65 = vector.load %arg3[%c2_58, %c0_59] : memref<9x256xbf16, #tpu.memory_space<vmem>>, vector<1x256xbf16>
    %66 = vector.broadcast %65 : vector<1x256xbf16> to vector<16x256xbf16>
    %67 = arith.mulf %64, %66 : vector<16x256xbf16>
    %c176 = arith.constant 176 : index
    %c0_60 = arith.constant 0 : index
    %68 = vector.load %arg7[%c176, %c0_60] : memref<1408x256xbf16, #tpu.memory_space<vmem>>, vector<16x256xbf16>
    tpu.vector_store %arg7[%c176, %c0_60], %67 {strides = array<i32>} : memref<1408x256xbf16, #tpu.memory_space<vmem>>, vector<16x256xbf16>,
    %c0_61 = arith.constant 0 : index
    %c19 = arith.constant 19 : index
    %69 = vector.load %arg6[%c0_61, %c19] : memref<16x392xbf16, #tpu.memory_space<vmem>>, vector<16x256xbf16>
    %c3_62 = arith.constant 3 : index
    %c0_63 = arith.constant 0 : index
    %70 = vector.load %arg3[%c3_62, %c0_63] : memref<9x256xbf16, #tpu.memory_space<vmem>>, vector<1x256xbf16>
    %71 = vector.broadcast %70 : vector<1x256xbf16> to vector<16x256xbf16>
    %72 = arith.mulf %69, %71 : vector<16x256xbf16>
    %c192 = arith.constant 192 : index
    %c0_64 = arith.constant 0 : index
    %73 = vector.load %arg7[%c192, %c0_64] : memref<1408x256xbf16, #tpu.memory_space<vmem>>, vector<16x256xbf16>
    tpu.vector_store %arg7[%c192, %c0_64], %72 {strides = array<i32>} : memref<1408x256xbf16, #tpu.memory_space<vmem>>, vector<16x256xbf16>,
    %c0_65 = arith.constant 0 : index
    %c20 = arith.constant 20 : index
    %74 = vector.load %arg6[%c0_65, %c20] : memref<16x392xbf16, #tpu.memory_space<vmem>>, vector<16x256xbf16>
    %c4_66 = arith.constant 4 : index
    %c0_67 = arith.constant 0 : index
    %75 = vector.load %arg3[%c4_66, %c0_67] : memref<9x256xbf16, #tpu.memory_space<vmem>>, vector<1x256xbf16>
    %76 = vector.broadcast %75 : vector<1x256xbf16> to vector<16x256xbf16>
    %77 = arith.mulf %74, %76 : vector<16x256xbf16>
    %c208 = arith.constant 208 : index
    %c0_68 = arith.constant 0 : index
    %78 = vector.load %arg7[%c208, %c0_68] : memref<1408x256xbf16, #tpu.memory_space<vmem>>, vector<16x256xbf16>
    tpu.vector_store %arg7[%c208, %c0_68], %77 {strides = array<i32>} : memref<1408x256xbf16, #tpu.memory_space<vmem>>, vector<16x256xbf16>,
    %c0_69 = arith.constant 0 : index
    %c21 = arith.constant 21 : index
    %79 = vector.load %arg6[%c0_69, %c21] : memref<16x392xbf16, #tpu.memory_space<vmem>>, vector<16x256xbf16>
    %c5_70 = arith.constant 5 : index
    %c0_71 = arith.constant 0 : index
    %80 = vector.load %arg3[%c5_70, %c0_71] : memref<9x256xbf16, #tpu.memory_space<vmem>>, vector<1x256xbf16>
    %81 = vector.broadcast %80 : vector<1x256xbf16> to vector<16x256xbf16>
    %82 = arith.mulf %79, %81 : vector<16x256xbf16>
    %c224 = arith.constant 224 : index
    %c0_72 = arith.constant 0 : index
    %83 = vector.load %arg7[%c224, %c0_72] : memref<1408x256xbf16, #tpu.memory_space<vmem>>, vector<16x256xbf16>
    tpu.vector_store %arg7[%c224, %c0_72], %82 {strides = array<i32>} : memref<1408x256xbf16, #tpu.memory_space<vmem>>, vector<16x256xbf16>,
    %c0_73 = arith.constant 0 : index
    %c22 = arith.constant 22 : index
    %84 = vector.load %arg6[%c0_73, %c22] : memref<16x392xbf16, #tpu.memory_space<vmem>>, vector<16x256xbf16>
    %c6_74 = arith.constant 6 : index
    %c0_75 = arith.constant 0 : index
    %85 = vector.load %arg3[%c6_74, %c0_75] : memref<9x256xbf16, #tpu.memory_space<vmem>>, vector<1x256xbf16>
    %86 = vector.broadcast %85 : vector<1x256xbf16> to vector<16x256xbf16>
    %87 = arith.mulf %84, %86 : vector<16x256xbf16>
    %c240 = arith.constant 240 : index
    %c0_76 = arith.constant 0 : index
    %88 = vector.load %arg7[%c240, %c0_76] : memref<1408x256xbf16, #tpu.memory_space<vmem>>, vector<16x256xbf16>
    tpu.vector_store %arg7[%c240, %c0_76], %87 {strides = array<i32>} : memref<1408x256xbf16, #tpu.memory_space<vmem>>, vector<16x256xbf16>,
    %c0_77 = arith.constant 0 : index
    %c23 = arith.constant 23 : index
    %89 = vector.load %arg6[%c0_77, %c23] : memref<16x392xbf16, #tpu.memory_space<vmem>>, vector<16x256xbf16>
    %c7_78 = arith.constant 7 : index
    %c0_79 = arith.constant 0 : index
    %90 = vector.load %arg3[%c7_78, %c0_79] : memref<9x256xbf16, #tpu.memory_space<vmem>>, vector<1x256xbf16>
    %91 = vector.broadcast %90 : vector<1x256xbf16> to vector<16x256xbf16>
    %92 = arith.mulf %89, %91 : vector<16x256xbf16>
    %c256 = arith.constant 256 : index
    %c0_80 = arith.constant 0 : index
    %93 = vector.load %arg7[%c256, %c0_80] : memref<1408x256xbf16, #tpu.memory_space<vmem>>, vector<16x256xbf16>
    tpu.vector_store %arg7[%c256, %c0_80], %92 {strides = array<i32>} : memref<1408x256xbf16, #tpu.memory_space<vmem>>, vector<16x256xbf16>,
    %c0_81 = arith.constant 0 : index
    %c24 = arith.constant 24 : index
    %94 = vector.load %arg6[%c0_81, %c24] : memref<16x392xbf16, #tpu.memory_space<vmem>>, vector<16x256xbf16>
    %c8_82 = arith.constant 8 : index
    %c0_83 = arith.constant 0 : index
    %95 = vector.load %arg3[%c8_82, %c0_83] : memref<9x256xbf16, #tpu.memory_space<vmem>>, vector<1x256xbf16>
    %96 = vector.broadcast %95 : vector<1x256xbf16> to vector<16x256xbf16>
    %97 = arith.mulf %94, %96 : vector<16x256xbf16>
    %c272 = arith.constant 272 : index
    %c0_84 = arith.constant 0 : index
    %98 = vector.load %arg7[%c272, %c0_84] : memref<1408x256xbf16, #tpu.memory_space<vmem>>, vector<16x256xbf16>
    tpu.vector_store %arg7[%c272, %c0_84], %97 {strides = array<i32>} : memref<1408x256xbf16, #tpu.memory_space<vmem>>, vector<16x256xbf16>,
    %c0_85 = arith.constant 0 : index
    %c32_86 = arith.constant 32 : index
    %99 = vector.load %arg6[%c0_85, %c32_86] : memref<16x392xbf16, #tpu.memory_space<vmem>>, vector<16x256xbf16>
    %c0_87 = arith.constant 0 : index
    %c0_88 = arith.constant 0 : index
    %100 = vector.load %arg3[%c0_87, %c0_88] : memref<9x256xbf16, #tpu.memory_space<vmem>>, vector<1x256xbf16>
    %101 = vector.broadcast %100 : vector<1x256xbf16> to vector<16x256xbf16>
    %102 = arith.mulf %99, %101 : vector<16x256xbf16>
    %c288 = arith.constant 288 : index
    %c0_89 = arith.constant 0 : index
    %103 = vector.load %arg7[%c288, %c0_89] : memref<1408x256xbf16, #tpu.memory_space<vmem>>, vector<16x256xbf16>
    tpu.vector_store %arg7[%c288, %c0_89], %102 {strides = array<i32>} : memref<1408x256xbf16, #tpu.memory_space<vmem>>, vector<16x256xbf16>,
    %c0_90 = arith.constant 0 : index
    %c33 = arith.constant 33 : index
    %104 = vector.load %arg6[%c0_90, %c33] : memref<16x392xbf16, #tpu.memory_space<vmem>>, vector<16x256xbf16>
    %c1_91 = arith.constant 1 : index
    %c0_92 = arith.constant 0 : index
    %105 = vector.load %arg3[%c1_91, %c0_92] : memref<9x256xbf16, #tpu.memory_space<vmem>>, vector<1x256xbf16>
    %106 = vector.broadcast %105 : vector<1x256xbf16> to vector<16x256xbf16>
    %107 = arith.mulf %104, %106 : vector<16x256xbf16>
    %c304 = arith.constant 304 : index
    %c0_93 = arith.constant 0 : index
    %108 = vector.load %arg7[%c304, %c0_93] : memref<1408x256xbf16, #tpu.memory_space<vmem>>, vector<16x256xbf16>
    tpu.vector_store %arg7[%c304, %c0_93], %107 {strides = array<i32>} : memref<1408x256xbf16, #tpu.memory_space<vmem>>, vector<16x256xbf16>,
    %c0_94 = arith.constant 0 : index
    %c34 = arith.constant 34 : index
    %109 = vector.load %arg6[%c0_94, %c34] : memref<16x392xbf16, #tpu.memory_space<vmem>>, vector<16x256xbf16>
    %c2_95 = arith.constant 2 : index
    %c0_96 = arith.constant 0 : index
    %110 = vector.load %arg3[%c2_95, %c0_96] : memref<9x256xbf16, #tpu.memory_space<vmem>>, vector<1x256xbf16>
    %111 = vector.broadcast %110 : vector<1x256xbf16> to vector<16x256xbf16>
    %112 = arith.mulf %109, %111 : vector<16x256xbf16>
    %c320 = arith.constant 320 : index
    %c0_97 = arith.constant 0 : index
    %113 = vector.load %arg7[%c320, %c0_97] : memref<1408x256xbf16, #tpu.memory_space<vmem>>, vector<16x256xbf16>
    tpu.vector_store %arg7[%c320, %c0_97], %112 {strides = array<i32>} : memref<1408x256xbf16, #tpu.memory_space<vmem>>, vector<16x256xbf16>,
    %c0_98 = arith.constant 0 : index
    %c35 = arith.constant 35 : index
    %114 = vector.load %arg6[%c0_98, %c35] : memref<16x392xbf16, #tpu.memory_space<vmem>>, vector<16x256xbf16>
    %c3_99 = arith.constant 3 : index
    %c0_100 = arith.constant 0 : index
    %115 = vector.load %arg3[%c3_99, %c0_100] : memref<9x256xbf16, #tpu.memory_space<vmem>>, vector<1x256xbf16>
    %116 = vector.broadcast %115 : vector<1x256xbf16> to vector<16x256xbf16>
    %117 = arith.mulf %114, %116 : vector<16x256xbf16>
    %c336 = arith.constant 336 : index
    %c0_101 = arith.constant 0 : index
    %118 = vector.load %arg7[%c336, %c0_101] : memref<1408x256xbf16, #tpu.memory_space<vmem>>, vector<16x256xbf16>
    tpu.vector_store %arg7[%c336, %c0_101], %117 {strides = array<i32>} : memref<1408x256xbf16, #tpu.memory_space<vmem>>, vector<16x256xbf16>,
    %c0_102 = arith.constant 0 : index
    %c36 = arith.constant 36 : index
    %119 = vector.load %arg6[%c0_102, %c36] : memref<16x392xbf16, #tpu.memory_space<vmem>>, vector<16x256xbf16>
    %c4_103 = arith.constant 4 : index
    %c0_104 = arith.constant 0 : index
    %120 = vector.load %arg3[%c4_103, %c0_104] : memref<9x256xbf16, #tpu.memory_space<vmem>>, vector<1x256xbf16>
    %121 = vector.broadcast %120 : vector<1x256xbf16> to vector<16x256xbf16>
    %122 = arith.mulf %119, %121 : vector<16x256xbf16>
    %c352 = arith.constant 352 : index
    %c0_105 = arith.constant 0 : index
    %123 = vector.load %arg7[%c352, %c0_105] : memref<1408x256xbf16, #tpu.memory_space<vmem>>, vector<16x256xbf16>
    tpu.vector_store %arg7[%c352, %c0_105], %122 {strides = array<i32>} : memref<1408x256xbf16, #tpu.memory_space<vmem>>, vector<16x256xbf16>,
    %c0_106 = arith.constant 0 : index
    %c37 = arith.constant 37 : index
    %124 = vector.load %arg6[%c0_106, %c37] : memref<16x392xbf16, #tpu.memory_space<vmem>>, vector<16x256xbf16>
    %c5_107 = arith.constant 5 : index
    %c0_108 = arith.constant 0 : index
    %125 = vector.load %arg3[%c5_107, %c0_108] : memref<9x256xbf16, #tpu.memory_space<vmem>>, vector<1x256xbf16>
    %126 = vector.broadcast %125 : vector<1x256xbf16> to vector<16x256xbf16>
    %127 = arith.mulf %124, %126 : vector<16x256xbf16>
    %c368 = arith.constant 368 : index
    %c0_109 = arith.constant 0 : index
    %128 = vector.load %arg7[%c368, %c0_109] : memref<1408x256xbf16, #tpu.memory_space<vmem>>, vector<16x256xbf16>
    tpu.vector_store %arg7[%c368, %c0_109], %127 {strides = array<i32>} : memref<1408x256xbf16, #tpu.memory_space<vmem>>, vector<16x256xbf16>,
    %c0_110 = arith.constant 0 : index
    %c38 = arith.constant 38 : index
    %129 = vector.load %arg6[%c0_110, %c38] : memref<16x392xbf16, #tpu.memory_space<vmem>>, vector<16x256xbf16>
    %c6_111 = arith.constant 6 : index
    %c0_112 = arith.constant 0 : index
    %130 = vector.load %arg3[%c6_111, %c0_112] : memref<9x256xbf16, #tpu.memory_space<vmem>>, vector<1x256xbf16>
    %131 = vector.broadcast %130 : vector<1x256xbf16> to vector<16x256xbf16>
    %132 = arith.mulf %129, %131 : vector<16x256xbf16>
    %c384 = arith.constant 384 : index
    %c0_113 = arith.constant 0 : index
    %133 = vector.load %arg7[%c384, %c0_113] : memref<1408x256xbf16, #tpu.memory_space<vmem>>, vector<16x256xbf16>
    tpu.vector_store %arg7[%c384, %c0_113], %132 {strides = array<i32>} : memref<1408x256xbf16, #tpu.memory_space<vmem>>, vector<16x256xbf16>,
    %c0_114 = arith.constant 0 : index
    %c39 = arith.constant 39 : index
    %134 = vector.load %arg6[%c0_114, %c39] : memref<16x392xbf16, #tpu.memory_space<vmem>>, vector<16x256xbf16>
    %c7_115 = arith.constant 7 : index
    %c0_116 = arith.constant 0 : index
    %135 = vector.load %arg3[%c7_115, %c0_116] : memref<9x256xbf16, #tpu.memory_space<vmem>>, vector<1x256xbf16>
    %136 = vector.broadcast %135 : vector<1x256xbf16> to vector<16x256xbf16>
    %137 = arith.mulf %134, %136 : vector<16x256xbf16>
    %c400 = arith.constant 400 : index
    %c0_117 = arith.constant 0 : index
    %138 = vector.load %arg7[%c400, %c0_117] : memref<1408x256xbf16, #tpu.memory_space<vmem>>, vector<16x256xbf16>
    tpu.vector_store %arg7[%c400, %c0_117], %137 {strides = array<i32>} : memref<1408x256xbf16, #tpu.memory_space<vmem>>, vector<16x256xbf16>,
    %c0_118 = arith.constant 0 : index
    %c40 = arith.constant 40 : index
    %139 = vector.load %arg6[%c0_118, %c40] : memref<16x392xbf16, #tpu.memory_space<vmem>>, vector<16x256xbf16>
    %c8_119 = arith.constant 8 : index
    %c0_120 = arith.constant 0 : index
    %140 = vector.load %arg3[%c8_119, %c0_120] : memref<9x256xbf16, #tpu.memory_space<vmem>>, vector<1x256xbf16>
    %141 = vector.broadcast %140 : vector<1x256xbf16> to vector<16x256xbf16>
    %142 = arith.mulf %139, %141 : vector<16x256xbf16>
    %c416 = arith.constant 416 : index
    %c0_121 = arith.constant 0 : index
    %143 = vector.load %arg7[%c416, %c0_121] : memref<1408x256xbf16, #tpu.memory_space<vmem>>, vector<16x256xbf16>
    tpu.vector_store %arg7[%c416, %c0_121], %142 {strides = array<i32>} : memref<1408x256xbf16, #tpu.memory_space<vmem>>, vector<16x256xbf16>,
    %c0_122 = arith.constant 0 : index
    %c48_123 = arith.constant 48 : index
    %144 = vector.load %arg6[%c0_122, %c48_123] : memref<16x392xbf16, #tpu.memory_space<vmem>>, vector<16x256xbf16>
    %c0_124 = arith.constant 0 : index
    %c0_125 = arith.constant 0 : index
    %145 = vector.load %arg3[%c0_124, %c0_125] : memref<9x256xbf16, #tpu.memory_space<vmem>>, vector<1x256xbf16>
    %146 = vector.broadcast %145 : vector<1x256xbf16> to vector<16x256xbf16>
    %147 = arith.mulf %144, %146 : vector<16x256xbf16>
    %c432 = arith.constant 432 : index
    %c0_126 = arith.constant 0 : index
    %148 = vector.load %arg7[%c432, %c0_126] : memref<1408x256xbf16, #tpu.memory_space<vmem>>, vector<16x256xbf16>
    tpu.vector_store %arg7[%c432, %c0_126], %147 {strides = array<i32>} : memref<1408x256xbf16, #tpu.memory_space<vmem>>, vector<16x256xbf16>,
    %c0_127 = arith.constant 0 : index
    %c49 = arith.constant 49 : index
    %149 = vector.load %arg6[%c0_127, %c49] : memref<16x392xbf16, #tpu.memory_space<vmem>>, vector<16x256xbf16>
    %c1_128 = arith.constant 1 : index
    %c0_129 = arith.constant 0 : index
    %150 = vector.load %arg3[%c1_128, %c0_129] : memref<9x256xbf16, #tpu.memory_space<vmem>>, vector<1x256xbf16>
    %151 = vector.broadcast %150 : vector<1x256xbf16> to vector<16x256xbf16>
    %152 = arith.mulf %149, %151 : vector<16x256xbf16>
    %c448 = arith.constant 448 : index
    %c0_130 = arith.constant 0 : index
    %153 = vector.load %arg7[%c448, %c0_130] : memref<1408x256xbf16, #tpu.memory_space<vmem>>, vector<16x256xbf16>
    tpu.vector_store %arg7[%c448, %c0_130], %152 {strides = array<i32>} : memref<1408x256xbf16, #tpu.memory_space<vmem>>, vector<16x256xbf16>,
    %c0_131 = arith.constant 0 : index
    %c50 = arith.constant 50 : index
    %154 = vector.load %arg6[%c0_131, %c50] : memref<16x392xbf16, #tpu.memory_space<vmem>>, vector<16x256xbf16>
    %c2_132 = arith.constant 2 : index
    %c0_133 = arith.constant 0 : index
    %155 = vector.load %arg3[%c2_132, %c0_133] : memref<9x256xbf16, #tpu.memory_space<vmem>>, vector<1x256xbf16>
    %156 = vector.broadcast %155 : vector<1x256xbf16> to vector<16x256xbf16>
    %157 = arith.mulf %154, %156 : vector<16x256xbf16>
    %c464 = arith.constant 464 : index
    %c0_134 = arith.constant 0 : index
    %158 = vector.load %arg7[%c464, %c0_134] : memref<1408x256xbf16, #tpu.memory_space<vmem>>, vector<16x256xbf16>
    tpu.vector_store %arg7[%c464, %c0_134], %157 {strides = array<i32>} : memref<1408x256xbf16, #tpu.memory_space<vmem>>, vector<16x256xbf16>,
    %c0_135 = arith.constant 0 : index
    %c51 = arith.constant 51 : index
    %159 = vector.load %arg6[%c0_135, %c51] : memref<16x392xbf16, #tpu.memory_space<vmem>>, vector<16x256xbf16>
    %c3_136 = arith.constant 3 : index
    %c0_137 = arith.constant 0 : index
    %160 = vector.load %arg3[%c3_136, %c0_137] : memref<9x256xbf16, #tpu.memory_space<vmem>>, vector<1x256xbf16>
    %161 = vector.broadcast %160 : vector<1x256xbf16> to vector<16x256xbf16>
    %162 = arith.mulf %159, %161 : vector<16x256xbf16>
    %c480 = arith.constant 480 : index
    %c0_138 = arith.constant 0 : index
    %163 = vector.load %arg7[%c480, %c0_138] : memref<1408x256xbf16, #tpu.memory_space<vmem>>, vector<16x256xbf16>
    tpu.vector_store %arg7[%c480, %c0_138], %162 {strides = array<i32>} : memref<1408x256xbf16, #tpu.memory_space<vmem>>, vector<16x256xbf16>,
    %c0_139 = arith.constant 0 : index
    %c52 = arith.constant 52 : index
    %164 = vector.load %arg6[%c0_139, %c52] : memref<16x392xbf16, #tpu.memory_space<vmem>>, vector<16x256xbf16>
    %c4_140 = arith.constant 4 : index
    %c0_141 = arith.constant 0 : index
    %165 = vector.load %arg3[%c4_140, %c0_141] : memref<9x256xbf16, #tpu.memory_space<vmem>>, vector<1x256xbf16>
    %166 = vector.broadcast %165 : vector<1x256xbf16> to vector<16x256xbf16>
    %167 = arith.mulf %164, %166 : vector<16x256xbf16>
    %c496 = arith.constant 496 : index
    %c0_142 = arith.constant 0 : index
    %168 = vector.load %arg7[%c496, %c0_142] : memref<1408x256xbf16, #tpu.memory_space<vmem>>, vector<16x256xbf16>
    tpu.vector_store %arg7[%c496, %c0_142], %167 {strides = array<i32>} : memref<1408x256xbf16, #tpu.memory_space<vmem>>, vector<16x256xbf16>,
    %c0_143 = arith.constant 0 : index
    %c53 = arith.constant 53 : index
    %169 = vector.load %arg6[%c0_143, %c53] : memref<16x392xbf16, #tpu.memory_space<vmem>>, vector<16x256xbf16>
    %c5_144 = arith.constant 5 : index
    %c0_145 = arith.constant 0 : index
    %170 = vector.load %arg3[%c5_144, %c0_145] : memref<9x256xbf16, #tpu.memory_space<vmem>>, vector<1x256xbf16>
    %171 = vector.broadcast %170 : vector<1x256xbf16> to vector<16x256xbf16>
    %172 = arith.mulf %169, %171 : vector<16x256xbf16>
    %c512 = arith.constant 512 : index
    %c0_146 = arith.constant 0 : index
    %173 = vector.load %arg7[%c512, %c0_146] : memref<1408x256xbf16, #tpu.memory_space<vmem>>, vector<16x256xbf16>
    tpu.vector_store %arg7[%c512, %c0_146], %172 {strides = array<i32>} : memref<1408x256xbf16, #tpu.memory_space<vmem>>, vector<16x256xbf16>,
    %c0_147 = arith.constant 0 : index
    %c54 = arith.constant 54 : index
    %174 = vector.load %arg6[%c0_147, %c54] : memref<16x392xbf16, #tpu.memory_space<vmem>>, vector<16x256xbf16>
    %c6_148 = arith.constant 6 : index
    %c0_149 = arith.constant 0 : index
    %175 = vector.load %arg3[%c6_148, %c0_149] : memref<9x256xbf16, #tpu.memory_space<vmem>>, vector<1x256xbf16>
    %176 = vector.broadcast %175 : vector<1x256xbf16> to vector<16x256xbf16>
    %177 = arith.mulf %174, %176 : vector<16x256xbf16>
    %c528 = arith.constant 528 : index
    %c0_150 = arith.constant 0 : index
    %178 = vector.load %arg7[%c528, %c0_150] : memref<1408x256xbf16, #tpu.memory_space<vmem>>, vector<16x256xbf16>
    tpu.vector_store %arg7[%c528, %c0_150], %177 {strides = array<i32>} : memref<1408x256xbf16, #tpu.memory_space<vmem>>, vector<16x256xbf16>,
    %c0_151 = arith.constant 0 : index
    %c55 = arith.constant 55 : index
    %179 = vector.load %arg6[%c0_151, %c55] : memref<16x392xbf16, #tpu.memory_space<vmem>>, vector<16x256xbf16>
    %c7_152 = arith.constant 7 : index
    %c0_153 = arith.constant 0 : index
    %180 = vector.load %arg3[%c7_152, %c0_153] : memref<9x256xbf16, #tpu.memory_space<vmem>>, vector<1x256xbf16>
    %181 = vector.broadcast %180 : vector<1x256xbf16> to vector<16x256xbf16>
    %182 = arith.mulf %179, %181 : vector<16x256xbf16>
    %c544 = arith.constant 544 : index
    %c0_154 = arith.constant 0 : index
    %183 = vector.load %arg7[%c544, %c0_154] : memref<1408x256xbf16, #tpu.memory_space<vmem>>, vector<16x256xbf16>
    tpu.vector_store %arg7[%c544, %c0_154], %182 {strides = array<i32>} : memref<1408x256xbf16, #tpu.memory_space<vmem>>, vector<16x256xbf16>,
    %c0_155 = arith.constant 0 : index
    %c56 = arith.constant 56 : index
    %184 = vector.load %arg6[%c0_155, %c56] : memref<16x392xbf16, #tpu.memory_space<vmem>>, vector<16x256xbf16>
    %c8_156 = arith.constant 8 : index
    %c0_157 = arith.constant 0 : index
    %185 = vector.load %arg3[%c8_156, %c0_157] : memref<9x256xbf16, #tpu.memory_space<vmem>>, vector<1x256xbf16>
    %186 = vector.broadcast %185 : vector<1x256xbf16> to vector<16x256xbf16>
    %187 = arith.mulf %184, %186 : vector<16x256xbf16>
    %c560 = arith.constant 560 : index
    %c0_158 = arith.constant 0 : index
    %188 = vector.load %arg7[%c560, %c0_158] : memref<1408x256xbf16, #tpu.memory_space<vmem>>, vector<16x256xbf16>
    tpu.vector_store %arg7[%c560, %c0_158], %187 {strides = array<i32>} : memref<1408x256xbf16, #tpu.memory_space<vmem>>, vector<16x256xbf16>,
    %c0_159 = arith.constant 0 : index
    %c64_160 = arith.constant 64 : index
    %189 = vector.load %arg6[%c0_159, %c64_160] : memref<16x392xbf16, #tpu.memory_space<vmem>>, vector<16x256xbf16>
    %c0_161 = arith.constant 0 : index
    %c0_162 = arith.constant 0 : index
    %190 = vector.load %arg3[%c0_161, %c0_162] : memref<9x256xbf16, #tpu.memory_space<vmem>>, vector<1x256xbf16>
    %191 = vector.broadcast %190 : vector<1x256xbf16> to vector<16x256xbf16>
    %192 = arith.mulf %189, %191 : vector<16x256xbf16>
    %c576 = arith.constant 576 : index
    %c0_163 = arith.constant 0 : index
    %193 = vector.load %arg7[%c576, %c0_163] : memref<1408x256xbf16, #tpu.memory_space<vmem>>, vector<16x256xbf16>
    tpu.vector_store %arg7[%c576, %c0_163], %192 {strides = array<i32>} : memref<1408x256xbf16, #tpu.memory_space<vmem>>, vector<16x256xbf16>,
    %c0_164 = arith.constant 0 : index
    %c65 = arith.constant 65 : index
    %194 = vector.load %arg6[%c0_164, %c65] : memref<16x392xbf16, #tpu.memory_space<vmem>>, vector<16x256xbf16>
    %c1_165 = arith.constant 1 : index
    %c0_166 = arith.constant 0 : index
    %195 = vector.load %arg3[%c1_165, %c0_166] : memref<9x256xbf16, #tpu.memory_space<vmem>>, vector<1x256xbf16>
    %196 = vector.broadcast %195 : vector<1x256xbf16> to vector<16x256xbf16>
    %197 = arith.mulf %194, %196 : vector<16x256xbf16>
    %c592 = arith.constant 592 : index
    %c0_167 = arith.constant 0 : index
    %198 = vector.load %arg7[%c592, %c0_167] : memref<1408x256xbf16, #tpu.memory_space<vmem>>, vector<16x256xbf16>
    tpu.vector_store %arg7[%c592, %c0_167], %197 {strides = array<i32>} : memref<1408x256xbf16, #tpu.memory_space<vmem>>, vector<16x256xbf16>,
    %c0_168 = arith.constant 0 : index
    %c66 = arith.constant 66 : index
    %199 = vector.load %arg6[%c0_168, %c66] : memref<16x392xbf16, #tpu.memory_space<vmem>>, vector<16x256xbf16>
    %c2_169 = arith.constant 2 : index
    %c0_170 = arith.constant 0 : index
    %200 = vector.load %arg3[%c2_169, %c0_170] : memref<9x256xbf16, #tpu.memory_space<vmem>>, vector<1x256xbf16>
    %201 = vector.broadcast %200 : vector<1x256xbf16> to vector<16x256xbf16>
    %202 = arith.mulf %199, %201 : vector<16x256xbf16>
    %c608 = arith.constant 608 : index
    %c0_171 = arith.constant 0 : index
    %203 = vector.load %arg7[%c608, %c0_171] : memref<1408x256xbf16, #tpu.memory_space<vmem>>, vector<16x256xbf16>
    tpu.vector_store %arg7[%c608, %c0_171], %202 {strides = array<i32>} : memref<1408x256xbf16, #tpu.memory_space<vmem>>, vector<16x256xbf16>,
    %c0_172 = arith.constant 0 : index
    %c67 = arith.constant 67 : index
    %204 = vector.load %arg6[%c0_172, %c67] : memref<16x392xbf16, #tpu.memory_space<vmem>>, vector<16x256xbf16>
    %c3_173 = arith.constant 3 : index
    %c0_174 = arith.constant 0 : index
    %205 = vector.load %arg3[%c3_173, %c0_174] : memref<9x256xbf16, #tpu.memory_space<vmem>>, vector<1x256xbf16>
    %206 = vector.broadcast %205 : vector<1x256xbf16> to vector<16x256xbf16>
    %207 = arith.mulf %204, %206 : vector<16x256xbf16>
    %c624 = arith.constant 624 : index
    %c0_175 = arith.constant 0 : index
    %208 = vector.load %arg7[%c624, %c0_175] : memref<1408x256xbf16, #tpu.memory_space<vmem>>, vector<16x256xbf16>
    tpu.vector_store %arg7[%c624, %c0_175], %207 {strides = array<i32>} : memref<1408x256xbf16, #tpu.memory_space<vmem>>, vector<16x256xbf16>,
    %c0_176 = arith.constant 0 : index
    %c68_177 = arith.constant 68 : index
    %209 = vector.load %arg6[%c0_176, %c68_177] : memref<16x392xbf16, #tpu.memory_space<vmem>>, vector<16x256xbf16>
    %c4_178 = arith.constant 4 : index
    %c0_179 = arith.constant 0 : index
    %210 = vector.load %arg3[%c4_178, %c0_179] : memref<9x256xbf16, #tpu.memory_space<vmem>>, vector<1x256xbf16>
    %211 = vector.broadcast %210 : vector<1x256xbf16> to vector<16x256xbf16>
    %212 = arith.mulf %209, %211 : vector<16x256xbf16>
    %c640 = arith.constant 640 : index
    %c0_180 = arith.constant 0 : index
    %213 = vector.load %arg7[%c640, %c0_180] : memref<1408x256xbf16, #tpu.memory_space<vmem>>, vector<16x256xbf16>
    tpu.vector_store %arg7[%c640, %c0_180], %212 {strides = array<i32>} : memref<1408x256xbf16, #tpu.memory_space<vmem>>, vector<16x256xbf16>,
    %c0_181 = arith.constant 0 : index
    %c69 = arith.constant 69 : index
    %214 = vector.load %arg6[%c0_181, %c69] : memref<16x392xbf16, #tpu.memory_space<vmem>>, vector<16x256xbf16>
    %c5_182 = arith.constant 5 : index
    %c0_183 = arith.constant 0 : index
    %215 = vector.load %arg3[%c5_182, %c0_183] : memref<9x256xbf16, #tpu.memory_space<vmem>>, vector<1x256xbf16>
    %216 = vector.broadcast %215 : vector<1x256xbf16> to vector<16x256xbf16>
    %217 = arith.mulf %214, %216 : vector<16x256xbf16>
    %c656 = arith.constant 656 : index
    %c0_184 = arith.constant 0 : index
    %218 = vector.load %arg7[%c656, %c0_184] : memref<1408x256xbf16, #tpu.memory_space<vmem>>, vector<16x256xbf16>
    tpu.vector_store %arg7[%c656, %c0_184], %217 {strides = array<i32>} : memref<1408x256xbf16, #tpu.memory_space<vmem>>, vector<16x256xbf16>,
    %c0_185 = arith.constant 0 : index
    %c70 = arith.constant 70 : index
    %219 = vector.load %arg6[%c0_185, %c70] : memref<16x392xbf16, #tpu.memory_space<vmem>>, vector<16x256xbf16>
    %c6_186 = arith.constant 6 : index
    %c0_187 = arith.constant 0 : index
    %220 = vector.load %arg3[%c6_186, %c0_187] : memref<9x256xbf16, #tpu.memory_space<vmem>>, vector<1x256xbf16>
    %221 = vector.broadcast %220 : vector<1x256xbf16> to vector<16x256xbf16>
    %222 = arith.mulf %219, %221 : vector<16x256xbf16>
    %c672 = arith.constant 672 : index
    %c0_188 = arith.constant 0 : index
    %223 = vector.load %arg7[%c672, %c0_188] : memref<1408x256xbf16, #tpu.memory_space<vmem>>, vector<16x256xbf16>
    tpu.vector_store %arg7[%c672, %c0_188], %222 {strides = array<i32>} : memref<1408x256xbf16, #tpu.memory_space<vmem>>, vector<16x256xbf16>,
    %c0_189 = arith.constant 0 : index
    %c71 = arith.constant 71 : index
    %224 = vector.load %arg6[%c0_189, %c71] : memref<16x392xbf16, #tpu.memory_space<vmem>>, vector<16x256xbf16>
    %c7_190 = arith.constant 7 : index
    %c0_191 = arith.constant 0 : index
    %225 = vector.load %arg3[%c7_190, %c0_191] : memref<9x256xbf16, #tpu.memory_space<vmem>>, vector<1x256xbf16>
    %226 = vector.broadcast %225 : vector<1x256xbf16> to vector<16x256xbf16>
    %227 = arith.mulf %224, %226 : vector<16x256xbf16>
    %c688 = arith.constant 688 : index
    %c0_192 = arith.constant 0 : index
    %228 = vector.load %arg7[%c688, %c0_192] : memref<1408x256xbf16, #tpu.memory_space<vmem>>, vector<16x256xbf16>
    tpu.vector_store %arg7[%c688, %c0_192], %227 {strides = array<i32>} : memref<1408x256xbf16, #tpu.memory_space<vmem>>, vector<16x256xbf16>,
    %c0_193 = arith.constant 0 : index
    %c72 = arith.constant 72 : index
    %229 = vector.load %arg6[%c0_193, %c72] : memref<16x392xbf16, #tpu.memory_space<vmem>>, vector<16x256xbf16>
    %c8_194 = arith.constant 8 : index
    %c0_195 = arith.constant 0 : index
    %230 = vector.load %arg3[%c8_194, %c0_195] : memref<9x256xbf16, #tpu.memory_space<vmem>>, vector<1x256xbf16>
    %231 = vector.broadcast %230 : vector<1x256xbf16> to vector<16x256xbf16>
    %232 = arith.mulf %229, %231 : vector<16x256xbf16>
    %c704 = arith.constant 704 : index
    %c0_196 = arith.constant 0 : index
    %233 = vector.load %arg7[%c704, %c0_196] : memref<1408x256xbf16, #tpu.memory_space<vmem>>, vector<16x256xbf16>
    tpu.vector_store %arg7[%c704, %c0_196], %232 {strides = array<i32>} : memref<1408x256xbf16, #tpu.memory_space<vmem>>, vector<16x256xbf16>,
    %c0_197 = arith.constant 0 : index
    %c80_198 = arith.constant 80 : index
    %234 = vector.load %arg6[%c0_197, %c80_198] : memref<16x392xbf16, #tpu.memory_space<vmem>>, vector<16x256xbf16>
    %c0_199 = arith.constant 0 : index
    %c0_200 = arith.constant 0 : index
    %235 = vector.load %arg3[%c0_199, %c0_200] : memref<9x256xbf16, #tpu.memory_space<vmem>>, vector<1x256xbf16>
    %236 = vector.broadcast %235 : vector<1x256xbf16> to vector<16x256xbf16>
    %237 = arith.mulf %234, %236 : vector<16x256xbf16>
    %c720 = arith.constant 720 : index
    %c0_201 = arith.constant 0 : index
    %238 = vector.load %arg7[%c720, %c0_201] : memref<1408x256xbf16, #tpu.memory_space<vmem>>, vector<16x256xbf16>
    tpu.vector_store %arg7[%c720, %c0_201], %237 {strides = array<i32>} : memref<1408x256xbf16, #tpu.memory_space<vmem>>, vector<16x256xbf16>,
    %c0_202 = arith.constant 0 : index
    %c81 = arith.constant 81 : index
    %239 = vector.load %arg6[%c0_202, %c81] : memref<16x392xbf16, #tpu.memory_space<vmem>>, vector<16x256xbf16>
    %c1_203 = arith.constant 1 : index
    %c0_204 = arith.constant 0 : index
    %240 = vector.load %arg3[%c1_203, %c0_204] : memref<9x256xbf16, #tpu.memory_space<vmem>>, vector<1x256xbf16>
    %241 = vector.broadcast %240 : vector<1x256xbf16> to vector<16x256xbf16>
    %242 = arith.mulf %239, %241 : vector<16x256xbf16>
    %c736 = arith.constant 736 : index
    %c0_205 = arith.constant 0 : index
    %243 = vector.load %arg7[%c736, %c0_205] : memref<1408x256xbf16, #tpu.memory_space<vmem>>, vector<16x256xbf16>
    tpu.vector_store %arg7[%c736, %c0_205], %242 {strides = array<i32>} : memref<1408x256xbf16, #tpu.memory_space<vmem>>, vector<16x256xbf16>,
    %c0_206 = arith.constant 0 : index
    %c82 = arith.constant 82 : index
    %244 = vector.load %arg6[%c0_206, %c82] : memref<16x392xbf16, #tpu.memory_space<vmem>>, vector<16x256xbf16>
    %c2_207 = arith.constant 2 : index
    %c0_208 = arith.constant 0 : index
    %245 = vector.load %arg3[%c2_207, %c0_208] : memref<9x256xbf16, #tpu.memory_space<vmem>>, vector<1x256xbf16>
    %246 = vector.broadcast %245 : vector<1x256xbf16> to vector<16x256xbf16>
    %247 = arith.mulf %244, %246 : vector<16x256xbf16>
    %c752 = arith.constant 752 : index
    %c0_209 = arith.constant 0 : index
    %248 = vector.load %arg7[%c752, %c0_209] : memref<1408x256xbf16, #tpu.memory_space<vmem>>, vector<16x256xbf16>
    tpu.vector_store %arg7[%c752, %c0_209], %247 {strides = array<i32>} : memref<1408x256xbf16, #tpu.memory_space<vmem>>, vector<16x256xbf16>,
    %c0_210 = arith.constant 0 : index
    %c83 = arith.constant 83 : index
    %249 = vector.load %arg6[%c0_210, %c83] : memref<16x392xbf16, #tpu.memory_space<vmem>>, vector<16x256xbf16>
    %c3_211 = arith.constant 3 : index
    %c0_212 = arith.constant 0 : index
    %250 = vector.load %arg3[%c3_211, %c0_212] : memref<9x256xbf16, #tpu.memory_space<vmem>>, vector<1x256xbf16>
    %251 = vector.broadcast %250 : vector<1x256xbf16> to vector<16x256xbf16>
    %252 = arith.mulf %249, %251 : vector<16x256xbf16>
    %c768 = arith.constant 768 : index
    %c0_213 = arith.constant 0 : index
    %253 = vector.load %arg7[%c768, %c0_213] : memref<1408x256xbf16, #tpu.memory_space<vmem>>, vector<16x256xbf16>
    tpu.vector_store %arg7[%c768, %c0_213], %252 {strides = array<i32>} : memref<1408x256xbf16, #tpu.memory_space<vmem>>, vector<16x256xbf16>,
    %c0_214 = arith.constant 0 : index
    %c84 = arith.constant 84 : index
    %254 = vector.load %arg6[%c0_214, %c84] : memref<16x392xbf16, #tpu.memory_space<vmem>>, vector<16x256xbf16>
    %c4_215 = arith.constant 4 : index
    %c0_216 = arith.constant 0 : index
    %255 = vector.load %arg3[%c4_215, %c0_216] : memref<9x256xbf16, #tpu.memory_space<vmem>>, vector<1x256xbf16>
    %256 = vector.broadcast %255 : vector<1x256xbf16> to vector<16x256xbf16>
    %257 = arith.mulf %254, %256 : vector<16x256xbf16>
    %c784 = arith.constant 784 : index
    %c0_217 = arith.constant 0 : index
    %258 = vector.load %arg7[%c784, %c0_217] : memref<1408x256xbf16, #tpu.memory_space<vmem>>, vector<16x256xbf16>
    tpu.vector_store %arg7[%c784, %c0_217], %257 {strides = array<i32>} : memref<1408x256xbf16, #tpu.memory_space<vmem>>, vector<16x256xbf16>,
    %c0_218 = arith.constant 0 : index
    %c85 = arith.constant 85 : index
    %259 = vector.load %arg6[%c0_218, %c85] : memref<16x392xbf16, #tpu.memory_space<vmem>>, vector<16x256xbf16>
    %c5_219 = arith.constant 5 : index
    %c0_220 = arith.constant 0 : index
    %260 = vector.load %arg3[%c5_219, %c0_220] : memref<9x256xbf16, #tpu.memory_space<vmem>>, vector<1x256xbf16>
    %261 = vector.broadcast %260 : vector<1x256xbf16> to vector<16x256xbf16>
    %262 = arith.mulf %259, %261 : vector<16x256xbf16>
    %c800 = arith.constant 800 : index
    %c0_221 = arith.constant 0 : index
    %263 = vector.load %arg7[%c800, %c0_221] : memref<1408x256xbf16, #tpu.memory_space<vmem>>, vector<16x256xbf16>
    tpu.vector_store %arg7[%c800, %c0_221], %262 {strides = array<i32>} : memref<1408x256xbf16, #tpu.memory_space<vmem>>, vector<16x256xbf16>,
    %c0_222 = arith.constant 0 : index
    %c86 = arith.constant 86 : index
    %264 = vector.load %arg6[%c0_222, %c86] : memref<16x392xbf16, #tpu.memory_space<vmem>>, vector<16x256xbf16>
    %c6_223 = arith.constant 6 : index
    %c0_224 = arith.constant 0 : index
    %265 = vector.load %arg3[%c6_223, %c0_224] : memref<9x256xbf16, #tpu.memory_space<vmem>>, vector<1x256xbf16>
    %266 = vector.broadcast %265 : vector<1x256xbf16> to vector<16x256xbf16>
    %267 = arith.mulf %264, %266 : vector<16x256xbf16>
    %c816 = arith.constant 816 : index
    %c0_225 = arith.constant 0 : index
    %268 = vector.load %arg7[%c816, %c0_225] : memref<1408x256xbf16, #tpu.memory_space<vmem>>, vector<16x256xbf16>
    tpu.vector_store %arg7[%c816, %c0_225], %267 {strides = array<i32>} : memref<1408x256xbf16, #tpu.memory_space<vmem>>, vector<16x256xbf16>,
    %c0_226 = arith.constant 0 : index
    %c87 = arith.constant 87 : index
    %269 = vector.load %arg6[%c0_226, %c87] : memref<16x392xbf16, #tpu.memory_space<vmem>>, vector<16x256xbf16>
    %c7_227 = arith.constant 7 : index
    %c0_228 = arith.constant 0 : index
    %270 = vector.load %arg3[%c7_227, %c0_228] : memref<9x256xbf16, #tpu.memory_space<vmem>>, vector<1x256xbf16>
    %271 = vector.broadcast %270 : vector<1x256xbf16> to vector<16x256xbf16>
    %272 = arith.mulf %269, %271 : vector<16x256xbf16>
    %c832 = arith.constant 832 : index
    %c0_229 = arith.constant 0 : index
    %273 = vector.load %arg7[%c832, %c0_229] : memref<1408x256xbf16, #tpu.memory_space<vmem>>, vector<16x256xbf16>
    tpu.vector_store %arg7[%c832, %c0_229], %272 {strides = array<i32>} : memref<1408x256xbf16, #tpu.memory_space<vmem>>, vector<16x256xbf16>,
    %c0_230 = arith.constant 0 : index
    %c88 = arith.constant 88 : index
    %274 = vector.load %arg6[%c0_230, %c88] : memref<16x392xbf16, #tpu.memory_space<vmem>>, vector<16x256xbf16>
    %c8_231 = arith.constant 8 : index
    %c0_232 = arith.constant 0 : index
    %275 = vector.load %arg3[%c8_231, %c0_232] : memref<9x256xbf16, #tpu.memory_space<vmem>>, vector<1x256xbf16>
    %276 = vector.broadcast %275 : vector<1x256xbf16> to vector<16x256xbf16>
    %277 = arith.mulf %274, %276 : vector<16x256xbf16>
    %c848 = arith.constant 848 : index
    %c0_233 = arith.constant 0 : index
    %278 = vector.load %arg7[%c848, %c0_233] : memref<1408x256xbf16, #tpu.memory_space<vmem>>, vector<16x256xbf16>
    tpu.vector_store %arg7[%c848, %c0_233], %277 {strides = array<i32>} : memref<1408x256xbf16, #tpu.memory_space<vmem>>, vector<16x256xbf16>,
    %c0_234 = arith.constant 0 : index
    %c96_235 = arith.constant 96 : index
    %279 = vector.load %arg6[%c0_234, %c96_235] : memref<16x392xbf16, #tpu.memory_space<vmem>>, vector<16x256xbf16>
    %c0_236 = arith.constant 0 : index
    %c0_237 = arith.constant 0 : index
    %280 = vector.load %arg3[%c0_236, %c0_237] : memref<9x256xbf16, #tpu.memory_space<vmem>>, vector<1x256xbf16>
    %281 = vector.broadcast %280 : vector<1x256xbf16> to vector<16x256xbf16>
    %282 = arith.mulf %279, %281 : vector<16x256xbf16>
    %c864 = arith.constant 864 : index
    %c0_238 = arith.constant 0 : index
    %283 = vector.load %arg7[%c864, %c0_238] : memref<1408x256xbf16, #tpu.memory_space<vmem>>, vector<16x256xbf16>
    tpu.vector_store %arg7[%c864, %c0_238], %282 {strides = array<i32>} : memref<1408x256xbf16, #tpu.memory_space<vmem>>, vector<16x256xbf16>,
    %c0_239 = arith.constant 0 : index
    %c97 = arith.constant 97 : index
    %284 = vector.load %arg6[%c0_239, %c97] : memref<16x392xbf16, #tpu.memory_space<vmem>>, vector<16x256xbf16>
    %c1_240 = arith.constant 1 : index
    %c0_241 = arith.constant 0 : index
    %285 = vector.load %arg3[%c1_240, %c0_241] : memref<9x256xbf16, #tpu.memory_space<vmem>>, vector<1x256xbf16>
    %286 = vector.broadcast %285 : vector<1x256xbf16> to vector<16x256xbf16>
    %287 = arith.mulf %284, %286 : vector<16x256xbf16>
    %c880 = arith.constant 880 : index
    %c0_242 = arith.constant 0 : index
    %288 = vector.load %arg7[%c880, %c0_242] : memref<1408x256xbf16, #tpu.memory_space<vmem>>, vector<16x256xbf16>
    tpu.vector_store %arg7[%c880, %c0_242], %287 {strides = array<i32>} : memref<1408x256xbf16, #tpu.memory_space<vmem>>, vector<16x256xbf16>,
    %c0_243 = arith.constant 0 : index
    %c98 = arith.constant 98 : index
    %289 = vector.load %arg6[%c0_243, %c98] : memref<16x392xbf16, #tpu.memory_space<vmem>>, vector<16x256xbf16>
    %c2_244 = arith.constant 2 : index
    %c0_245 = arith.constant 0 : index
    %290 = vector.load %arg3[%c2_244, %c0_245] : memref<9x256xbf16, #tpu.memory_space<vmem>>, vector<1x256xbf16>
    %291 = vector.broadcast %290 : vector<1x256xbf16> to vector<16x256xbf16>
    %292 = arith.mulf %289, %291 : vector<16x256xbf16>
    %c896 = arith.constant 896 : index
    %c0_246 = arith.constant 0 : index
    %293 = vector.load %arg7[%c896, %c0_246] : memref<1408x256xbf16, #tpu.memory_space<vmem>>, vector<16x256xbf16>
    tpu.vector_store %arg7[%c896, %c0_246], %292 {strides = array<i32>} : memref<1408x256xbf16, #tpu.memory_space<vmem>>, vector<16x256xbf16>,
    %c0_247 = arith.constant 0 : index
    %c99 = arith.constant 99 : index
    %294 = vector.load %arg6[%c0_247, %c99] : memref<16x392xbf16, #tpu.memory_space<vmem>>, vector<16x256xbf16>
    %c3_248 = arith.constant 3 : index
    %c0_249 = arith.constant 0 : index
    %295 = vector.load %arg3[%c3_248, %c0_249] : memref<9x256xbf16, #tpu.memory_space<vmem>>, vector<1x256xbf16>
    %296 = vector.broadcast %295 : vector<1x256xbf16> to vector<16x256xbf16>
    %297 = arith.mulf %294, %296 : vector<16x256xbf16>
    %c912 = arith.constant 912 : index
    %c0_250 = arith.constant 0 : index
    %298 = vector.load %arg7[%c912, %c0_250] : memref<1408x256xbf16, #tpu.memory_space<vmem>>, vector<16x256xbf16>
    tpu.vector_store %arg7[%c912, %c0_250], %297 {strides = array<i32>} : memref<1408x256xbf16, #tpu.memory_space<vmem>>, vector<16x256xbf16>,
    %c0_251 = arith.constant 0 : index
    %c100 = arith.constant 100 : index
    %299 = vector.load %arg6[%c0_251, %c100] : memref<16x392xbf16, #tpu.memory_space<vmem>>, vector<16x256xbf16>
    %c4_252 = arith.constant 4 : index
    %c0_253 = arith.constant 0 : index
    %300 = vector.load %arg3[%c4_252, %c0_253] : memref<9x256xbf16, #tpu.memory_space<vmem>>, vector<1x256xbf16>
    %301 = vector.broadcast %300 : vector<1x256xbf16> to vector<16x256xbf16>
    %302 = arith.mulf %299, %301 : vector<16x256xbf16>
    %c928 = arith.constant 928 : index
    %c0_254 = arith.constant 0 : index
    %303 = vector.load %arg7[%c928, %c0_254] : memref<1408x256xbf16, #tpu.memory_space<vmem>>, vector<16x256xbf16>
    tpu.vector_store %arg7[%c928, %c0_254], %302 {strides = array<i32>} : memref<1408x256xbf16, #tpu.memory_space<vmem>>, vector<16x256xbf16>,
    %c0_255 = arith.constant 0 : index
    %c101 = arith.constant 101 : index
    %304 = vector.load %arg6[%c0_255, %c101] : memref<16x392xbf16, #tpu.memory_space<vmem>>, vector<16x256xbf16>
    %c5_256 = arith.constant 5 : index
    %c0_257 = arith.constant 0 : index
    %305 = vector.load %arg3[%c5_256, %c0_257] : memref<9x256xbf16, #tpu.memory_space<vmem>>, vector<1x256xbf16>
    %306 = vector.broadcast %305 : vector<1x256xbf16> to vector<16x256xbf16>
    %307 = arith.mulf %304, %306 : vector<16x256xbf16>
    %c944 = arith.constant 944 : index
    %c0_258 = arith.constant 0 : index
    %308 = vector.load %arg7[%c944, %c0_258] : memref<1408x256xbf16, #tpu.memory_space<vmem>>, vector<16x256xbf16>
    tpu.vector_store %arg7[%c944, %c0_258], %307 {strides = array<i32>} : memref<1408x256xbf16, #tpu.memory_space<vmem>>, vector<16x256xbf16>,
    %c0_259 = arith.constant 0 : index
    %c102 = arith.constant 102 : index
    %309 = vector.load %arg6[%c0_259, %c102] : memref<16x392xbf16, #tpu.memory_space<vmem>>, vector<16x256xbf16>
    %c6_260 = arith.constant 6 : index
    %c0_261 = arith.constant 0 : index
    %310 = vector.load %arg3[%c6_260, %c0_261] : memref<9x256xbf16, #tpu.memory_space<vmem>>, vector<1x256xbf16>
    %311 = vector.broadcast %310 : vector<1x256xbf16> to vector<16x256xbf16>
    %312 = arith.mulf %309, %311 : vector<16x256xbf16>
    %c960 = arith.constant 960 : index
    %c0_262 = arith.constant 0 : index
    %313 = vector.load %arg7[%c960, %c0_262] : memref<1408x256xbf16, #tpu.memory_space<vmem>>, vector<16x256xbf16>
    tpu.vector_store %arg7[%c960, %c0_262], %312 {strides = array<i32>} : memref<1408x256xbf16, #tpu.memory_space<vmem>>, vector<16x256xbf16>,
    %c0_263 = arith.constant 0 : index
    %c103 = arith.constant 103 : index
    %314 = vector.load %arg6[%c0_263, %c103] : memref<16x392xbf16, #tpu.memory_space<vmem>>, vector<16x256xbf16>
    %c7_264 = arith.constant 7 : index
    %c0_265 = arith.constant 0 : index
    %315 = vector.load %arg3[%c7_264, %c0_265] : memref<9x256xbf16, #tpu.memory_space<vmem>>, vector<1x256xbf16>
    %316 = vector.broadcast %315 : vector<1x256xbf16> to vector<16x256xbf16>
    %317 = arith.mulf %314, %316 : vector<16x256xbf16>
    %c976 = arith.constant 976 : index
    %c0_266 = arith.constant 0 : index
    %318 = vector.load %arg7[%c976, %c0_266] : memref<1408x256xbf16, #tpu.memory_space<vmem>>, vector<16x256xbf16>
    tpu.vector_store %arg7[%c976, %c0_266], %317 {strides = array<i32>} : memref<1408x256xbf16, #tpu.memory_space<vmem>>, vector<16x256xbf16>,
    %c0_267 = arith.constant 0 : index
    %c104 = arith.constant 104 : index
    %319 = vector.load %arg6[%c0_267, %c104] : memref<16x392xbf16, #tpu.memory_space<vmem>>, vector<16x256xbf16>
    %c8_268 = arith.constant 8 : index
    %c0_269 = arith.constant 0 : index
    %320 = vector.load %arg3[%c8_268, %c0_269] : memref<9x256xbf16, #tpu.memory_space<vmem>>, vector<1x256xbf16>
    %321 = vector.broadcast %320 : vector<1x256xbf16> to vector<16x256xbf16>
    %322 = arith.mulf %319, %321 : vector<16x256xbf16>
    %c992 = arith.constant 992 : index
    %c0_270 = arith.constant 0 : index
    %323 = vector.load %arg7[%c992, %c0_270] : memref<1408x256xbf16, #tpu.memory_space<vmem>>, vector<16x256xbf16>
    tpu.vector_store %arg7[%c992, %c0_270], %322 {strides = array<i32>} : memref<1408x256xbf16, #tpu.memory_space<vmem>>, vector<16x256xbf16>,
    %c0_271 = arith.constant 0 : index
    %c112_272 = arith.constant 112 : index
    %324 = vector.load %arg6[%c0_271, %c112_272] : memref<16x392xbf16, #tpu.memory_space<vmem>>, vector<16x256xbf16>
    %c0_273 = arith.constant 0 : index
    %c0_274 = arith.constant 0 : index
    %325 = vector.load %arg3[%c0_273, %c0_274] : memref<9x256xbf16, #tpu.memory_space<vmem>>, vector<1x256xbf16>
    %326 = vector.broadcast %325 : vector<1x256xbf16> to vector<16x256xbf16>
    %327 = arith.mulf %324, %326 : vector<16x256xbf16>
    %c1008 = arith.constant 1008 : index
    %c0_275 = arith.constant 0 : index
    %328 = vector.load %arg7[%c1008, %c0_275] : memref<1408x256xbf16, #tpu.memory_space<vmem>>, vector<16x256xbf16>
    tpu.vector_store %arg7[%c1008, %c0_275], %327 {strides = array<i32>} : memref<1408x256xbf16, #tpu.memory_space<vmem>>, vector<16x256xbf16>,
    %c0_276 = arith.constant 0 : index
    %c113 = arith.constant 113 : index
    %329 = vector.load %arg6[%c0_276, %c113] : memref<16x392xbf16, #tpu.memory_space<vmem>>, vector<16x256xbf16>
    %c1_277 = arith.constant 1 : index
    %c0_278 = arith.constant 0 : index
    %330 = vector.load %arg3[%c1_277, %c0_278] : memref<9x256xbf16, #tpu.memory_space<vmem>>, vector<1x256xbf16>
    %331 = vector.broadcast %330 : vector<1x256xbf16> to vector<16x256xbf16>
    %332 = arith.mulf %329, %331 : vector<16x256xbf16>
    %c1024 = arith.constant 1024 : index
    %c0_279 = arith.constant 0 : index
    %333 = vector.load %arg7[%c1024, %c0_279] : memref<1408x256xbf16, #tpu.memory_space<vmem>>, vector<16x256xbf16>
    tpu.vector_store %arg7[%c1024, %c0_279], %332 {strides = array<i32>} : memref<1408x256xbf16, #tpu.memory_space<vmem>>, vector<16x256xbf16>,
    %c0_280 = arith.constant 0 : index
    %c114 = arith.constant 114 : index
    %334 = vector.load %arg6[%c0_280, %c114] : memref<16x392xbf16, #tpu.memory_space<vmem>>, vector<16x256xbf16>
    %c2_281 = arith.constant 2 : index
    %c0_282 = arith.constant 0 : index
    %335 = vector.load %arg3[%c2_281, %c0_282] : memref<9x256xbf16, #tpu.memory_space<vmem>>, vector<1x256xbf16>
    %336 = vector.broadcast %335 : vector<1x256xbf16> to vector<16x256xbf16>
    %337 = arith.mulf %334, %336 : vector<16x256xbf16>
    %c1040 = arith.constant 1040 : index
    %c0_283 = arith.constant 0 : index
    %338 = vector.load %arg7[%c1040, %c0_283] : memref<1408x256xbf16, #tpu.memory_space<vmem>>, vector<16x256xbf16>
    tpu.vector_store %arg7[%c1040, %c0_283], %337 {strides = array<i32>} : memref<1408x256xbf16, #tpu.memory_space<vmem>>, vector<16x256xbf16>,
    %c0_284 = arith.constant 0 : index
    %c115 = arith.constant 115 : index
    %339 = vector.load %arg6[%c0_284, %c115] : memref<16x392xbf16, #tpu.memory_space<vmem>>, vector<16x256xbf16>
    %c3_285 = arith.constant 3 : index
    %c0_286 = arith.constant 0 : index
    %340 = vector.load %arg3[%c3_285, %c0_286] : memref<9x256xbf16, #tpu.memory_space<vmem>>, vector<1x256xbf16>
    %341 = vector.broadcast %340 : vector<1x256xbf16> to vector<16x256xbf16>
    %342 = arith.mulf %339, %341 : vector<16x256xbf16>
    %c1056 = arith.constant 1056 : index
    %c0_287 = arith.constant 0 : index
    %343 = vector.load %arg7[%c1056, %c0_287] : memref<1408x256xbf16, #tpu.memory_space<vmem>>, vector<16x256xbf16>
    tpu.vector_store %arg7[%c1056, %c0_287], %342 {strides = array<i32>} : memref<1408x256xbf16, #tpu.memory_space<vmem>>, vector<16x256xbf16>,
    %c0_288 = arith.constant 0 : index
    %c116 = arith.constant 116 : index
    %344 = vector.load %arg6[%c0_288, %c116] : memref<16x392xbf16, #tpu.memory_space<vmem>>, vector<16x256xbf16>
    %c4_289 = arith.constant 4 : index
    %c0_290 = arith.constant 0 : index
    %345 = vector.load %arg3[%c4_289, %c0_290] : memref<9x256xbf16, #tpu.memory_space<vmem>>, vector<1x256xbf16>
    %346 = vector.broadcast %345 : vector<1x256xbf16> to vector<16x256xbf16>
    %347 = arith.mulf %344, %346 : vector<16x256xbf16>
    %c1072 = arith.constant 1072 : index
    %c0_291 = arith.constant 0 : index
    %348 = vector.load %arg7[%c1072, %c0_291] : memref<1408x256xbf16, #tpu.memory_space<vmem>>, vector<16x256xbf16>
    tpu.vector_store %arg7[%c1072, %c0_291], %347 {strides = array<i32>} : memref<1408x256xbf16, #tpu.memory_space<vmem>>, vector<16x256xbf16>,
    %c0_292 = arith.constant 0 : index
    %c117 = arith.constant 117 : index
    %349 = vector.load %arg6[%c0_292, %c117] : memref<16x392xbf16, #tpu.memory_space<vmem>>, vector<16x256xbf16>
    %c5_293 = arith.constant 5 : index
    %c0_294 = arith.constant 0 : index
    %350 = vector.load %arg3[%c5_293, %c0_294] : memref<9x256xbf16, #tpu.memory_space<vmem>>, vector<1x256xbf16>
    %351 = vector.broadcast %350 : vector<1x256xbf16> to vector<16x256xbf16>
    %352 = arith.mulf %349, %351 : vector<16x256xbf16>
    %c1088 = arith.constant 1088 : index
    %c0_295 = arith.constant 0 : index
    %353 = vector.load %arg7[%c1088, %c0_295] : memref<1408x256xbf16, #tpu.memory_space<vmem>>, vector<16x256xbf16>
    tpu.vector_store %arg7[%c1088, %c0_295], %352 {strides = array<i32>} : memref<1408x256xbf16, #tpu.memory_space<vmem>>, vector<16x256xbf16>,
    %c0_296 = arith.constant 0 : index
    %c118 = arith.constant 118 : index
    %354 = vector.load %arg6[%c0_296, %c118] : memref<16x392xbf16, #tpu.memory_space<vmem>>, vector<16x256xbf16>
    %c6_297 = arith.constant 6 : index
    %c0_298 = arith.constant 0 : index
    %355 = vector.load %arg3[%c6_297, %c0_298] : memref<9x256xbf16, #tpu.memory_space<vmem>>, vector<1x256xbf16>
    %356 = vector.broadcast %355 : vector<1x256xbf16> to vector<16x256xbf16>
    %357 = arith.mulf %354, %356 : vector<16x256xbf16>
    %c1104 = arith.constant 1104 : index
    %c0_299 = arith.constant 0 : index
    %358 = vector.load %arg7[%c1104, %c0_299] : memref<1408x256xbf16, #tpu.memory_space<vmem>>, vector<16x256xbf16>
    tpu.vector_store %arg7[%c1104, %c0_299], %357 {strides = array<i32>} : memref<1408x256xbf16, #tpu.memory_space<vmem>>, vector<16x256xbf16>,
    %c0_300 = arith.constant 0 : index
    %c119 = arith.constant 119 : index
    %359 = vector.load %arg6[%c0_300, %c119] : memref<16x392xbf16, #tpu.memory_space<vmem>>, vector<16x256xbf16>
    %c7_301 = arith.constant 7 : index
    %c0_302 = arith.constant 0 : index
    %360 = vector.load %arg3[%c7_301, %c0_302] : memref<9x256xbf16, #tpu.memory_space<vmem>>, vector<1x256xbf16>
    %361 = vector.broadcast %360 : vector<1x256xbf16> to vector<16x256xbf16>
    %362 = arith.mulf %359, %361 : vector<16x256xbf16>
    %c1120 = arith.constant 1120 : index
    %c0_303 = arith.constant 0 : index
    %363 = vector.load %arg7[%c1120, %c0_303] : memref<1408x256xbf16, #tpu.memory_space<vmem>>, vector<16x256xbf16>
    tpu.vector_store %arg7[%c1120, %c0_303], %362 {strides = array<i32>} : memref<1408x256xbf16, #tpu.memory_space<vmem>>, vector<16x256xbf16>,
    %c0_304 = arith.constant 0 : index
    %c120 = arith.constant 120 : index
    %364 = vector.load %arg6[%c0_304, %c120] : memref<16x392xbf16, #tpu.memory_space<vmem>>, vector<16x256xbf16>
    %c8_305 = arith.constant 8 : index
    %c0_306 = arith.constant 0 : index
    %365 = vector.load %arg3[%c8_305, %c0_306] : memref<9x256xbf16, #tpu.memory_space<vmem>>, vector<1x256xbf16>
    %366 = vector.broadcast %365 : vector<1x256xbf16> to vector<16x256xbf16>
    %367 = arith.mulf %364, %366 : vector<16x256xbf16>
    %c1136 = arith.constant 1136 : index
    %c0_307 = arith.constant 0 : index
    %368 = vector.load %arg7[%c1136, %c0_307] : memref<1408x256xbf16, #tpu.memory_space<vmem>>, vector<16x256xbf16>
    tpu.vector_store %arg7[%c1136, %c0_307], %367 {strides = array<i32>} : memref<1408x256xbf16, #tpu.memory_space<vmem>>, vector<16x256xbf16>,
    %c0_308 = arith.constant 0 : index
    %c128_309 = arith.constant 128 : index
    %369 = vector.load %arg6[%c0_308, %c128_309] : memref<16x392xbf16, #tpu.memory_space<vmem>>, vector<16x256xbf16>
    %c0_310 = arith.constant 0 : index
    %c0_311 = arith.constant 0 : index
    %370 = vector.load %arg3[%c0_310, %c0_311] : memref<9x256xbf16, #tpu.memory_space<vmem>>, vector<1x256xbf16>
    %371 = vector.broadcast %370 : vector<1x256xbf16> to vector<16x256xbf16>
    %372 = arith.mulf %369, %371 : vector<16x256xbf16>
    %c1152 = arith.constant 1152 : index
    %c0_312 = arith.constant 0 : index
    %373 = vector.load %arg7[%c1152, %c0_312] : memref<1408x256xbf16, #tpu.memory_space<vmem>>, vector<16x256xbf16>
    tpu.vector_store %arg7[%c1152, %c0_312], %372 {strides = array<i32>} : memref<1408x256xbf16, #tpu.memory_space<vmem>>, vector<16x256xbf16>,
    %c0_313 = arith.constant 0 : index
    %c129 = arith.constant 129 : index
    %374 = vector.load %arg6[%c0_313, %c129] : memref<16x392xbf16, #tpu.memory_space<vmem>>, vector<16x256xbf16>
    %c1_314 = arith.constant 1 : index
    %c0_315 = arith.constant 0 : index
    %375 = vector.load %arg3[%c1_314, %c0_315] : memref<9x256xbf16, #tpu.memory_space<vmem>>, vector<1x256xbf16>
    %376 = vector.broadcast %375 : vector<1x256xbf16> to vector<16x256xbf16>
    %377 = arith.mulf %374, %376 : vector<16x256xbf16>
    %c1168 = arith.constant 1168 : index
    %c0_316 = arith.constant 0 : index
    %378 = vector.load %arg7[%c1168, %c0_316] : memref<1408x256xbf16, #tpu.memory_space<vmem>>, vector<16x256xbf16>
    tpu.vector_store %arg7[%c1168, %c0_316], %377 {strides = array<i32>} : memref<1408x256xbf16, #tpu.memory_space<vmem>>, vector<16x256xbf16>,
    %c0_317 = arith.constant 0 : index
    %c130 = arith.constant 130 : index
    %379 = vector.load %arg6[%c0_317, %c130] : memref<16x392xbf16, #tpu.memory_space<vmem>>, vector<16x256xbf16>
    %c2_318 = arith.constant 2 : index
    %c0_319 = arith.constant 0 : index
    %380 = vector.load %arg3[%c2_318, %c0_319] : memref<9x256xbf16, #tpu.memory_space<vmem>>, vector<1x256xbf16>
    %381 = vector.broadcast %380 : vector<1x256xbf16> to vector<16x256xbf16>
    %382 = arith.mulf %379, %381 : vector<16x256xbf16>
    %c1184 = arith.constant 1184 : index
    %c0_320 = arith.constant 0 : index
    %383 = vector.load %arg7[%c1184, %c0_320] : memref<1408x256xbf16, #tpu.memory_space<vmem>>, vector<16x256xbf16>
    tpu.vector_store %arg7[%c1184, %c0_320], %382 {strides = array<i32>} : memref<1408x256xbf16, #tpu.memory_space<vmem>>, vector<16x256xbf16>,
    %c0_321 = arith.constant 0 : index
    %c131 = arith.constant 131 : index
    %384 = vector.load %arg6[%c0_321, %c131] : memref<16x392xbf16, #tpu.memory_space<vmem>>, vector<16x256xbf16>
    %c3_322 = arith.constant 3 : index
    %c0_323 = arith.constant 0 : index
    %385 = vector.load %arg3[%c3_322, %c0_323] : memref<9x256xbf16, #tpu.memory_space<vmem>>, vector<1x256xbf16>
    %386 = vector.broadcast %385 : vector<1x256xbf16> to vector<16x256xbf16>
    %387 = arith.mulf %384, %386 : vector<16x256xbf16>
    %c1200 = arith.constant 1200 : index
    %c0_324 = arith.constant 0 : index
    %388 = vector.load %arg7[%c1200, %c0_324] : memref<1408x256xbf16, #tpu.memory_space<vmem>>, vector<16x256xbf16>
    tpu.vector_store %arg7[%c1200, %c0_324], %387 {strides = array<i32>} : memref<1408x256xbf16, #tpu.memory_space<vmem>>, vector<16x256xbf16>,
    %c0_325 = arith.constant 0 : index
    %c132 = arith.constant 132 : index
    %389 = vector.load %arg6[%c0_325, %c132] : memref<16x392xbf16, #tpu.memory_space<vmem>>, vector<16x256xbf16>
    %c4_326 = arith.constant 4 : index
    %c0_327 = arith.constant 0 : index
    %390 = vector.load %arg3[%c4_326, %c0_327] : memref<9x256xbf16, #tpu.memory_space<vmem>>, vector<1x256xbf16>
    %391 = vector.broadcast %390 : vector<1x256xbf16> to vector<16x256xbf16>
    %392 = arith.mulf %389, %391 : vector<16x256xbf16>
    %c1216 = arith.constant 1216 : index
    %c0_328 = arith.constant 0 : index
    %393 = vector.load %arg7[%c1216, %c0_328] : memref<1408x256xbf16, #tpu.memory_space<vmem>>, vector<16x256xbf16>
    tpu.vector_store %arg7[%c1216, %c0_328], %392 {strides = array<i32>} : memref<1408x256xbf16, #tpu.memory_space<vmem>>, vector<16x256xbf16>,
    %c0_329 = arith.constant 0 : index
    %c133 = arith.constant 133 : index
    %394 = vector.load %arg6[%c0_329, %c133] : memref<16x392xbf16, #tpu.memory_space<vmem>>, vector<16x256xbf16>
    %c5_330 = arith.constant 5 : index
    %c0_331 = arith.constant 0 : index
    %395 = vector.load %arg3[%c5_330, %c0_331] : memref<9x256xbf16, #tpu.memory_space<vmem>>, vector<1x256xbf16>
    %396 = vector.broadcast %395 : vector<1x256xbf16> to vector<16x256xbf16>
    %397 = arith.mulf %394, %396 : vector<16x256xbf16>
    %c1232 = arith.constant 1232 : index
    %c0_332 = arith.constant 0 : index
    %398 = vector.load %arg7[%c1232, %c0_332] : memref<1408x256xbf16, #tpu.memory_space<vmem>>, vector<16x256xbf16>
    tpu.vector_store %arg7[%c1232, %c0_332], %397 {strides = array<i32>} : memref<1408x256xbf16, #tpu.memory_space<vmem>>, vector<16x256xbf16>,
    %c0_333 = arith.constant 0 : index
    %c134 = arith.constant 134 : index
    %399 = vector.load %arg6[%c0_333, %c134] : memref<16x392xbf16, #tpu.memory_space<vmem>>, vector<16x256xbf16>
    %c6_334 = arith.constant 6 : index
    %c0_335 = arith.constant 0 : index
    %400 = vector.load %arg3[%c6_334, %c0_335] : memref<9x256xbf16, #tpu.memory_space<vmem>>, vector<1x256xbf16>
    %401 = vector.broadcast %400 : vector<1x256xbf16> to vector<16x256xbf16>
    %402 = arith.mulf %399, %401 : vector<16x256xbf16>
    %c1248 = arith.constant 1248 : index
    %c0_336 = arith.constant 0 : index
    %403 = vector.load %arg7[%c1248, %c0_336] : memref<1408x256xbf16, #tpu.memory_space<vmem>>, vector<16x256xbf16>
    tpu.vector_store %arg7[%c1248, %c0_336], %402 {strides = array<i32>} : memref<1408x256xbf16, #tpu.memory_space<vmem>>, vector<16x256xbf16>,
    %c0_337 = arith.constant 0 : index
    %c135 = arith.constant 135 : index
    %404 = vector.load %arg6[%c0_337, %c135] : memref<16x392xbf16, #tpu.memory_space<vmem>>, vector<16x256xbf16>
    %c7_338 = arith.constant 7 : index
    %c0_339 = arith.constant 0 : index
    %405 = vector.load %arg3[%c7_338, %c0_339] : memref<9x256xbf16, #tpu.memory_space<vmem>>, vector<1x256xbf16>
    %406 = vector.broadcast %405 : vector<1x256xbf16> to vector<16x256xbf16>
    %407 = arith.mulf %404, %406 : vector<16x256xbf16>
    %c1264 = arith.constant 1264 : index
    %c0_340 = arith.constant 0 : index
    %408 = vector.load %arg7[%c1264, %c0_340] : memref<1408x256xbf16, #tpu.memory_space<vmem>>, vector<16x256xbf16>
    tpu.vector_store %arg7[%c1264, %c0_340], %407 {strides = array<i32>} : memref<1408x256xbf16, #tpu.memory_space<vmem>>, vector<16x256xbf16>,
    %c0_341 = arith.constant 0 : index
    %c136 = arith.constant 136 : index
    %409 = vector.load %arg6[%c0_341, %c136] : memref<16x392xbf16, #tpu.memory_space<vmem>>, vector<16x256xbf16>
    %c8_342 = arith.constant 8 : index
    %c0_343 = arith.constant 0 : index
    %410 = vector.load %arg3[%c8_342, %c0_343] : memref<9x256xbf16, #tpu.memory_space<vmem>>, vector<1x256xbf16>
    %411 = vector.broadcast %410 : vector<1x256xbf16> to vector<16x256xbf16>
    %412 = arith.mulf %409, %411 : vector<16x256xbf16>
    %c1280 = arith.constant 1280 : index
    %c0_344 = arith.constant 0 : index
    %413 = vector.load %arg7[%c1280, %c0_344] : memref<1408x256xbf16, #tpu.memory_space<vmem>>, vector<16x256xbf16>
    tpu.vector_store %arg7[%c1280, %c0_344], %412 {strides = array<i32>} : memref<1408x256xbf16, #tpu.memory_space<vmem>>, vector<16x256xbf16>,
    %c0_345 = arith.constant 0 : index
    %c0_346 = arith.constant 0 : index
    %414 = vector.load %arg2[%c0_345, %c0_346] : memref<64x1408xbf16, #tpu.memory_space<vmem>>, vector<64x1408xbf16>
    %c0_347 = arith.constant 0 : index
    %c0_348 = arith.constant 0 : index
    %415 = vector.load %arg7[%c0_347, %c0_348] : memref<1408x256xbf16, #tpu.memory_space<vmem>>, vector<1408x256xbf16>
    %cst_349 = arith.constant dense<0.000000e+00> : vector<64x256xf32>
    %416 = tpu.matmul %414, %415, %cst_349 {dimension_numbers = #tpu.dot_dimension_numbers<[1], [0], [0], [1], [0, 0, 1, 1], [], []>} : vector<64x1408xbf16>, vector<1408x256xbf16>, vector<64x256xf32> -> vector<64x256xf32>
    %c0_350 = arith.constant 0 : index
    %c0_351 = arith.constant 0 : index
    %c0_352 = arith.constant 0 : index
    %417 = vector.load %arg4[%c0_350, %c0_351, %c0_352] : memref<1x64x256xf32, #tpu.memory_space<vmem>>, vector<1x64x256xf32>
    %418 = vector.shape_cast %417 : vector<1x64x256xf32> to vector<64x256xf32>
    %419 = vector.shape_cast %416 : vector<64x256xf32> to vector<1x64x256xf32>
    tpu.vector_store %arg4[%c0_350, %c0_351, %c0_352], %419 {strides = array<i32>} : memref<1x64x256xf32, #tpu.memory_space<vmem>>, vector<1x64x256xf32>,
    %cst_353 = arith.constant dense<0.000000e+00> : vector<64xf32>
    %420 = vector.multi_reduction <add>, %416, %cst_353 [1] : vector<64x256xf32> to vector<64xf32>
    %421 = vector.shape_cast %420 : vector<64xf32> to vector<64x1xf32>
    %cst_354 = arith.constant 2.560000e+02 : f32
    %422 = vector.broadcast %cst_354 : f32 to vector<64x1xf32>
    %423 = arith.divf %421, %422 : vector<64x1xf32>
    %c0_355 = arith.constant 0 : index
    %c0_356 = arith.constant 0 : index
    %c0_357 = arith.constant 0 : index
    %424 = vector.load %arg5[%c0_355, %c0_356, %c0_357] : memref<1x64x1xf32, #tpu.memory_space<vmem>>, vector<1x64x1xf32>
    %425 = vector.shape_cast %424 : vector<1x64x1xf32> to vector<64x1xf32>
    %426 = vector.shape_cast %423 : vector<64x1xf32> to vector<1x64x1xf32>
    tpu.vector_store %arg5[%c0_355, %c0_356, %c0_357], %426 {strides = array<i32>} : memref<1x64x1xf32, #tpu.memory_space<vmem>>, vector<1x64x1xf32>,
    return
  }
  func.func @transform_0(%arg0: i32) -> (i32, i32, i32) {
    %c0_i32 = arith.constant 0 : i32
    %c0_i32_0 = arith.constant 0 : i32
    %c0_i32_1 = arith.constant 0 : i32
    return %arg0, %c0_i32, %c0_i32_0 : i32, i32, i32
  }
  func.func @transform_1(%arg0: i32) -> (i32, i32) {
    %c0_i32 = arith.constant 0 : i32
    %c0_i32_0 = arith.constant 0 : i32
    %c0_i32_1 = arith.constant 0 : i32
    return %c0_i32, %c0_i32_0 : i32, i32
  }
  func.func @transform_2(%arg0: i32) -> (i32, i32) {
    %c0_i32 = arith.constant 0 : i32
    %c0_i32_0 = arith.constant 0 : i32
    %c0_i32_1 = arith.constant 0 : i32
    return %c0_i32, %c0_i32_0 : i32, i32
  }
  func.func @transform_3(%arg0: i32) -> (i32, i32, i32) {
    %c0_i32 = arith.constant 0 : i32
    %c0_i32_0 = arith.constant 0 : i32
    %c0_i32_1 = arith.constant 0 : i32
    return %arg0, %c0_i32, %c0_i32_0 : i32, i32, i32
  }
  func.func @transform_4(%arg0: i32) -> (i32, i32, i32) {
    %c0_i32 = arith.constant 0 : i32
    %c0_i32_0 = arith.constant 0 : i32
    %c0_i32_1 = arith.constant 0 : i32
    return %arg0, %c0_i32, %c0_i32_0 : i32, i32, i32
  }
}

</mosaic_0001>

<llo_original>
// kernel: tpu_custom_call.1
$region0: #{tpu_custom_call.1}
  #allocation0 [shape = 'u32[]', space=smem, size = 0x4, offset = 0x4, fixed_abs, tag = 'smem constant byte address 0x4 - core index']
  #allocation1 [shape = 'u32[144,128]{1,0:T(1,128)}', space=vmem, size = 0x12000, scoped, tag = 'internal scratch']
  #allocation2 [shape = 'bf16[16,392]{1,0:T(16,128)(2,1)}', space=vmem, size = 0x4000, scoped, tag = 'scratch operand']
  #allocation3 [shape = 'bf16[1408,256]{1,0:T(16,128)(2,1)}', space=vmem, size = 0xb0000, scoped, tag = 'scratch operand']
  %s0 = inlined_call_operand.hbm [shape: bf16[2,16,256], index: 0, kind: input, shape index: {}]
  %s1 = inlined_call_operand.hbm [shape: bf16[64,1408], index: 1, kind: input, shape index: {}]
  %s2 = inlined_call_operand.hbm [shape: bf16[9,256], index: 2, kind: input, shape index: {}]
  %s3 = inlined_call_operand.hbm [shape: f32[2,64,256], index: 3, kind: output, shape index: {0}]
  %s4 = inlined_call_operand.vmem [shape: f32[2,64,1], index: 4, kind: output, shape index: {1}]
  %5 = xla_tuple %s3, %s4
  %s6 = sld [smem:[#allocation0]]
  $region65: #{tpu_custom_call.1} parent=0
    _
  %s8 = ssub.s32 1, %s6
  %s9 = scalar_select 0, %s8, %s6
  $region1: #{tpu_custom_call.1} parent=0
    #allocation4 [shape = 'u8[16384]{0}', space=vmem, size = 0x4000, scoped, tag = 'input window, operand 0']
    #allocation5 [shape = 's32[2]{0}', space=sflag, size = 0x8, scoped, tag = 'scoped memory for tpu_custom_call.1']
    #allocation6 [shape = 's32[2]{0}', space=sflag, size = 0x8, scoped, tag = 'scoped memory for tpu_custom_call.1']
    #allocation7 [shape = 'u8[180224]{0}', space=vmem, size = 0x2c000, scoped, tag = 'input window, operand 1, single buffered']
    #allocation8 [shape = 's32[1]{0}', space=sflag, size = 0x4, scoped, tag = 'scoped memory for tpu_custom_call.1']
    #allocation9 [shape = 'u8[8192]{0}', space=vmem, size = 0x2000, scoped, tag = 'input window, operand 2, single buffered']
    #allocation10 [shape = 'u8[131072]{0}', space=vmem, size = 0x20000, scoped, tag = 'output window, operand 0']
    %10 = vsyncpa [#allocation5], 0
    %s11 = scalar_lea.sflag [#allocation5], 1
    %12 = vsyncpa %s11, 0
    %13 = vsyncpa [#allocation8], 0
    %14 = vsyncpa [#allocation6], 0
    %s15 = scalar_lea.sflag [#allocation6], 1
    %16 = vsyncpa %s15, 0
    loop: start=0, step=1, limit=4
    $region2: #{tpu_custom_call.1} parent=1 // loop_pre_header
      _
    $region3: #{tpu_custom_call.1} parent=1 // loop_header
      %s18 = sphi 0, %s22
      %p19 = scmp.ge.s32.totalorder %s18, 4
      %s28 = sphi 0, %s30
      %s31 = sphi 0, %s28
      %s32 = sphi 0, %s31
      %s48 = sphi 0, %s32
      %s52 = sphi 0, %s52
      %s54 = sphi 0, %s52
      %s55 = sphi 0, %s54
      %s69 = sphi 0, %s55
      %s73 = sphi 0, %s73
      %s75 = sphi 0, %s73
      %s76 = sphi 0, %s75
      %s90 = sphi 0, %s76
      %s96 = sphi 0, %s98
      %s99 = sphi 0, %s96
      %s100 = sphi 0, %s99
      %s116 = sphi 0, %s100
      %s122 = sphi 0, %s124
      %s125 = sphi 0, %s122
      %s126 = sphi 0, %s125
      %s142 = sphi 0, %s126
    $region4: #{tpu_custom_call.1} parent=1 // loop_header_branch
      %21 = sbr.rel (%p19) target = $region8
    $region5: #{tpu_custom_call.1} parent=1 // loop_body
      %s23 = ssub.s32 %s18, 1
      %s24 = ssub.s32 %s18, 2
      %s25 = sadd.s32 %s18, 1
      %s26 = ssub.s32 %s18, %s25
      %p27 = scmp.eq.s32.totalorder %s26, 0
      %s29 = sadd.s32 %s28, 1
      %s30 = scalar_select %p27, %s28, %s29
      %p33 = pneg %p27
      %p34 = scmp.eq.s32.totalorder %s18, 1
      %p35 = por %p33, %p34
      %p36 = scmp.ne.s32.totalorder %s28, %s31
      %p37 = scmp.eq.s32.totalorder %s18, 0
      %p38 = por %p36, %p37
      %p39 = scmp.ne.s32.totalorder %s28, %s31
      %p40 = scmp.eq.s32.totalorder %s23, 1
      %p41 = por %p39, %p40
      %p42 = scmp.ne.s32.totalorder %s31, %s32
      %p43 = scmp.eq.s32.totalorder %s23, 0
      %p44 = por %p42, %p43
      %p45 = scmp.ne.s32.totalorder %s31, %s32
      %p46 = scmp.eq.s32.totalorder %s24, 1
      %p47 = por %p45, %p46
      %p49 = scmp.ne.s32.totalorder %s32, %s48
      %p50 = scmp.eq.s32.totalorder %s24, 0
      %p51 = por %p49, %p50
      %s53 = sadd.s32 %s52, 1
      %p56 = scmp.eq.s32.totalorder %s18, 1
      %p57 = scmp.ne.s32.totalorder %s52, %s54
      %p58 = scmp.eq.s32.totalorder %s18, 0
      %p59 = por %p57, %p58
      %p60 = scmp.ne.s32.totalorder %s52, %s54
      %p61 = scmp.eq.s32.totalorder %s23, 1
      %p62 = por %p60, %p61
      %p63 = scmp.ne.s32.totalorder %s54, %s55
      %p64 = scmp.eq.s32.totalorder %s23, 0
      %p65 = por %p63, %p64
      %p66 = scmp.ne.s32.totalorder %s54, %s55
      %p67 = scmp.eq.s32.totalorder %s24, 1
      %p68 = por %p66, %p67
      %p70 = scmp.ne.s32.totalorder %s55, %s69
      %p71 = scmp.eq.s32.totalorder %s24, 0
      %p72 = por %p70, %p71
      %s74 = sadd.s32 %s73, 1
      %p77 = scmp.eq.s32.totalorder %s18, 1
      %p78 = scmp.ne.s32.totalorder %s73, %s75
      %p79 = scmp.eq.s32.totalorder %s18, 0
      %p80 = por %p78, %p79
      %p81 = scmp.ne.s32.totalorder %s73, %s75
      %p82 = scmp.eq.s32.totalorder %s23, 1
      %p83 = por %p81, %p82
      %p84 = scmp.ne.s32.totalorder %s75, %s76
      %p85 = scmp.eq.s32.totalorder %s23, 0
      %p86 = por %p84, %p85
      %p87 = scmp.ne.s32.totalorder %s75, %s76
      %p88 = scmp.eq.s32.totalorder %s24, 1
      %p89 = por %p87, %p88
      %p91 = scmp.ne.s32.totalorder %s76, %s90
      %p92 = scmp.eq.s32.totalorder %s24, 0
      %p93 = por %p91, %p92
      %s94 = ssub.s32 %s18, %s25
      %p95 = scmp.eq.s32.totalorder %s94, 0
      %s97 = sadd.s32 %s96, 1
      %s98 = scalar_select %p95, %s96, %s97
      %p101 = pneg %p95
      %p102 = scmp.eq.s32.totalorder %s18, 1
      %p103 = por %p101, %p102
      %p104 = scmp.ne.s32.totalorder %s96, %s99
      %p105 = scmp.eq.s32.totalorder %s18, 0
      %p106 = por %p104, %p105
      %p107 = scmp.ne.s32.totalorder %s96, %s99
      %p108 = scmp.eq.s32.totalorder %s23, 1
      %p109 = por %p107, %p108
      %p110 = scmp.ne.s32.totalorder %s99, %s100
      %p111 = scmp.eq.s32.totalorder %s23, 0
      %p112 = por %p110, %p111
      %p113 = scmp.ne.s32.totalorder %s99, %s100
      %p114 = scmp.eq.s32.totalorder %s24, 1
      %p115 = por %p113, %p114
      %p117 = scmp.ne.s32.totalorder %s100, %s116
      %p118 = scmp.eq.s32.totalorder %s24, 0
      %p119 = por %p117, %p118
      %s120 = ssub.s32 %s18, %s25
      %p121 = scmp.eq.s32.totalorder %s120, 0
      %s123 = sadd.s32 %s122, 1
      %s124 = scalar_select %p121, %s122, %s123
      %p127 = pneg %p121
      %p128 = scmp.eq.s32.totalorder %s18, 1
      %p129 = por %p127, %p128
      %p130 = scmp.ne.s32.totalorder %s122, %s125
      %p131 = scmp.eq.s32.totalorder %s18, 0
      %p132 = por %p130, %p131
      %p133 = scmp.ne.s32.totalorder %s122, %s125
      %p134 = scmp.eq.s32.totalorder %s23, 1
      %p135 = por %p133, %p134
      %p136 = scmp.ne.s32.totalorder %s125, %s126
      %p137 = scmp.eq.s32.totalorder %s23, 0
      %p138 = por %p136, %p137
      %p139 = scmp.ne.s32.totalorder %s125, %s126
      %p140 = scmp.eq.s32.totalorder %s24, 1
      %p141 = por %p139, %p140
      %p143 = scmp.ne.s32.totalorder %s126, %s142
      %p144 = scmp.eq.s32.totalorder %s24, 0
      %p145 = por %p143, %p144
      %p146 = scmp.le.s32.totalorder 1, %s18
      %p147 = scmp.lt.s32.totalorder %s18, 3
      %p148 = pnand %p146, %p147
      %p149 = pneg %p148
      // Predicated region
      $region9: #{tpu_custom_call.1} parent=5 // pred_check
        _
      $region10: #{tpu_custom_call.1} parent=5 // pred_check_branch
        %151 = sbr.rel (%p148) target = $region12
      $region11: #{tpu_custom_call.1} parent=5 // pred_region
        %s152 = ssub.s32 %s18, 1
        // Predicated region
        $region13: #{tpu_custom_call.1} parent=11 // pred_check
          %p153 = pneg %p65
        $region14: #{tpu_custom_call.1} parent=11 // pred_check_branch
          %155 = sbr.rel (%p153) target = $region16
        $region15: #{tpu_custom_call.1} parent=11 // pred_region
          %s157 = ssub.s32 5632, 5632
          %158 = vsyncadd [#allocation8], %s157
          %s159 = sshll.u32 [#allocation7], 4
          %s160 = int_to_ptr.vmem [resolvable:$true] %s159
          %165 = dma.hbm_to_vmem [thread:$0]  %s1, 5632, %s160, [#allocation8], 704, 704, 44
        $region16: #{tpu_custom_call.1} parent=11 // pred_fallthru
          _
        // Predicated region
        $region17: #{tpu_custom_call.1} parent=11 // pred_check
          %p166 = pneg %p86
        $region18: #{tpu_custom_call.1} parent=11 // pred_check_branch
          %168 = sbr.rel (%p166) target = $region20
        $region19: #{tpu_custom_call.1} parent=11 // pred_region
          %s170 = ssub.s32 256, 256
          %171 = vsyncadd [#allocation8], %s170
          %s172 = sshll.u32 [#allocation9], 4
          %s173 = int_to_ptr.vmem [resolvable:$true] %s172
          %178 = dma.hbm_to_vmem [thread:$0]  %s2, 256, %s173, [#allocation8], 128, 128, 8
        $region20: #{tpu_custom_call.1} parent=11 // pred_fallthru
          _
      $region12: #{tpu_custom_call.1} parent=5 // pred_fallthru
        _
      %p179 = scmp.lt.s32.totalorder %s18, 2
      // Predicated region
      $region21: #{tpu_custom_call.1} parent=5 // pred_check
        %p180 = pneg %p179
      $region22: #{tpu_custom_call.1} parent=5 // pred_check_branch
        %182 = sbr.rel (%p180) target = $region24
      $region23: #{tpu_custom_call.1} parent=5 // pred_region
        // Predicated region
        $region25: #{tpu_custom_call.1} parent=23 // pred_check
          %p183 = pneg %p38
        $region26: #{tpu_custom_call.1} parent=23 // pred_check_branch
          %185 = sbr.rel (%p183) target = $region28
        $region27: #{tpu_custom_call.1} parent=23 // pred_region
          %s186 = sand.u32 %s28, 1
          %s187 = scalar_lea.sflag [#allocation5], %s186
          %s188 = sand.u32 %s28, 1
          %s189 = smul.addr %s188, 16
          %s190 = scalar_lea.vmem [#allocation4], %s189
          %s192 = ssub.s32 256, 256
          %193 = vsyncadd %s187, %s192
          %s194 = smul.addr %s18, 4
          %s195 = smul.addr %s194, 64
          %s196 = scalar_lea.hbm %s0, %s195
          %s197 = sshll.u32 %s190, 4
          %s198 = int_to_ptr.vmem [resolvable:$true] %s197
          %203 = dma.hbm_to_vmem [thread:$0]  %s196, 256, %s198, %s187, 128, 128, 8
        $region28: #{tpu_custom_call.1} parent=23 // pred_fallthru
          _
      $region24: #{tpu_custom_call.1} parent=5 // pred_fallthru
        _
      %p204 = scmp.le.s32.totalorder 1, %s18
      %p205 = scmp.lt.s32.totalorder %s18, 3
      %p206 = pnand %p204, %p205
      %p207 = pneg %p206
      // Predicated region
      $region29: #{tpu_custom_call.1} parent=5 // pred_check
        _
      $region30: #{tpu_custom_call.1} parent=5 // pred_check_branch
        %209 = sbr.rel (%p206) target = $region32
      $region31: #{tpu_custom_call.1} parent=5 // pred_region
        %s210 = ssub.s32 %s18, 1
        %s211 = sand.u32 %s31, 1
        %s212 = scalar_lea.sflag [#allocation5], %s211
        %s213 = sand.u32 %s31, 1
        %s214 = smul.addr %s213, 16
        %s215 = scalar_lea.vmem [#allocation4], %s214
        // Predicated region
        $region33: #{tpu_custom_call.1} parent=31 // pred_check
          %p216 = pneg %p44
        $region34: #{tpu_custom_call.1} parent=31 // pred_check_branch
          %218 = sbr.rel (%p216) target = $region36
        $region35: #{tpu_custom_call.1} parent=31 // pred_region
          %219 = dma.done %s212, 256
        $region36: #{tpu_custom_call.1} parent=31 // pred_fallthru
          _
        // Predicated region
        $region37: #{tpu_custom_call.1} parent=31 // pred_check
          %p220 = pneg %p65
        $region38: #{tpu_custom_call.1} parent=31 // pred_check_branch
          %222 = sbr.rel (%p220) target = $region40
        $region39: #{tpu_custom_call.1} parent=31 // pred_region
          %223 = dma.done [#allocation8], 5632
        $region40: #{tpu_custom_call.1} parent=31 // pred_fallthru
          _
        // Predicated region
        $region41: #{tpu_custom_call.1} parent=31 // pred_check
          %p224 = pneg %p86
        $region42: #{tpu_custom_call.1} parent=31 // pred_check_branch
          %226 = sbr.rel (%p224) target = $region44
        $region43: #{tpu_custom_call.1} parent=31 // pred_region
          %227 = dma.done [#allocation8], 256
        $region44: #{tpu_custom_call.1} parent=31 // pred_fallthru
          _
        %s228 = sand.u32 %s31, 1
        %s229 = scalar_lea.sflag [#allocation5], %s228
        %s230 = sand.u32 %s31, 1
        %s231 = smul.addr %s230, 16
        %s232 = scalar_lea.vmem [#allocation4], %s231
        %p233 = pneg %p44
        %p234 = pneg %p41
        %p235 = pneg %p65
        %p236 = pneg %p62
        %p237 = pneg %p86
        %p238 = pneg %p83
        %p239 = pneg %p112
        %p240 = pneg %p109
        %s241 = sand.u32 %s99, 1
        %s242 = scalar_lea.sflag [#allocation6], %s241
        %s243 = sand.u32 %s99, 1
        %s244 = smul.addr %s243, 128
        %s245 = scalar_lea.vmem [#allocation10], %s244
        %p246 = pneg %p138
        %p247 = pneg %p135
        %p248 = scmp.lt.s32.totalorder %s23, 1
        %s249 = scalar_select %p248, %s23, 1
        %s250 = smul.addr %s249, 8
        %s251 = smul.addr %s250, 8
        %s252 = scalar_lea.vmem %s4, %s251
        %p253 = scmp.lt.s32.totalorder %s23, 1
        %s254 = scalar_select %p253, %s23, 1
        %s255 = smul.addr %s254, 8
        %s256 = smul.addr %s255, 8
        %s257 = scalar_lea.vmem %s4, %s256
        %260 = vst [vmem:[#allocation2] sm:$0xff] 0
        %261 = vst [vmem:[#allocation2 + $0x8] sm:$0xff] 0
        %262 = vst [vmem:[#allocation2 + $0x10] sm:$0xff] 0
        %vm263 = vcmask 64512
        %264 = vst.msk [vmem:[#allocation2 + $0x18] sm:$0xff] %vm263, 0
        %v265 = vld [vmem:[%s215] sm:$0xff]
        %v266 = vld [vmem:[%s215 + $0x8] sm:$0xff]
        %v269 = vunpack.c.l.b16 %v265
        %v270 = vunpack.c.h.b16 %v265
        %v271 = vunpack.c.l.b16 %v266
        %v272 = vunpack.c.h.b16 %v266
        %v273 = vpack.c.b16 %v271, %v269
        %v274 = vpack.c.b16 %v272, %v270
        %275 = vrot.lane.b32.xlu0 %v273, 68
        %v276 = vpop.permute.xlu0 %275
        %277 = vrot.lane.b32.xlu0 %v274, 68
        %v278 = vpop.permute.xlu0 %277
        %vm279 = vcmask 556032
        %v280 = vsel %vm279, %v276, %v278
        %vm284 = vcmask 1048096
        %285 = vst.msk [vmem:[#allocation2] sm:$0xff] %vm284, %v276
        %286 = vst [vmem:[#allocation2 + $0x8] sm:$0xff] %v280
        %vm287 = vcmask 556032
        %288 = vst.msk [vmem:[#allocation2 + $0x10] sm:$0xff] %vm287, %v278
        %289 = vst [vmem:[#allocation3 + $0x510] sm:$0xff] 0
        %290 = vst [vmem:[#allocation3 + $0x518] sm:$0xff] 0
        %291 = vst [vmem:[#allocation3 + $0x520] sm:$0xff] 0
        %292 = vst [vmem:[#allocation3 + $0x528] sm:$0xff] 0
        %293 = vst [vmem:[#allocation3 + $0x530] sm:$0xff] 0
        %294 = vst [vmem:[#allocation3 + $0x538] sm:$0xff] 0
        %295 = vst [vmem:[#allocation3 + $0x540] sm:$0xff] 0
        %296 = vst [vmem:[#allocation3 + $0x548] sm:$0xff] 0
        %297 = vst [vmem:[#allocation3 + $0x550] sm:$0xff] 0
        %298 = vst [vmem:[#allocation3 + $0x558] sm:$0xff] 0
        %299 = vst [vmem:[#allocation3 + $0x560] sm:$0xff] 0
        %300 = vst [vmem:[#allocation3 + $0x568] sm:$0xff] 0
        %301 = vst [vmem:[#allocation3 + $0x570] sm:$0xff] 0
        %302 = vst [vmem:[#allocation3 + $0x578] sm:$0xff] 0
        %vm303 = vcmask 1040384
        %vm304 = vsmask.f32 256
        %vm305 = vmand %vm303, %vm304
        %v306 = vld [vmem:[#allocation3 + $0x510] sm:$0x1]
        %v307 = vsel %vm305, 1065369472, %v306
        %308 = vst [vmem:[#allocation3 + $0x510] sm:$0x1] %v307
        %v309 = vld [vmem:[#allocation3 + $0x518] sm:$0x1]
        %v310 = vsel %vm305, 1065369472, %v309
        %311 = vst [vmem:[#allocation3 + $0x518] sm:$0x1] %v310
        %v312 = vld [vmem:[#allocation2] sm:$0xff]
        %v313 = vld [vmem:[#allocation2 + $0x8] sm:$0xff]
        %v314 = vld [vmem:[#allocation9] sm:$0x11]
        %v316 = vunpack.c.l.b16 %v314
        %v317 = vunpack.c.h.b16 %v314
        %v318 = vpack.c.b16 %v316, %v316
        %v319 = vpack.c.b16 %v317, %v317
        %v321 = vpack.i.b16 %v318, %v318
        %v323 = vlaneseq
        %v324 = vshrl.u32 %v323, 7
        %v325 = vsub.s32 0, %v324
        %v326 = vrot.slane %v321, %v325
        %v328 = vpack.i.b16 %v319, %v319
        %v330 = vlaneseq
        %v331 = vshrl.u32 %v330, 7
        %v332 = vsub.s32 0, %v331
        %v333 = vrot.slane %v328, %v332
        %v334 = vmul.bf16 %v312, %v326
        %v335 = vmul.bf16 %v313, %v333
        %336 = vst [vmem:[#allocation3] sm:$0xff] %v334
        %337 = vst [vmem:[#allocation3 + $0x8] sm:$0xff] %v335
        %v338 = vld [vmem:[#allocation2] sm:$0xff]
        %v339 = vld [vmem:[#allocation2 + $0x8] sm:$0xff]
        %v340 = vld [vmem:[#allocation2 + $0x10] sm:$0xff]
        %v341 = vld [vmem:[#allocation9] sm:$0x11]
        %v343 = vunpack.c.l.b16 %v341
        %v344 = vunpack.c.h.b16 %v341
        %v345 = vpack.c.b16 %v343, %v343
        %v346 = vpack.c.b16 %v344, %v344
        %v348 = vshrl.u32 %v345, 16
        %v349 = vpack.i.b16 %v348, %v348
        %v351 = vlaneseq
        %v352 = vshrl.u32 %v351, 7
        %v353 = vsub.s32 0, %v352
        %v354 = vrot.slane %v349, %v353
        %v356 = vshrl.u32 %v346, 16
        %v357 = vpack.i.b16 %v356, %v356
        %v359 = vlaneseq
        %v360 = vshrl.u32 %v359, 7
        %v361 = vsub.s32 0, %v360
        %v362 = vrot.slane %v357, %v361
        %365 = vrot.lane.b32.xlu0 %v354, 1
        %v366 = vpop.permute.xlu0 %365
        %367 = vrot.lane.b32.xlu0 %v362, 1
        %v368 = vpop.permute.xlu0 %367
        %vm369 = vcmask 7168
        %v370 = vsel %vm369, %v366, %v368
        %v374 = vmul.bf16 %v338, %v366
        %v375 = vmul.bf16 %v339, %v370
        %v376 = vmul.bf16 %v340, %v368
        %380 = vrot.lane.b32.xlu0 %v374, 127
        %v381 = vpop.permute.xlu0 %380
        %382 = vrot.lane.b32.xlu0 %v375, 127
        %v383 = vpop.permute.xlu0 %382
        %384 = vrot.lane.b32.xlu0 %v376, 127
        %v385 = vpop.permute.xlu0 %384
        %vm386 = vcmask 1039360
        %v387 = vsel %vm386, %v381, %v383
        %v388 = vsel %vm386, %v383, %v385
        %391 = vst [vmem:[#allocation3 + $0x10] sm:$0xff] %v387
        %392 = vst [vmem:[#allocation3 + $0x18] sm:$0xff] %v388
        %v393 = vld [vmem:[#allocation2] sm:$0xff]
        %v394 = vld [vmem:[#allocation2 + $0x8] sm:$0xff]
        %v395 = vld [vmem:[#allocation2 + $0x10] sm:$0xff]
        %v396 = vld [vmem:[#allocation9] sm:$0x22]
        %v398 = vunpack.c.l.b16 %v396
        %v399 = vunpack.c.h.b16 %v396
        %v400 = vpack.c.b16 %v398, %v398
        %v401 = vpack.c.b16 %v399, %v399
        %v403 = vpack.i.b16 %v400, %v400
        %v405 = vlaneseq
        %v406 = vshrl.u32 %v405, 7
        %v407 = vsub.s32 1, %v406
        %v408 = vrot.slane %v403, %v407
        %v410 = vpack.i.b16 %v401, %v401
        %v412 = vlaneseq
        %v413 = vshrl.u32 %v412, 7
        %v414 = vsub.s32 1, %v413
        %v415 = vrot.slane %v410, %v414
        %418 = vrot.lane.b32.xlu0 %v408, 2
        %v419 = vpop.permute.xlu0 %418
        %420 = vrot.lane.b32.xlu0 %v415, 2
        %v421 = vpop.permute.xlu0 %420
        %vm422 = vcmask 15360
        %v423 = vsel %vm422, %v419, %v421
        %v427 = vmul.bf16 %v393, %v419
        %v428 = vmul.bf16 %v394, %v423
        %v429 = vmul.bf16 %v395, %v421
        %433 = vrot.lane.b32.xlu0 %v427, 126
        %v434 = vpop.permute.xlu0 %433
        %435 = vrot.lane.b32.xlu0 %v428, 126
        %v436 = vpop.permute.xlu0 %435
        %437 = vrot.lane.b32.xlu0 %v429, 126
        %v438 = vpop.permute.xlu0 %437
        %vm439 = vcmask 1031168
        %v440 = vsel %vm439, %v434, %v436
        %v441 = vsel %vm439, %v436, %v438
        %444 = vst [vmem:[#allocation3 + $0x20] sm:$0xff] %v440
        %445 = vst [vmem:[#allocation3 + $0x28] sm:$0xff] %v441
        %v446 = vld [vmem:[#allocation2] sm:$0xff]
        %v447 = vld [vmem:[#allocation2 + $0x8] sm:$0xff]
        %v448 = vld [vmem:[#allocation2 + $0x10] sm:$0xff]
        %v449 = vld [vmem:[#allocation9] sm:$0x22]
        %v451 = vunpack.c.l.b16 %v449
        %v452 = vunpack.c.h.b16 %v449
        %v453 = vpack.c.b16 %v451, %v451
        %v454 = vpack.c.b16 %v452, %v452
        %v456 = vshrl.u32 %v453, 16
        %v457 = vpack.i.b16 %v456, %v456
        %v459 = vlaneseq
        %v460 = vshrl.u32 %v459, 7
        %v461 = vsub.s32 1, %v460
        %v462 = vrot.slane %v457, %v461
        %v464 = vshrl.u32 %v454, 16
        %v465 = vpack.i.b16 %v464, %v464
        %v467 = vlaneseq
        %v468 = vshrl.u32 %v467, 7
        %v469 = vsub.s32 1, %v468
        %v470 = vrot.slane %v465, %v469
        %473 = vrot.lane.b32.xlu0 %v462, 3
        %v474 = vpop.permute.xlu0 %473
        %475 = vrot.lane.b32.xlu0 %v470, 3
        %v476 = vpop.permute.xlu0 %475
        %vm477 = vcmask 23552
        %v478 = vsel %vm477, %v474, %v476
        %v482 = vmul.bf16 %v446, %v474
        %v483 = vmul.bf16 %v447, %v478
        %v484 = vmul.bf16 %v448, %v476
        %488 = vrot.lane.b32.xlu0 %v482, 125
        %v489 = vpop.permute.xlu0 %488
        %490 = vrot.lane.b32.xlu0 %v483, 125
        %v491 = vpop.permute.xlu0 %490
        %492 = vrot.lane.b32.xlu0 %v484, 125
        %v493 = vpop.permute.xlu0 %492
        %vm494 = vcmask 1022976
        %v495 = vsel %vm494, %v489, %v491
        %v496 = vsel %vm494, %v491, %v493
        %499 = vst [vmem:[#allocation3 + $0x30] sm:$0xff] %v495
        %500 = vst [vmem:[#allocation3 + $0x38] sm:$0xff] %v496
        %v501 = vld [vmem:[#allocation2] sm:$0xff]
        %v502 = vld [vmem:[#allocation2 + $0x8] sm:$0xff]
        %v503 = vld [vmem:[#allocation2 + $0x10] sm:$0xff]
        %v504 = vld [vmem:[#allocation9] sm:$0x44]
        %v506 = vunpack.c.l.b16 %v504
        %v507 = vunpack.c.h.b16 %v504
        %v508 = vpack.c.b16 %v506, %v506
        %v509 = vpack.c.b16 %v507, %v507
        %v511 = vpack.i.b16 %v508, %v508
        %v513 = vlaneseq
        %v514 = vshrl.u32 %v513, 7
        %v515 = vsub.s32 2, %v514
        %v516 = vrot.slane %v511, %v515
        %v518 = vpack.i.b16 %v509, %v509
        %v520 = vlaneseq
        %v521 = vshrl.u32 %v520, 7
        %v522 = vsub.s32 2, %v521
        %v523 = vrot.slane %v518, %v522
        %526 = vrot.lane.b32.xlu0 %v516, 4
        %v527 = vpop.permute.xlu0 %526
        %528 = vrot.lane.b32.xlu0 %v523, 4
        %v529 = vpop.permute.xlu0 %528
        %vm530 = vcmask 31744
        %v531 = vsel %vm530, %v527, %v529
        %v535 = vmul.bf16 %v501, %v527
        %v536 = vmul.bf16 %v502, %v531
        %v537 = vmul.bf16 %v503, %v529
        %541 = vrot.lane.b32.xlu0 %v535, 124
        %v542 = vpop.permute.xlu0 %541
        %543 = vrot.lane.b32.xlu0 %v536, 124
        %v544 = vpop.permute.xlu0 %543
        %545 = vrot.lane.b32.xlu0 %v537, 124
        %v546 = vpop.permute.xlu0 %545
        %vm547 = vcmask 1014784
        %v548 = vsel %vm547, %v542, %v544
        %v549 = vsel %vm547, %v544, %v546
        %552 = vst [vmem:[#allocation3 + $0x40] sm:$0xff] %v548
        %553 = vst [vmem:[#allocation3 + $0x48] sm:$0xff] %v549
        %v554 = vld [vmem:[#allocation2] sm:$0xff]
        %v555 = vld [vmem:[#allocation2 + $0x8] sm:$0xff]
        %v556 = vld [vmem:[#allocation2 + $0x10] sm:$0xff]
        %v557 = vld [vmem:[#allocation9] sm:$0x44]
        %v559 = vunpack.c.l.b16 %v557
        %v560 = vunpack.c.h.b16 %v557
        %v561 = vpack.c.b16 %v559, %v559
        %v562 = vpack.c.b16 %v560, %v560
        %v564 = vshrl.u32 %v561, 16
        %v565 = vpack.i.b16 %v564, %v564
        %v567 = vlaneseq
        %v568 = vshrl.u32 %v567, 7
        %v569 = vsub.s32 2, %v568
        %v570 = vrot.slane %v565, %v569
        %v572 = vshrl.u32 %v562, 16
        %v573 = vpack.i.b16 %v572, %v572
        %v575 = vlaneseq
        %v576 = vshrl.u32 %v575, 7
        %v577 = vsub.s32 2, %v576
        %v578 = vrot.slane %v573, %v577
        %581 = vrot.lane.b32.xlu0 %v570, 5
        %v582 = vpop.permute.xlu0 %581
        %583 = vrot.lane.b32.xlu0 %v578, 5
        %v584 = vpop.permute.xlu0 %583
        %vm585 = vcmask 39936
        %v586 = vsel %vm585, %v582, %v584
        %v590 = vmul.bf16 %v554, %v582
        %v591 = vmul.bf16 %v555, %v586
        %v592 = vmul.bf16 %v556, %v584
        %596 = vrot.lane.b32.xlu0 %v590, 123
        %v597 = vpop.permute.xlu0 %596
        %598 = vrot.lane.b32.xlu0 %v591, 123
        %v599 = vpop.permute.xlu0 %598
        %600 = vrot.lane.b32.xlu0 %v592, 123
        %v601 = vpop.permute.xlu0 %600
        %vm602 = vcmask 1006592
        %v603 = vsel %vm602, %v597, %v599
        %v604 = vsel %vm602, %v599, %v601
        %607 = vst [vmem:[#allocation3 + $0x50] sm:$0xff] %v603
        %608 = vst [vmem:[#allocation3 + $0x58] sm:$0xff] %v604
        %v609 = vld [vmem:[#allocation2] sm:$0xff]
        %v610 = vld [vmem:[#allocation2 + $0x8] sm:$0xff]
        %v611 = vld [vmem:[#allocation2 + $0x10] sm:$0xff]
        %v612 = vld [vmem:[#allocation9] sm:$0x88]
        %v614 = vunpack.c.l.b16 %v612
        %v615 = vunpack.c.h.b16 %v612
        %v616 = vpack.c.b16 %v614, %v614
        %v617 = vpack.c.b16 %v615, %v615
        %v619 = vpack.i.b16 %v616, %v616
        %v621 = vlaneseq
        %v622 = vshrl.u32 %v621, 7
        %v623 = vsub.s32 3, %v622
        %v624 = vrot.slane %v619, %v623
        %v626 = vpack.i.b16 %v617, %v617
        %v628 = vlaneseq
        %v629 = vshrl.u32 %v628, 7
        %v630 = vsub.s32 3, %v629
        %v631 = vrot.slane %v626, %v630
        %634 = vrot.lane.b32.xlu0 %v624, 6
        %v635 = vpop.permute.xlu0 %634
        %636 = vrot.lane.b32.xlu0 %v631, 6
        %v637 = vpop.permute.xlu0 %636
        %vm638 = vcmask 48128
        %v639 = vsel %vm638, %v635, %v637
        %v643 = vmul.bf16 %v609, %v635
        %v644 = vmul.bf16 %v610, %v639
        %v645 = vmul.bf16 %v611, %v637
        %649 = vrot.lane.b32.xlu0 %v643, 122
        %v650 = vpop.permute.xlu0 %649
        %651 = vrot.lane.b32.xlu0 %v644, 122
        %v652 = vpop.permute.xlu0 %651
        %653 = vrot.lane.b32.xlu0 %v645, 122
        %v654 = vpop.permute.xlu0 %653
        %vm655 = vcmask 998400
        %v656 = vsel %vm655, %v650, %v652
        %v657 = vsel %vm655, %v652, %v654
        %660 = vst [vmem:[#allocation3 + $0x60] sm:$0xff] %v656
        %661 = vst [vmem:[#allocation3 + $0x68] sm:$0xff] %v657
        %v662 = vld [vmem:[#allocation2] sm:$0xff]
        %v663 = vld [vmem:[#allocation2 + $0x8] sm:$0xff]
        %v664 = vld [vmem:[#allocation2 + $0x10] sm:$0xff]
        %v665 = vld [vmem:[#allocation9] sm:$0x88]
        %v667 = vunpack.c.l.b16 %v665
        %v668 = vunpack.c.h.b16 %v665
        %v669 = vpack.c.b16 %v667, %v667
        %v670 = vpack.c.b16 %v668, %v668
        %v672 = vshrl.u32 %v669, 16
        %v673 = vpack.i.b16 %v672, %v672
        %v675 = vlaneseq
        %v676 = vshrl.u32 %v675, 7
        %v677 = vsub.s32 3, %v676
        %v678 = vrot.slane %v673, %v677
        %v680 = vshrl.u32 %v670, 16
        %v681 = vpack.i.b16 %v680, %v680
        %v683 = vlaneseq
        %v684 = vshrl.u32 %v683, 7
        %v685 = vsub.s32 3, %v684
        %v686 = vrot.slane %v681, %v685
        %689 = vrot.lane.b32.xlu0 %v678, 7
        %v690 = vpop.permute.xlu0 %689
        %691 = vrot.lane.b32.xlu0 %v686, 7
        %v692 = vpop.permute.xlu0 %691
        %vm693 = vcmask 56320
        %v694 = vsel %vm693, %v690, %v692
        %v698 = vmul.bf16 %v662, %v690
        %v699 = vmul.bf16 %v663, %v694
        %v700 = vmul.bf16 %v664, %v692
        %704 = vrot.lane.b32.xlu0 %v698, 121
        %v705 = vpop.permute.xlu0 %704
        %706 = vrot.lane.b32.xlu0 %v699, 121
        %v707 = vpop.permute.xlu0 %706
        %708 = vrot.lane.b32.xlu0 %v700, 121
        %v709 = vpop.permute.xlu0 %708
        %vm710 = vcmask 990208
        %v711 = vsel %vm710, %v705, %v707
        %v712 = vsel %vm710, %v707, %v709
        %715 = vst [vmem:[#allocation3 + $0x70] sm:$0xff] %v711
        %716 = vst [vmem:[#allocation3 + $0x78] sm:$0xff] %v712
        %v717 = vld [vmem:[#allocation2] sm:$0xff]
        %v718 = vld [vmem:[#allocation2 + $0x8] sm:$0xff]
        %v719 = vld [vmem:[#allocation2 + $0x10] sm:$0xff]
        %v720 = vld [vmem:[#allocation9 + $0x8] sm:$0x11]
        %v722 = vunpack.c.l.b16 %v720
        %v723 = vunpack.c.h.b16 %v720
        %v724 = vpack.c.b16 %v722, %v722
        %v725 = vpack.c.b16 %v723, %v723
        %v727 = vpack.i.b16 %v724, %v724
        %v729 = vlaneseq
        %v730 = vshrl.u32 %v729, 7
        %v731 = vsub.s32 0, %v730
        %v732 = vrot.slane %v727, %v731
        %v734 = vpack.i.b16 %v725, %v725
        %v736 = vlaneseq
        %v737 = vshrl.u32 %v736, 7
        %v738 = vsub.s32 0, %v737
        %v739 = vrot.slane %v734, %v738
        %742 = vrot.lane.b32.xlu0 %v732, 8
        %v743 = vpop.permute.xlu0 %742
        %744 = vrot.lane.b32.xlu0 %v739, 8
        %v745 = vpop.permute.xlu0 %744
        %vm746 = vcmask 64512
        %v747 = vsel %vm746, %v743, %v745
        %v751 = vmul.bf16 %v717, %v743
        %v752 = vmul.bf16 %v718, %v747
        %v753 = vmul.bf16 %v719, %v745
        %757 = vrot.lane.b32.xlu0 %v751, 120
        %v758 = vpop.permute.xlu0 %757
        %759 = vrot.lane.b32.xlu0 %v752, 120
        %v760 = vpop.permute.xlu0 %759
        %761 = vrot.lane.b32.xlu0 %v753, 120
        %v762 = vpop.permute.xlu0 %761
        %vm763 = vcmask 982016
        %v764 = vsel %vm763, %v758, %v760
        %v765 = vsel %vm763, %v760, %v762
        %768 = vst [vmem:[#allocation3 + $0x80] sm:$0xff] %v764
        %769 = vst [vmem:[#allocation3 + $0x88] sm:$0xff] %v765
        %v770 = vld [vmem:[#allocation2] sm:$0xff]
        %v771 = vld [vmem:[#allocation2 + $0x8] sm:$0xff]
        %v772 = vld [vmem:[#allocation2 + $0x10] sm:$0xff]
        %v773 = vld [vmem:[#allocation9] sm:$0x11]
        %v775 = vunpack.c.l.b16 %v773
        %v776 = vunpack.c.h.b16 %v773
        %v777 = vpack.c.b16 %v775, %v775
        %v778 = vpack.c.b16 %v776, %v776
        %v780 = vpack.i.b16 %v777, %v777
        %v782 = vlaneseq
        %v783 = vshrl.u32 %v782, 7
        %v784 = vsub.s32 0, %v783
        %v785 = vrot.slane %v780, %v784
        %v787 = vpack.i.b16 %v778, %v778
        %v789 = vlaneseq
        %v790 = vshrl.u32 %v789, 7
        %v791 = vsub.s32 0, %v790
        %v792 = vrot.slane %v787, %v791
        %795 = vrot.lane.b32.xlu0 %v785, 16
        %v796 = vpop.permute.xlu0 %795
        %797 = vrot.lane.b32.xlu0 %v792, 16
        %v798 = vpop.permute.xlu0 %797
        %vm799 = vcmask 130048
        %v800 = vsel %vm799, %v796, %v798
        %v804 = vmul.bf16 %v770, %v796
        %v805 = vmul.bf16 %v771, %v800
        %v806 = vmul.bf16 %v772, %v798
        %810 = vrot.lane.b32.xlu0 %v804, 112
        %v811 = vpop.permute.xlu0 %810
        %812 = vrot.lane.b32.xlu0 %v805, 112
        %v813 = vpop.permute.xlu0 %812
        %814 = vrot.lane.b32.xlu0 %v806, 112
        %v815 = vpop.permute.xlu0 %814
        %vm816 = vcmask 916480
        %v817 = vsel %vm816, %v811, %v813
        %v818 = vsel %vm816, %v813, %v815
        %821 = vst [vmem:[#allocation3 + $0x90] sm:$0xff] %v817
        %822 = vst [vmem:[#allocation3 + $0x98] sm:$0xff] %v818
        %v823 = vld [vmem:[#allocation2] sm:$0xff]
        %v824 = vld [vmem:[#allocation2 + $0x8] sm:$0xff]
        %v825 = vld [vmem:[#allocation2 + $0x10] sm:$0xff]
        %v826 = vld [vmem:[#allocation9] sm:$0x11]
        %v828 = vunpack.c.l.b16 %v826
        %v829 = vunpack.c.h.b16 %v826
        %v830 = vpack.c.b16 %v828, %v828
        %v831 = vpack.c.b16 %v829, %v829
        %v833 = vshrl.u32 %v830, 16
        %v834 = vpack.i.b16 %v833, %v833
        %v836 = vlaneseq
        %v837 = vshrl.u32 %v836, 7
        %v838 = vsub.s32 0, %v837
        %v839 = vrot.slane %v834, %v838
        %v841 = vshrl.u32 %v831, 16
        %v842 = vpack.i.b16 %v841, %v841
        %v844 = vlaneseq
        %v845 = vshrl.u32 %v844, 7
        %v846 = vsub.s32 0, %v845
        %v847 = vrot.slane %v842, %v846
        %850 = vrot.lane.b32.xlu0 %v839, 17
        %v851 = vpop.permute.xlu0 %850
        %852 = vrot.lane.b32.xlu0 %v847, 17
        %v853 = vpop.permute.xlu0 %852
        %vm854 = vcmask 138240
        %v855 = vsel %vm854, %v851, %v853
        %v859 = vmul.bf16 %v823, %v851
        %v860 = vmul.bf16 %v824, %v855
        %v861 = vmul.bf16 %v825, %v853
        %865 = vrot.lane.b32.xlu0 %v859, 111
        %v866 = vpop.permute.xlu0 %865
        %867 = vrot.lane.b32.xlu0 %v860, 111
        %v868 = vpop.permute.xlu0 %867
        %869 = vrot.lane.b32.xlu0 %v861, 111
        %v870 = vpop.permute.xlu0 %869
        %vm871 = vcmask 908288
        %v872 = vsel %vm871, %v866, %v868
        %v873 = vsel %vm871, %v868, %v870
        %876 = vst [vmem:[#allocation3 + $0xa0] sm:$0xff] %v872
        %877 = vst [vmem:[#allocation3 + $0xa8] sm:$0xff] %v873
        %v878 = vld [vmem:[#allocation2] sm:$0xff]
        %v879 = vld [vmem:[#allocation2 + $0x8] sm:$0xff]
        %v880 = vld [vmem:[#allocation2 + $0x10] sm:$0xff]
        %v881 = vld [vmem:[#allocation9] sm:$0x22]
        %v883 = vunpack.c.l.b16 %v881
        %v884 = vunpack.c.h.b16 %v881
        %v885 = vpack.c.b16 %v883, %v883
        %v886 = vpack.c.b16 %v884, %v884
        %v888 = vpack.i.b16 %v885, %v885
        %v890 = vlaneseq
        %v891 = vshrl.u32 %v890, 7
        %v892 = vsub.s32 1, %v891
        %v893 = vrot.slane %v888, %v892
        %v895 = vpack.i.b16 %v886, %v886
        %v897 = vlaneseq
        %v898 = vshrl.u32 %v897, 7
        %v899 = vsub.s32 1, %v898
        %v900 = vrot.slane %v895, %v899
        %903 = vrot.lane.b32.xlu0 %v893, 18
        %v904 = vpop.permute.xlu0 %903
        %905 = vrot.lane.b32.xlu0 %v900, 18
        %v906 = vpop.permute.xlu0 %905
        %vm907 = vcmask 146432
        %v908 = vsel %vm907, %v904, %v906
        %v912 = vmul.bf16 %v878, %v904
        %v913 = vmul.bf16 %v879, %v908
        %v914 = vmul.bf16 %v880, %v906
        %918 = vrot.lane.b32.xlu0 %v912, 110
        %v919 = vpop.permute.xlu0 %918
        %920 = vrot.lane.b32.xlu0 %v913, 110
        %v921 = vpop.permute.xlu0 %920
        %922 = vrot.lane.b32.xlu0 %v914, 110
        %v923 = vpop.permute.xlu0 %922
        %vm924 = vcmask 900096
        %v925 = vsel %vm924, %v919, %v921
        %v926 = vsel %vm924, %v921, %v923
        %929 = vst [vmem:[#allocation3 + $0xb0] sm:$0xff] %v925
        %930 = vst [vmem:[#allocation3 + $0xb8] sm:$0xff] %v926
        %v931 = vld [vmem:[#allocation2] sm:$0xff]
        %v932 = vld [vmem:[#allocation2 + $0x8] sm:$0xff]
        %v933 = vld [vmem:[#allocation2 + $0x10] sm:$0xff]
        %v934 = vld [vmem:[#allocation9] sm:$0x22]
        %v936 = vunpack.c.l.b16 %v934
        %v937 = vunpack.c.h.b16 %v934
        %v938 = vpack.c.b16 %v936, %v936
        %v939 = vpack.c.b16 %v937, %v937
        %v941 = vshrl.u32 %v938, 16
        %v942 = vpack.i.b16 %v941, %v941
        %v944 = vlaneseq
        %v945 = vshrl.u32 %v944, 7
        %v946 = vsub.s32 1, %v945
        %v947 = vrot.slane %v942, %v946
        %v949 = vshrl.u32 %v939, 16
        %v950 = vpack.i.b16 %v949, %v949
        %v952 = vlaneseq
        %v953 = vshrl.u32 %v952, 7
        %v954 = vsub.s32 1, %v953
        %v955 = vrot.slane %v950, %v954
        %958 = vrot.lane.b32.xlu0 %v947, 19
        %v959 = vpop.permute.xlu0 %958
        %960 = vrot.lane.b32.xlu0 %v955, 19
        %v961 = vpop.permute.xlu0 %960
        %vm962 = vcmask 154624
        %v963 = vsel %vm962, %v959, %v961
        %v967 = vmul.bf16 %v931, %v959
        %v968 = vmul.bf16 %v932, %v963
        %v969 = vmul.bf16 %v933, %v961
        %973 = vrot.lane.b32.xlu0 %v967, 109
        %v974 = vpop.permute.xlu0 %973
        %975 = vrot.lane.b32.xlu0 %v968, 109
        %v976 = vpop.permute.xlu0 %975
        %977 = vrot.lane.b32.xlu0 %v969, 109
        %v978 = vpop.permute.xlu0 %977
        %vm979 = vcmask 891904
        %v980 = vsel %vm979, %v974, %v976
        %v981 = vsel %vm979, %v976, %v978
        %984 = vst [vmem:[#allocation3 + $0xc0] sm:$0xff] %v980
        %985 = vst [vmem:[#allocation3 + $0xc8] sm:$0xff] %v981
        %v986 = vld [vmem:[#allocation2] sm:$0xff]
        %v987 = vld [vmem:[#allocation2 + $0x8] sm:$0xff]
        %v988 = vld [vmem:[#allocation2 + $0x10] sm:$0xff]
        %v989 = vld [vmem:[#allocation9] sm:$0x44]
        %v991 = vunpack.c.l.b16 %v989
        %v992 = vunpack.c.h.b16 %v989
        %v993 = vpack.c.b16 %v991, %v991
        %v994 = vpack.c.b16 %v992, %v992
        %v996 = vpack.i.b16 %v993, %v993
        %v998 = vlaneseq
        %v999 = vshrl.u32 %v998, 7
        %v1000 = vsub.s32 2, %v999
        %v1001 = vrot.slane %v996, %v1000
        %v1003 = vpack.i.b16 %v994, %v994
        %v1005 = vlaneseq
        %v1006 = vshrl.u32 %v1005, 7
        %v1007 = vsub.s32 2, %v1006
        %v1008 = vrot.slane %v1003, %v1007
        %1011 = vrot.lane.b32.xlu0 %v1001, 20
        %v1012 = vpop.permute.xlu0 %1011
        %1013 = vrot.lane.b32.xlu0 %v1008, 20
        %v1014 = vpop.permute.xlu0 %1013
        %vm1015 = vcmask 162816
        %v1016 = vsel %vm1015, %v1012, %v1014
        %v1020 = vmul.bf16 %v986, %v1012
        %v1021 = vmul.bf16 %v987, %v1016
        %v1022 = vmul.bf16 %v988, %v1014
        %1026 = vrot.lane.b32.xlu0 %v1020, 108
        %v1027 = vpop.permute.xlu0 %1026
        %1028 = vrot.lane.b32.xlu0 %v1021, 108
        %v1029 = vpop.permute.xlu0 %1028
        %1030 = vrot.lane.b32.xlu0 %v1022, 108
        %v1031 = vpop.permute.xlu0 %1030
        %vm1032 = vcmask 883712
        %v1033 = vsel %vm1032, %v1027, %v1029
        %v1034 = vsel %vm1032, %v1029, %v1031
        %1037 = vst [vmem:[#allocation3 + $0xd0] sm:$0xff] %v1033
        %1038 = vst [vmem:[#allocation3 + $0xd8] sm:$0xff] %v1034
        %v1039 = vld [vmem:[#allocation2] sm:$0xff]
        %v1040 = vld [vmem:[#allocation2 + $0x8] sm:$0xff]
        %v1041 = vld [vmem:[#allocation2 + $0x10] sm:$0xff]
        %v1042 = vld [vmem:[#allocation9] sm:$0x44]
        %v1044 = vunpack.c.l.b16 %v1042
        %v1045 = vunpack.c.h.b16 %v1042
        %v1046 = vpack.c.b16 %v1044, %v1044
        %v1047 = vpack.c.b16 %v1045, %v1045
        %v1049 = vshrl.u32 %v1046, 16
        %v1050 = vpack.i.b16 %v1049, %v1049
        %v1052 = vlaneseq
        %v1053 = vshrl.u32 %v1052, 7
        %v1054 = vsub.s32 2, %v1053
        %v1055 = vrot.slane %v1050, %v1054
        %v1057 = vshrl.u32 %v1047, 16
        %v1058 = vpack.i.b16 %v1057, %v1057
        %v1060 = vlaneseq
        %v1061 = vshrl.u32 %v1060, 7
        %v1062 = vsub.s32 2, %v1061
        %v1063 = vrot.slane %v1058, %v1062
        %1066 = vrot.lane.b32.xlu0 %v1055, 21
        %v1067 = vpop.permute.xlu0 %1066
        %1068 = vrot.lane.b32.xlu0 %v1063, 21
        %v1069 = vpop.permute.xlu0 %1068
        %vm1070 = vcmask 171008
        %v1071 = vsel %vm1070, %v1067, %v1069
        %v1075 = vmul.bf16 %v1039, %v1067
        %v1076 = vmul.bf16 %v1040, %v1071
        %v1077 = vmul.bf16 %v1041, %v1069
        %1081 = vrot.lane.b32.xlu0 %v1075, 107
        %v1082 = vpop.permute.xlu0 %1081
        %1083 = vrot.lane.b32.xlu0 %v1076, 107
        %v1084 = vpop.permute.xlu0 %1083
        %1085 = vrot.lane.b32.xlu0 %v1077, 107
        %v1086 = vpop.permute.xlu0 %1085
        %vm1087 = vcmask 875520
        %v1088 = vsel %vm1087, %v1082, %v1084
        %v1089 = vsel %vm1087, %v1084, %v1086
        %1092 = vst [vmem:[#allocation3 + $0xe0] sm:$0xff] %v1088
        %1093 = vst [vmem:[#allocation3 + $0xe8] sm:$0xff] %v1089
        %v1094 = vld [vmem:[#allocation2] sm:$0xff]
        %v1095 = vld [vmem:[#allocation2 + $0x8] sm:$0xff]
        %v1096 = vld [vmem:[#allocation2 + $0x10] sm:$0xff]
        %v1097 = vld [vmem:[#allocation9] sm:$0x88]
        %v1099 = vunpack.c.l.b16 %v1097
        %v1100 = vunpack.c.h.b16 %v1097
        %v1101 = vpack.c.b16 %v1099, %v1099
        %v1102 = vpack.c.b16 %v1100, %v1100
        %v1104 = vpack.i.b16 %v1101, %v1101
        %v1106 = vlaneseq
        %v1107 = vshrl.u32 %v1106, 7
        %v1108 = vsub.s32 3, %v1107
        %v1109 = vrot.slane %v1104, %v1108
        %v1111 = vpack.i.b16 %v1102, %v1102
        %v1113 = vlaneseq
        %v1114 = vshrl.u32 %v1113, 7
        %v1115 = vsub.s32 3, %v1114
        %v1116 = vrot.slane %v1111, %v1115
        %1119 = vrot.lane.b32.xlu0 %v1109, 22
        %v1120 = vpop.permute.xlu0 %1119
        %1121 = vrot.lane.b32.xlu0 %v1116, 22
        %v1122 = vpop.permute.xlu0 %1121
        %vm1123 = vcmask 179200
        %v1124 = vsel %vm1123, %v1120, %v1122
        %v1128 = vmul.bf16 %v1094, %v1120
        %v1129 = vmul.bf16 %v1095, %v1124
        %v1130 = vmul.bf16 %v1096, %v1122
        %1134 = vrot.lane.b32.xlu0 %v1128, 106
        %v1135 = vpop.permute.xlu0 %1134
        %1136 = vrot.lane.b32.xlu0 %v1129, 106
        %v1137 = vpop.permute.xlu0 %1136
        %1138 = vrot.lane.b32.xlu0 %v1130, 106
        %v1139 = vpop.permute.xlu0 %1138
        %vm1140 = vcmask 867328
        %v1141 = vsel %vm1140, %v1135, %v1137
        %v1142 = vsel %vm1140, %v1137, %v1139
        %1145 = vst [vmem:[#allocation3 + $0xf0] sm:$0xff] %v1141
        %1146 = vst [vmem:[#allocation3 + $0xf8] sm:$0xff] %v1142
        %v1147 = vld [vmem:[#allocation2] sm:$0xff]
        %v1148 = vld [vmem:[#allocation2 + $0x8] sm:$0xff]
        %v1149 = vld [vmem:[#allocation2 + $0x10] sm:$0xff]
        %v1150 = vld [vmem:[#allocation9] sm:$0x88]
        %v1152 = vunpack.c.l.b16 %v1150
        %v1153 = vunpack.c.h.b16 %v1150
        %v1154 = vpack.c.b16 %v1152, %v1152
        %v1155 = vpack.c.b16 %v1153, %v1153
        %v1157 = vshrl.u32 %v1154, 16
        %v1158 = vpack.i.b16 %v1157, %v1157
        %v1160 = vlaneseq
        %v1161 = vshrl.u32 %v1160, 7
        %v1162 = vsub.s32 3, %v1161
        %v1163 = vrot.slane %v1158, %v1162
        %v1165 = vshrl.u32 %v1155, 16
        %v1166 = vpack.i.b16 %v1165, %v1165
        %v1168 = vlaneseq
        %v1169 = vshrl.u32 %v1168, 7
        %v1170 = vsub.s32 3, %v1169
        %v1171 = vrot.slane %v1166, %v1170
        %1174 = vrot.lane.b32.xlu0 %v1163, 23
        %v1175 = vpop.permute.xlu0 %1174
        %1176 = vrot.lane.b32.xlu0 %v1171, 23
        %v1177 = vpop.permute.xlu0 %1176
        %vm1178 = vcmask 187392
        %v1179 = vsel %vm1178, %v1175, %v1177
        %v1183 = vmul.bf16 %v1147, %v1175
        %v1184 = vmul.bf16 %v1148, %v1179
        %v1185 = vmul.bf16 %v1149, %v1177
        %1189 = vrot.lane.b32.xlu0 %v1183, 105
        %v1190 = vpop.permute.xlu0 %1189
        %1191 = vrot.lane.b32.xlu0 %v1184, 105
        %v1192 = vpop.permute.xlu0 %1191
        %1193 = vrot.lane.b32.xlu0 %v1185, 105
        %v1194 = vpop.permute.xlu0 %1193
        %vm1195 = vcmask 859136
        %v1196 = vsel %vm1195, %v1190, %v1192
        %v1197 = vsel %vm1195, %v1192, %v1194
        %1200 = vst [vmem:[#allocation3 + $0x100] sm:$0xff] %v1196
        %1201 = vst [vmem:[#allocation3 + $0x108] sm:$0xff] %v1197
        %v1202 = vld [vmem:[#allocation2] sm:$0xff]
        %v1203 = vld [vmem:[#allocation2 + $0x8] sm:$0xff]
        %v1204 = vld [vmem:[#allocation2 + $0x10] sm:$0xff]
        %v1205 = vld [vmem:[#allocation9 + $0x8] sm:$0x11]
        %v1207 = vunpack.c.l.b16 %v1205
        %v1208 = vunpack.c.h.b16 %v1205
        %v1209 = vpack.c.b16 %v1207, %v1207
        %v1210 = vpack.c.b16 %v1208, %v1208
        %v1212 = vpack.i.b16 %v1209, %v1209
        %v1214 = vlaneseq
        %v1215 = vshrl.u32 %v1214, 7
        %v1216 = vsub.s32 0, %v1215
        %v1217 = vrot.slane %v1212, %v1216
        %v1219 = vpack.i.b16 %v1210, %v1210
        %v1221 = vlaneseq
        %v1222 = vshrl.u32 %v1221, 7
        %v1223 = vsub.s32 0, %v1222
        %v1224 = vrot.slane %v1219, %v1223
        %1227 = vrot.lane.b32.xlu0 %v1217, 24
        %v1228 = vpop.permute.xlu0 %1227
        %1229 = vrot.lane.b32.xlu0 %v1224, 24
        %v1230 = vpop.permute.xlu0 %1229
        %vm1231 = vcmask 195584
        %v1232 = vsel %vm1231, %v1228, %v1230
        %v1236 = vmul.bf16 %v1202, %v1228
        %v1237 = vmul.bf16 %v1203, %v1232
        %v1238 = vmul.bf16 %v1204, %v1230
        %1242 = vrot.lane.b32.xlu0 %v1236, 104
        %v1243 = vpop.permute.xlu0 %1242
        %1244 = vrot.lane.b32.xlu0 %v1237, 104
        %v1245 = vpop.permute.xlu0 %1244
        %1246 = vrot.lane.b32.xlu0 %v1238, 104
        %v1247 = vpop.permute.xlu0 %1246
        %vm1248 = vcmask 850944
        %v1249 = vsel %vm1248, %v1243, %v1245
        %v1250 = vsel %vm1248, %v1245, %v1247
        %1253 = vst [vmem:[#allocation3 + $0x110] sm:$0xff] %v1249
        %1254 = vst [vmem:[#allocation3 + $0x118] sm:$0xff] %v1250
        %v1255 = vld [vmem:[#allocation2] sm:$0xff]
        %v1256 = vld [vmem:[#allocation2 + $0x8] sm:$0xff]
        %v1257 = vld [vmem:[#allocation2 + $0x10] sm:$0xff]
        %v1258 = vld [vmem:[#allocation9] sm:$0x11]
        %v1260 = vunpack.c.l.b16 %v1258
        %v1261 = vunpack.c.h.b16 %v1258
        %v1262 = vpack.c.b16 %v1260, %v1260
        %v1263 = vpack.c.b16 %v1261, %v1261
        %v1265 = vpack.i.b16 %v1262, %v1262
        %v1267 = vlaneseq
        %v1268 = vshrl.u32 %v1267, 7
        %v1269 = vsub.s32 0, %v1268
        %v1270 = vrot.slane %v1265, %v1269
        %v1272 = vpack.i.b16 %v1263, %v1263
        %v1274 = vlaneseq
        %v1275 = vshrl.u32 %v1274, 7
        %v1276 = vsub.s32 0, %v1275
        %v1277 = vrot.slane %v1272, %v1276
        %1280 = vrot.lane.b32.xlu0 %v1270, 32
        %v1281 = vpop.permute.xlu0 %1280
        %1282 = vrot.lane.b32.xlu0 %v1277, 32
        %v1283 = vpop.permute.xlu0 %1282
        %vm1284 = vcmask 261120
        %v1285 = vsel %vm1284, %v1281, %v1283
        %v1289 = vmul.bf16 %v1255, %v1281
        %v1290 = vmul.bf16 %v1256, %v1285
        %v1291 = vmul.bf16 %v1257, %v1283
        %1295 = vrot.lane.b32.xlu0 %v1289, 96
        %v1296 = vpop.permute.xlu0 %1295
        %1297 = vrot.lane.b32.xlu0 %v1290, 96
        %v1298 = vpop.permute.xlu0 %1297
        %1299 = vrot.lane.b32.xlu0 %v1291, 96
        %v1300 = vpop.permute.xlu0 %1299
        %vm1301 = vcmask 785408
        %v1302 = vsel %vm1301, %v1296, %v1298
        %v1303 = vsel %vm1301, %v1298, %v1300
        %1306 = vst [vmem:[#allocation3 + $0x120] sm:$0xff] %v1302
        %1307 = vst [vmem:[#allocation3 + $0x128] sm:$0xff] %v1303
        %v1308 = vld [vmem:[#allocation2] sm:$0xff]
        %v1309 = vld [vmem:[#allocation2 + $0x8] sm:$0xff]
        %v1310 = vld [vmem:[#allocation2 + $0x10] sm:$0xff]
        %v1311 = vld [vmem:[#allocation9] sm:$0x11]
        %v1313 = vunpack.c.l.b16 %v1311
        %v1314 = vunpack.c.h.b16 %v1311
        %v1315 = vpack.c.b16 %v1313, %v1313
        %v1316 = vpack.c.b16 %v1314, %v1314
        %v1318 = vshrl.u32 %v1315, 16
        %v1319 = vpack.i.b16 %v1318, %v1318
        %v1321 = vlaneseq
        %v1322 = vshrl.u32 %v1321, 7
        %v1323 = vsub.s32 0, %v1322
        %v1324 = vrot.slane %v1319, %v1323
        %v1326 = vshrl.u32 %v1316, 16
        %v1327 = vpack.i.b16 %v1326, %v1326
        %v1329 = vlaneseq
        %v1330 = vshrl.u32 %v1329, 7
        %v1331 = vsub.s32 0, %v1330
        %v1332 = vrot.slane %v1327, %v1331
        %1335 = vrot.lane.b32.xlu0 %v1324, 33
        %v1336 = vpop.permute.xlu0 %1335
        %1337 = vrot.lane.b32.xlu0 %v1332, 33
        %v1338 = vpop.permute.xlu0 %1337
        %vm1339 = vcmask 269312
        %v1340 = vsel %vm1339, %v1336, %v1338
        %v1344 = vmul.bf16 %v1308, %v1336
        %v1345 = vmul.bf16 %v1309, %v1340
        %v1346 = vmul.bf16 %v1310, %v1338
        %1350 = vrot.lane.b32.xlu0 %v1344, 95
        %v1351 = vpop.permute.xlu0 %1350
        %1352 = vrot.lane.b32.xlu0 %v1345, 95
        %v1353 = vpop.permute.xlu0 %1352
        %1354 = vrot.lane.b32.xlu0 %v1346, 95
        %v1355 = vpop.permute.xlu0 %1354
        %vm1356 = vcmask 777216
        %v1357 = vsel %vm1356, %v1351, %v1353
        %v1358 = vsel %vm1356, %v1353, %v1355
        %1361 = vst [vmem:[#allocation3 + $0x130] sm:$0xff] %v1357
        %1362 = vst [vmem:[#allocation3 + $0x138] sm:$0xff] %v1358
        %v1363 = vld [vmem:[#allocation2] sm:$0xff]
        %v1364 = vld [vmem:[#allocation2 + $0x8] sm:$0xff]
        %v1365 = vld [vmem:[#allocation2 + $0x10] sm:$0xff]
        %v1366 = vld [vmem:[#allocation9] sm:$0x22]
        %v1368 = vunpack.c.l.b16 %v1366
        %v1369 = vunpack.c.h.b16 %v1366
        %v1370 = vpack.c.b16 %v1368, %v1368
        %v1371 = vpack.c.b16 %v1369, %v1369
        %v1373 = vpack.i.b16 %v1370, %v1370
        %v1375 = vlaneseq
        %v1376 = vshrl.u32 %v1375, 7
        %v1377 = vsub.s32 1, %v1376
        %v1378 = vrot.slane %v1373, %v1377
        %v1380 = vpack.i.b16 %v1371, %v1371
        %v1382 = vlaneseq
        %v1383 = vshrl.u32 %v1382, 7
        %v1384 = vsub.s32 1, %v1383
        %v1385 = vrot.slane %v1380, %v1384
        %1388 = vrot.lane.b32.xlu0 %v1378, 34
        %v1389 = vpop.permute.xlu0 %1388
        %1390 = vrot.lane.b32.xlu0 %v1385, 34
        %v1391 = vpop.permute.xlu0 %1390
        %vm1392 = vcmask 277504
        %v1393 = vsel %vm1392, %v1389, %v1391
        %v1397 = vmul.bf16 %v1363, %v1389
        %v1398 = vmul.bf16 %v1364, %v1393
        %v1399 = vmul.bf16 %v1365, %v1391
        %1403 = vrot.lane.b32.xlu0 %v1397, 94
        %v1404 = vpop.permute.xlu0 %1403
        %1405 = vrot.lane.b32.xlu0 %v1398, 94
        %v1406 = vpop.permute.xlu0 %1405
        %1407 = vrot.lane.b32.xlu0 %v1399, 94
        %v1408 = vpop.permute.xlu0 %1407
        %vm1409 = vcmask 769024
        %v1410 = vsel %vm1409, %v1404, %v1406
        %v1411 = vsel %vm1409, %v1406, %v1408
        %1414 = vst [vmem:[#allocation3 + $0x140] sm:$0xff] %v1410
        %1415 = vst [vmem:[#allocation3 + $0x148] sm:$0xff] %v1411
        %v1416 = vld [vmem:[#allocation2] sm:$0xff]
        %v1417 = vld [vmem:[#allocation2 + $0x8] sm:$0xff]
        %v1418 = vld [vmem:[#allocation2 + $0x10] sm:$0xff]
        %v1419 = vld [vmem:[#allocation9] sm:$0x22]
        %v1421 = vunpack.c.l.b16 %v1419
        %v1422 = vunpack.c.h.b16 %v1419
        %v1423 = vpack.c.b16 %v1421, %v1421
        %v1424 = vpack.c.b16 %v1422, %v1422
        %v1426 = vshrl.u32 %v1423, 16
        %v1427 = vpack.i.b16 %v1426, %v1426
        %v1429 = vlaneseq
        %v1430 = vshrl.u32 %v1429, 7
        %v1431 = vsub.s32 1, %v1430
        %v1432 = vrot.slane %v1427, %v1431
        %v1434 = vshrl.u32 %v1424, 16
        %v1435 = vpack.i.b16 %v1434, %v1434
        %v1437 = vlaneseq
        %v1438 = vshrl.u32 %v1437, 7
        %v1439 = vsub.s32 1, %v1438
        %v1440 = vrot.slane %v1435, %v1439
        %1443 = vrot.lane.b32.xlu0 %v1432, 35
        %v1444 = vpop.permute.xlu0 %1443
        %1445 = vrot.lane.b32.xlu0 %v1440, 35
        %v1446 = vpop.permute.xlu0 %1445
        %vm1447 = vcmask 285696
        %v1448 = vsel %vm1447, %v1444, %v1446
        %v1452 = vmul.bf16 %v1416, %v1444
        %v1453 = vmul.bf16 %v1417, %v1448
        %v1454 = vmul.bf16 %v1418, %v1446
        %1458 = vrot.lane.b32.xlu0 %v1452, 93
        %v1459 = vpop.permute.xlu0 %1458
        %1460 = vrot.lane.b32.xlu0 %v1453, 93
        %v1461 = vpop.permute.xlu0 %1460
        %1462 = vrot.lane.b32.xlu0 %v1454, 93
        %v1463 = vpop.permute.xlu0 %1462
        %vm1464 = vcmask 760832
        %v1465 = vsel %vm1464, %v1459, %v1461
        %v1466 = vsel %vm1464, %v1461, %v1463
        %1469 = vst [vmem:[#allocation3 + $0x150] sm:$0xff] %v1465
        %1470 = vst [vmem:[#allocation3 + $0x158] sm:$0xff] %v1466
        %v1471 = vld [vmem:[#allocation2] sm:$0xff]
        %v1472 = vld [vmem:[#allocation2 + $0x8] sm:$0xff]
        %v1473 = vld [vmem:[#allocation2 + $0x10] sm:$0xff]
        %v1474 = vld [vmem:[#allocation9] sm:$0x44]
        %v1476 = vunpack.c.l.b16 %v1474
        %v1477 = vunpack.c.h.b16 %v1474
        %v1478 = vpack.c.b16 %v1476, %v1476
        %v1479 = vpack.c.b16 %v1477, %v1477
        %v1481 = vpack.i.b16 %v1478, %v1478
        %v1483 = vlaneseq
        %v1484 = vshrl.u32 %v1483, 7
        %v1485 = vsub.s32 2, %v1484
        %v1486 = vrot.slane %v1481, %v1485
        %v1488 = vpack.i.b16 %v1479, %v1479
        %v1490 = vlaneseq
        %v1491 = vshrl.u32 %v1490, 7
        %v1492 = vsub.s32 2, %v1491
        %v1493 = vrot.slane %v1488, %v1492
        %1496 = vrot.lane.b32.xlu0 %v1486, 36
        %v1497 = vpop.permute.xlu0 %1496
        %1498 = vrot.lane.b32.xlu0 %v1493, 36
        %v1499 = vpop.permute.xlu0 %1498
        %vm1500 = vcmask 293888
        %v1501 = vsel %vm1500, %v1497, %v1499
        %v1505 = vmul.bf16 %v1471, %v1497
        %v1506 = vmul.bf16 %v1472, %v1501
        %v1507 = vmul.bf16 %v1473, %v1499
        %1511 = vrot.lane.b32.xlu0 %v1505, 92
        %v1512 = vpop.permute.xlu0 %1511
        %1513 = vrot.lane.b32.xlu0 %v1506, 92
        %v1514 = vpop.permute.xlu0 %1513
        %1515 = vrot.lane.b32.xlu0 %v1507, 92
        %v1516 = vpop.permute.xlu0 %1515
        %vm1517 = vcmask 752640
        %v1518 = vsel %vm1517, %v1512, %v1514
        %v1519 = vsel %vm1517, %v1514, %v1516
        %1522 = vst [vmem:[#allocation3 + $0x160] sm:$0xff] %v1518
        %1523 = vst [vmem:[#allocation3 + $0x168] sm:$0xff] %v1519
        %v1524 = vld [vmem:[#allocation2] sm:$0xff]
        %v1525 = vld [vmem:[#allocation2 + $0x8] sm:$0xff]
        %v1526 = vld [vmem:[#allocation2 + $0x10] sm:$0xff]
        %v1527 = vld [vmem:[#allocation9] sm:$0x44]
        %v1529 = vunpack.c.l.b16 %v1527
        %v1530 = vunpack.c.h.b16 %v1527
        %v1531 = vpack.c.b16 %v1529, %v1529
        %v1532 = vpack.c.b16 %v1530, %v1530
        %v1534 = vshrl.u32 %v1531, 16
        %v1535 = vpack.i.b16 %v1534, %v1534
        %v1537 = vlaneseq
        %v1538 = vshrl.u32 %v1537, 7
        %v1539 = vsub.s32 2, %v1538
        %v1540 = vrot.slane %v1535, %v1539
        %v1542 = vshrl.u32 %v1532, 16
        %v1543 = vpack.i.b16 %v1542, %v1542
        %v1545 = vlaneseq
        %v1546 = vshrl.u32 %v1545, 7
        %v1547 = vsub.s32 2, %v1546
        %v1548 = vrot.slane %v1543, %v1547
        %1551 = vrot.lane.b32.xlu0 %v1540, 37
        %v1552 = vpop.permute.xlu0 %1551
        %1553 = vrot.lane.b32.xlu0 %v1548, 37
        %v1554 = vpop.permute.xlu0 %1553
        %vm1555 = vcmask 302080
        %v1556 = vsel %vm1555, %v1552, %v1554
        %v1560 = vmul.bf16 %v1524, %v1552
        %v1561 = vmul.bf16 %v1525, %v1556
        %v1562 = vmul.bf16 %v1526, %v1554
        %1566 = vrot.lane.b32.xlu0 %v1560, 91
        %v1567 = vpop.permute.xlu0 %1566
        %1568 = vrot.lane.b32.xlu0 %v1561, 91
        %v1569 = vpop.permute.xlu0 %1568
        %1570 = vrot.lane.b32.xlu0 %v1562, 91
        %v1571 = vpop.permute.xlu0 %1570
        %vm1572 = vcmask 744448
        %v1573 = vsel %vm1572, %v1567, %v1569
        %v1574 = vsel %vm1572, %v1569, %v1571
        %1577 = vst [vmem:[#allocation3 + $0x170] sm:$0xff] %v1573
        %1578 = vst [vmem:[#allocation3 + $0x178] sm:$0xff] %v1574
        %v1579 = vld [vmem:[#allocation2] sm:$0xff]
        %v1580 = vld [vmem:[#allocation2 + $0x8] sm:$0xff]
        %v1581 = vld [vmem:[#allocation2 + $0x10] sm:$0xff]
        %v1582 = vld [vmem:[#allocation9] sm:$0x88]
        %v1584 = vunpack.c.l.b16 %v1582
        %v1585 = vunpack.c.h.b16 %v1582
        %v1586 = vpack.c.b16 %v1584, %v1584
        %v1587 = vpack.c.b16 %v1585, %v1585
        %v1589 = vpack.i.b16 %v1586, %v1586
        %v1591 = vlaneseq
        %v1592 = vshrl.u32 %v1591, 7
        %v1593 = vsub.s32 3, %v1592
        %v1594 = vrot.slane %v1589, %v1593
        %v1596 = vpack.i.b16 %v1587, %v1587
        %v1598 = vlaneseq
        %v1599 = vshrl.u32 %v1598, 7
        %v1600 = vsub.s32 3, %v1599
        %v1601 = vrot.slane %v1596, %v1600
        %1604 = vrot.lane.b32.xlu0 %v1594, 38
        %v1605 = vpop.permute.xlu0 %1604
        %1606 = vrot.lane.b32.xlu0 %v1601, 38
        %v1607 = vpop.permute.xlu0 %1606
        %vm1608 = vcmask 310272
        %v1609 = vsel %vm1608, %v1605, %v1607
        %v1613 = vmul.bf16 %v1579, %v1605
        %v1614 = vmul.bf16 %v1580, %v1609
        %v1615 = vmul.bf16 %v1581, %v1607
        %1619 = vrot.lane.b32.xlu0 %v1613, 90
        %v1620 = vpop.permute.xlu0 %1619
        %1621 = vrot.lane.b32.xlu0 %v1614, 90
        %v1622 = vpop.permute.xlu0 %1621
        %1623 = vrot.lane.b32.xlu0 %v1615, 90
        %v1624 = vpop.permute.xlu0 %1623
        %vm1625 = vcmask 736256
        %v1626 = vsel %vm1625, %v1620, %v1622
        %v1627 = vsel %vm1625, %v1622, %v1624
        %1630 = vst [vmem:[#allocation3 + $0x180] sm:$0xff] %v1626
        %1631 = vst [vmem:[#allocation3 + $0x188] sm:$0xff] %v1627
        %v1632 = vld [vmem:[#allocation2] sm:$0xff]
        %v1633 = vld [vmem:[#allocation2 + $0x8] sm:$0xff]
        %v1634 = vld [vmem:[#allocation2 + $0x10] sm:$0xff]
        %v1635 = vld [vmem:[#allocation9] sm:$0x88]
        %v1637 = vunpack.c.l.b16 %v1635
        %v1638 = vunpack.c.h.b16 %v1635
        %v1639 = vpack.c.b16 %v1637, %v1637
        %v1640 = vpack.c.b16 %v1638, %v1638
        %v1642 = vshrl.u32 %v1639, 16
        %v1643 = vpack.i.b16 %v1642, %v1642
        %v1645 = vlaneseq
        %v1646 = vshrl.u32 %v1645, 7
        %v1647 = vsub.s32 3, %v1646
        %v1648 = vrot.slane %v1643, %v1647
        %v1650 = vshrl.u32 %v1640, 16
        %v1651 = vpack.i.b16 %v1650, %v1650
        %v1653 = vlaneseq
        %v1654 = vshrl.u32 %v1653, 7
        %v1655 = vsub.s32 3, %v1654
        %v1656 = vrot.slane %v1651, %v1655
        %1659 = vrot.lane.b32.xlu0 %v1648, 39
        %v1660 = vpop.permute.xlu0 %1659
        %1661 = vrot.lane.b32.xlu0 %v1656, 39
        %v1662 = vpop.permute.xlu0 %1661
        %vm1663 = vcmask 318464
        %v1664 = vsel %vm1663, %v1660, %v1662
        %v1668 = vmul.bf16 %v1632, %v1660
        %v1669 = vmul.bf16 %v1633, %v1664
        %v1670 = vmul.bf16 %v1634, %v1662
        %1674 = vrot.lane.b32.xlu0 %v1668, 89
        %v1675 = vpop.permute.xlu0 %1674
        %1676 = vrot.lane.b32.xlu0 %v1669, 89
        %v1677 = vpop.permute.xlu0 %1676
        %1678 = vrot.lane.b32.xlu0 %v1670, 89
        %v1679 = vpop.permute.xlu0 %1678
        %vm1680 = vcmask 728064
        %v1681 = vsel %vm1680, %v1675, %v1677
        %v1682 = vsel %vm1680, %v1677, %v1679
        %1685 = vst [vmem:[#allocation3 + $0x190] sm:$0xff] %v1681
        %1686 = vst [vmem:[#allocation3 + $0x198] sm:$0xff] %v1682
        %v1687 = vld [vmem:[#allocation2] sm:$0xff]
        %v1688 = vld [vmem:[#allocation2 + $0x8] sm:$0xff]
        %v1689 = vld [vmem:[#allocation2 + $0x10] sm:$0xff]
        %v1690 = vld [vmem:[#allocation9 + $0x8] sm:$0x11]
        %v1692 = vunpack.c.l.b16 %v1690
        %v1693 = vunpack.c.h.b16 %v1690
        %v1694 = vpack.c.b16 %v1692, %v1692
        %v1695 = vpack.c.b16 %v1693, %v1693
        %v1697 = vpack.i.b16 %v1694, %v1694
        %v1699 = vlaneseq
        %v1700 = vshrl.u32 %v1699, 7
        %v1701 = vsub.s32 0, %v1700
        %v1702 = vrot.slane %v1697, %v1701
        %v1704 = vpack.i.b16 %v1695, %v1695
        %v1706 = vlaneseq
        %v1707 = vshrl.u32 %v1706, 7
        %v1708 = vsub.s32 0, %v1707
        %v1709 = vrot.slane %v1704, %v1708
        %1712 = vrot.lane.b32.xlu0 %v1702, 40
        %v1713 = vpop.permute.xlu0 %1712
        %1714 = vrot.lane.b32.xlu0 %v1709, 40
        %v1715 = vpop.permute.xlu0 %1714
        %vm1716 = vcmask 326656
        %v1717 = vsel %vm1716, %v1713, %v1715
        %v1721 = vmul.bf16 %v1687, %v1713
        %v1722 = vmul.bf16 %v1688, %v1717
        %v1723 = vmul.bf16 %v1689, %v1715
        %1727 = vrot.lane.b32.xlu0 %v1721, 88
        %v1728 = vpop.permute.xlu0 %1727
        %1729 = vrot.lane.b32.xlu0 %v1722, 88
        %v1730 = vpop.permute.xlu0 %1729
        %1731 = vrot.lane.b32.xlu0 %v1723, 88
        %v1732 = vpop.permute.xlu0 %1731
        %vm1733 = vcmask 719872
        %v1734 = vsel %vm1733, %v1728, %v1730
        %v1735 = vsel %vm1733, %v1730, %v1732
        %1738 = vst [vmem:[#allocation3 + $0x1a0] sm:$0xff] %v1734
        %1739 = vst [vmem:[#allocation3 + $0x1a8] sm:$0xff] %v1735
        %v1740 = vld [vmem:[#allocation2] sm:$0xff]
        %v1741 = vld [vmem:[#allocation2 + $0x8] sm:$0xff]
        %v1742 = vld [vmem:[#allocation2 + $0x10] sm:$0xff]
        %v1743 = vld [vmem:[#allocation9] sm:$0x11]
        %v1745 = vunpack.c.l.b16 %v1743
        %v1746 = vunpack.c.h.b16 %v1743
        %v1747 = vpack.c.b16 %v1745, %v1745
        %v1748 = vpack.c.b16 %v1746, %v1746
        %v1750 = vpack.i.b16 %v1747, %v1747
        %v1752 = vlaneseq
        %v1753 = vshrl.u32 %v1752, 7
        %v1754 = vsub.s32 0, %v1753
        %v1755 = vrot.slane %v1750, %v1754
        %v1757 = vpack.i.b16 %v1748, %v1748
        %v1759 = vlaneseq
        %v1760 = vshrl.u32 %v1759, 7
        %v1761 = vsub.s32 0, %v1760
        %v1762 = vrot.slane %v1757, %v1761
        %1765 = vrot.lane.b32.xlu0 %v1755, 48
        %v1766 = vpop.permute.xlu0 %1765
        %1767 = vrot.lane.b32.xlu0 %v1762, 48
        %v1768 = vpop.permute.xlu0 %1767
        %vm1769 = vcmask 392192
        %v1770 = vsel %vm1769, %v1766, %v1768
        %v1774 = vmul.bf16 %v1740, %v1766
        %v1775 = vmul.bf16 %v1741, %v1770
        %v1776 = vmul.bf16 %v1742, %v1768
        %1780 = vrot.lane.b32.xlu0 %v1774, 80
        %v1781 = vpop.permute.xlu0 %1780
        %1782 = vrot.lane.b32.xlu0 %v1775, 80
        %v1783 = vpop.permute.xlu0 %1782
        %1784 = vrot.lane.b32.xlu0 %v1776, 80
        %v1785 = vpop.permute.xlu0 %1784
        %vm1786 = vcmask 654336
        %v1787 = vsel %vm1786, %v1781, %v1783
        %v1788 = vsel %vm1786, %v1783, %v1785
        %1791 = vst [vmem:[#allocation3 + $0x1b0] sm:$0xff] %v1787
        %1792 = vst [vmem:[#allocation3 + $0x1b8] sm:$0xff] %v1788
        %v1793 = vld [vmem:[#allocation2] sm:$0xff]
        %v1794 = vld [vmem:[#allocation2 + $0x8] sm:$0xff]
        %v1795 = vld [vmem:[#allocation2 + $0x10] sm:$0xff]
        %v1796 = vld [vmem:[#allocation9] sm:$0x11]
        %v1798 = vunpack.c.l.b16 %v1796
        %v1799 = vunpack.c.h.b16 %v1796
        %v1800 = vpack.c.b16 %v1798, %v1798
        %v1801 = vpack.c.b16 %v1799, %v1799
        %v1803 = vshrl.u32 %v1800, 16
        %v1804 = vpack.i.b16 %v1803, %v1803
        %v1806 = vlaneseq
        %v1807 = vshrl.u32 %v1806, 7
        %v1808 = vsub.s32 0, %v1807
        %v1809 = vrot.slane %v1804, %v1808
        %v1811 = vshrl.u32 %v1801, 16
        %v1812 = vpack.i.b16 %v1811, %v1811
        %v1814 = vlaneseq
        %v1815 = vshrl.u32 %v1814, 7
        %v1816 = vsub.s32 0, %v1815
        %v1817 = vrot.slane %v1812, %v1816
        %1820 = vrot.lane.b32.xlu0 %v1809, 49
        %v1821 = vpop.permute.xlu0 %1820
        %1822 = vrot.lane.b32.xlu0 %v1817, 49
        %v1823 = vpop.permute.xlu0 %1822
        %vm1824 = vcmask 400384
        %v1825 = vsel %vm1824, %v1821, %v1823
        %v1829 = vmul.bf16 %v1793, %v1821
        %v1830 = vmul.bf16 %v1794, %v1825
        %v1831 = vmul.bf16 %v1795, %v1823
        %1835 = vrot.lane.b32.xlu0 %v1829, 79
        %v1836 = vpop.permute.xlu0 %1835
        %1837 = vrot.lane.b32.xlu0 %v1830, 79
        %v1838 = vpop.permute.xlu0 %1837
        %1839 = vrot.lane.b32.xlu0 %v1831, 79
        %v1840 = vpop.permute.xlu0 %1839
        %vm1841 = vcmask 646144
        %v1842 = vsel %vm1841, %v1836, %v1838
        %v1843 = vsel %vm1841, %v1838, %v1840
        %1846 = vst [vmem:[#allocation3 + $0x1c0] sm:$0xff] %v1842
        %1847 = vst [vmem:[#allocation3 + $0x1c8] sm:$0xff] %v1843
        %v1848 = vld [vmem:[#allocation2] sm:$0xff]
        %v1849 = vld [vmem:[#allocation2 + $0x8] sm:$0xff]
        %v1850 = vld [vmem:[#allocation2 + $0x10] sm:$0xff]
        %v1851 = vld [vmem:[#allocation9] sm:$0x22]
        %v1853 = vunpack.c.l.b16 %v1851
        %v1854 = vunpack.c.h.b16 %v1851
        %v1855 = vpack.c.b16 %v1853, %v1853
        %v1856 = vpack.c.b16 %v1854, %v1854
        %v1858 = vpack.i.b16 %v1855, %v1855
        %v1860 = vlaneseq
        %v1861 = vshrl.u32 %v1860, 7
        %v1862 = vsub.s32 1, %v1861
        %v1863 = vrot.slane %v1858, %v1862
        %v1865 = vpack.i.b16 %v1856, %v1856
        %v1867 = vlaneseq
        %v1868 = vshrl.u32 %v1867, 7
        %v1869 = vsub.s32 1, %v1868
        %v1870 = vrot.slane %v1865, %v1869
        %1873 = vrot.lane.b32.xlu0 %v1863, 50
        %v1874 = vpop.permute.xlu0 %1873
        %1875 = vrot.lane.b32.xlu0 %v1870, 50
        %v1876 = vpop.permute.xlu0 %1875
        %vm1877 = vcmask 408576
        %v1878 = vsel %vm1877, %v1874, %v1876
        %v1882 = vmul.bf16 %v1848, %v1874
        %v1883 = vmul.bf16 %v1849, %v1878
        %v1884 = vmul.bf16 %v1850, %v1876
        %1888 = vrot.lane.b32.xlu0 %v1882, 78
        %v1889 = vpop.permute.xlu0 %1888
        %1890 = vrot.lane.b32.xlu0 %v1883, 78
        %v1891 = vpop.permute.xlu0 %1890
        %1892 = vrot.lane.b32.xlu0 %v1884, 78
        %v1893 = vpop.permute.xlu0 %1892
        %vm1894 = vcmask 637952
        %v1895 = vsel %vm1894, %v1889, %v1891
        %v1896 = vsel %vm1894, %v1891, %v1893
        %1899 = vst [vmem:[#allocation3 + $0x1d0] sm:$0xff] %v1895
        %1900 = vst [vmem:[#allocation3 + $0x1d8] sm:$0xff] %v1896
        %v1901 = vld [vmem:[#allocation2] sm:$0xff]
        %v1902 = vld [vmem:[#allocation2 + $0x8] sm:$0xff]
        %v1903 = vld [vmem:[#allocation2 + $0x10] sm:$0xff]
        %v1904 = vld [vmem:[#allocation9] sm:$0x22]
        %v1906 = vunpack.c.l.b16 %v1904
        %v1907 = vunpack.c.h.b16 %v1904
        %v1908 = vpack.c.b16 %v1906, %v1906
        %v1909 = vpack.c.b16 %v1907, %v1907
        %v1911 = vshrl.u32 %v1908, 16
        %v1912 = vpack.i.b16 %v1911, %v1911
        %v1914 = vlaneseq
        %v1915 = vshrl.u32 %v1914, 7
        %v1916 = vsub.s32 1, %v1915
        %v1917 = vrot.slane %v1912, %v1916
        %v1919 = vshrl.u32 %v1909, 16
        %v1920 = vpack.i.b16 %v1919, %v1919
        %v1922 = vlaneseq
        %v1923 = vshrl.u32 %v1922, 7
        %v1924 = vsub.s32 1, %v1923
        %v1925 = vrot.slane %v1920, %v1924
        %1928 = vrot.lane.b32.xlu0 %v1917, 51
        %v1929 = vpop.permute.xlu0 %1928
        %1930 = vrot.lane.b32.xlu0 %v1925, 51
        %v1931 = vpop.permute.xlu0 %1930
        %vm1932 = vcmask 416768
        %v1933 = vsel %vm1932, %v1929, %v1931
        %v1937 = vmul.bf16 %v1901, %v1929
        %v1938 = vmul.bf16 %v1902, %v1933
        %v1939 = vmul.bf16 %v1903, %v1931
        %1943 = vrot.lane.b32.xlu0 %v1937, 77
        %v1944 = vpop.permute.xlu0 %1943
        %1945 = vrot.lane.b32.xlu0 %v1938, 77
        %v1946 = vpop.permute.xlu0 %1945
        %1947 = vrot.lane.b32.xlu0 %v1939, 77
        %v1948 = vpop.permute.xlu0 %1947
        %vm1949 = vcmask 629760
        %v1950 = vsel %vm1949, %v1944, %v1946
        %v1951 = vsel %vm1949, %v1946, %v1948
        %1954 = vst [vmem:[#allocation3 + $0x1e0] sm:$0xff] %v1950
        %1955 = vst [vmem:[#allocation3 + $0x1e8] sm:$0xff] %v1951
        %v1956 = vld [vmem:[#allocation2] sm:$0xff]
        %v1957 = vld [vmem:[#allocation2 + $0x8] sm:$0xff]
        %v1958 = vld [vmem:[#allocation2 + $0x10] sm:$0xff]
        %v1959 = vld [vmem:[#allocation9] sm:$0x44]
        %v1961 = vunpack.c.l.b16 %v1959
        %v1962 = vunpack.c.h.b16 %v1959
        %v1963 = vpack.c.b16 %v1961, %v1961
        %v1964 = vpack.c.b16 %v1962, %v1962
        %v1966 = vpack.i.b16 %v1963, %v1963
        %v1968 = vlaneseq
        %v1969 = vshrl.u32 %v1968, 7
        %v1970 = vsub.s32 2, %v1969
        %v1971 = vrot.slane %v1966, %v1970
        %v1973 = vpack.i.b16 %v1964, %v1964
        %v1975 = vlaneseq
        %v1976 = vshrl.u32 %v1975, 7
        %v1977 = vsub.s32 2, %v1976
        %v1978 = vrot.slane %v1973, %v1977
        %1981 = vrot.lane.b32.xlu0 %v1971, 52
        %v1982 = vpop.permute.xlu0 %1981
        %1983 = vrot.lane.b32.xlu0 %v1978, 52
        %v1984 = vpop.permute.xlu0 %1983
        %vm1985 = vcmask 424960
        %v1986 = vsel %vm1985, %v1982, %v1984
        %v1990 = vmul.bf16 %v1956, %v1982
        %v1991 = vmul.bf16 %v1957, %v1986
        %v1992 = vmul.bf16 %v1958, %v1984
        %1996 = vrot.lane.b32.xlu0 %v1990, 76
        %v1997 = vpop.permute.xlu0 %1996
        %1998 = vrot.lane.b32.xlu0 %v1991, 76
        %v1999 = vpop.permute.xlu0 %1998
        %2000 = vrot.lane.b32.xlu0 %v1992, 76
        %v2001 = vpop.permute.xlu0 %2000
        %vm2002 = vcmask 621568
        %v2003 = vsel %vm2002, %v1997, %v1999
        %v2004 = vsel %vm2002, %v1999, %v2001
        %2007 = vst [vmem:[#allocation3 + $0x1f0] sm:$0xff] %v2003
        %2008 = vst [vmem:[#allocation3 + $0x1f8] sm:$0xff] %v2004
        %v2009 = vld [vmem:[#allocation2] sm:$0xff]
        %v2010 = vld [vmem:[#allocation2 + $0x8] sm:$0xff]
        %v2011 = vld [vmem:[#allocation2 + $0x10] sm:$0xff]
        %v2012 = vld [vmem:[#allocation9] sm:$0x44]
        %v2014 = vunpack.c.l.b16 %v2012
        %v2015 = vunpack.c.h.b16 %v2012
        %v2016 = vpack.c.b16 %v2014, %v2014
        %v2017 = vpack.c.b16 %v2015, %v2015
        %v2019 = vshrl.u32 %v2016, 16
        %v2020 = vpack.i.b16 %v2019, %v2019
        %v2022 = vlaneseq
        %v2023 = vshrl.u32 %v2022, 7
        %v2024 = vsub.s32 2, %v2023
        %v2025 = vrot.slane %v2020, %v2024
        %v2027 = vshrl.u32 %v2017, 16
        %v2028 = vpack.i.b16 %v2027, %v2027
        %v2030 = vlaneseq
        %v2031 = vshrl.u32 %v2030, 7
        %v2032 = vsub.s32 2, %v2031
        %v2033 = vrot.slane %v2028, %v2032
        %2036 = vrot.lane.b32.xlu0 %v2025, 53
        %v2037 = vpop.permute.xlu0 %2036
        %2038 = vrot.lane.b32.xlu0 %v2033, 53
        %v2039 = vpop.permute.xlu0 %2038
        %vm2040 = vcmask 433152
        %v2041 = vsel %vm2040, %v2037, %v2039
        %v2045 = vmul.bf16 %v2009, %v2037
        %v2046 = vmul.bf16 %v2010, %v2041
        %v2047 = vmul.bf16 %v2011, %v2039
        %2051 = vrot.lane.b32.xlu0 %v2045, 75
        %v2052 = vpop.permute.xlu0 %2051
        %2053 = vrot.lane.b32.xlu0 %v2046, 75
        %v2054 = vpop.permute.xlu0 %2053
        %2055 = vrot.lane.b32.xlu0 %v2047, 75
        %v2056 = vpop.permute.xlu0 %2055
        %vm2057 = vcmask 613376
        %v2058 = vsel %vm2057, %v2052, %v2054
        %v2059 = vsel %vm2057, %v2054, %v2056
        %2062 = vst [vmem:[#allocation3 + $0x200] sm:$0xff] %v2058
        %2063 = vst [vmem:[#allocation3 + $0x208] sm:$0xff] %v2059
        %v2064 = vld [vmem:[#allocation2] sm:$0xff]
        %v2065 = vld [vmem:[#allocation2 + $0x8] sm:$0xff]
        %v2066 = vld [vmem:[#allocation2 + $0x10] sm:$0xff]
        %v2067 = vld [vmem:[#allocation9] sm:$0x88]
        %v2069 = vunpack.c.l.b16 %v2067
        %v2070 = vunpack.c.h.b16 %v2067
        %v2071 = vpack.c.b16 %v2069, %v2069
        %v2072 = vpack.c.b16 %v2070, %v2070
        %v2074 = vpack.i.b16 %v2071, %v2071
        %v2076 = vlaneseq
        %v2077 = vshrl.u32 %v2076, 7
        %v2078 = vsub.s32 3, %v2077
        %v2079 = vrot.slane %v2074, %v2078
        %v2081 = vpack.i.b16 %v2072, %v2072
        %v2083 = vlaneseq
        %v2084 = vshrl.u32 %v2083, 7
        %v2085 = vsub.s32 3, %v2084
        %v2086 = vrot.slane %v2081, %v2085
        %2089 = vrot.lane.b32.xlu0 %v2079, 54
        %v2090 = vpop.permute.xlu0 %2089
        %2091 = vrot.lane.b32.xlu0 %v2086, 54
        %v2092 = vpop.permute.xlu0 %2091
        %vm2093 = vcmask 441344
        %v2094 = vsel %vm2093, %v2090, %v2092
        %v2098 = vmul.bf16 %v2064, %v2090
        %v2099 = vmul.bf16 %v2065, %v2094
        %v2100 = vmul.bf16 %v2066, %v2092
        %2104 = vrot.lane.b32.xlu0 %v2098, 74
        %v2105 = vpop.permute.xlu0 %2104
        %2106 = vrot.lane.b32.xlu0 %v2099, 74
        %v2107 = vpop.permute.xlu0 %2106
        %2108 = vrot.lane.b32.xlu0 %v2100, 74
        %v2109 = vpop.permute.xlu0 %2108
        %vm2110 = vcmask 605184
        %v2111 = vsel %vm2110, %v2105, %v2107
        %v2112 = vsel %vm2110, %v2107, %v2109
        %2115 = vst [vmem:[#allocation3 + $0x210] sm:$0xff] %v2111
        %2116 = vst [vmem:[#allocation3 + $0x218] sm:$0xff] %v2112
        %v2117 = vld [vmem:[#allocation2] sm:$0xff]
        %v2118 = vld [vmem:[#allocation2 + $0x8] sm:$0xff]
        %v2119 = vld [vmem:[#allocation2 + $0x10] sm:$0xff]
        %v2120 = vld [vmem:[#allocation9] sm:$0x88]
        %v2122 = vunpack.c.l.b16 %v2120
        %v2123 = vunpack.c.h.b16 %v2120
        %v2124 = vpack.c.b16 %v2122, %v2122
        %v2125 = vpack.c.b16 %v2123, %v2123
        %v2127 = vshrl.u32 %v2124, 16
        %v2128 = vpack.i.b16 %v2127, %v2127
        %v2130 = vlaneseq
        %v2131 = vshrl.u32 %v2130, 7
        %v2132 = vsub.s32 3, %v2131
        %v2133 = vrot.slane %v2128, %v2132
        %v2135 = vshrl.u32 %v2125, 16
        %v2136 = vpack.i.b16 %v2135, %v2135
        %v2138 = vlaneseq
        %v2139 = vshrl.u32 %v2138, 7
        %v2140 = vsub.s32 3, %v2139
        %v2141 = vrot.slane %v2136, %v2140
        %2144 = vrot.lane.b32.xlu0 %v2133, 55
        %v2145 = vpop.permute.xlu0 %2144
        %2146 = vrot.lane.b32.xlu0 %v2141, 55
        %v2147 = vpop.permute.xlu0 %2146
        %vm2148 = vcmask 449536
        %v2149 = vsel %vm2148, %v2145, %v2147
        %v2153 = vmul.bf16 %v2117, %v2145
        %v2154 = vmul.bf16 %v2118, %v2149
        %v2155 = vmul.bf16 %v2119, %v2147
        %2159 = vrot.lane.b32.xlu0 %v2153, 73
        %v2160 = vpop.permute.xlu0 %2159
        %2161 = vrot.lane.b32.xlu0 %v2154, 73
        %v2162 = vpop.permute.xlu0 %2161
        %2163 = vrot.lane.b32.xlu0 %v2155, 73
        %v2164 = vpop.permute.xlu0 %2163
        %vm2165 = vcmask 596992
        %v2166 = vsel %vm2165, %v2160, %v2162
        %v2167 = vsel %vm2165, %v2162, %v2164
        %2170 = vst [vmem:[#allocation3 + $0x220] sm:$0xff] %v2166
        %2171 = vst [vmem:[#allocation3 + $0x228] sm:$0xff] %v2167
        %v2172 = vld [vmem:[#allocation2] sm:$0xff]
        %v2173 = vld [vmem:[#allocation2 + $0x8] sm:$0xff]
        %v2174 = vld [vmem:[#allocation2 + $0x10] sm:$0xff]
        %v2175 = vld [vmem:[#allocation9 + $0x8] sm:$0x11]
        %v2177 = vunpack.c.l.b16 %v2175
        %v2178 = vunpack.c.h.b16 %v2175
        %v2179 = vpack.c.b16 %v2177, %v2177
        %v2180 = vpack.c.b16 %v2178, %v2178
        %v2182 = vpack.i.b16 %v2179, %v2179
        %v2184 = vlaneseq
        %v2185 = vshrl.u32 %v2184, 7
        %v2186 = vsub.s32 0, %v2185
        %v2187 = vrot.slane %v2182, %v2186
        %v2189 = vpack.i.b16 %v2180, %v2180
        %v2191 = vlaneseq
        %v2192 = vshrl.u32 %v2191, 7
        %v2193 = vsub.s32 0, %v2192
        %v2194 = vrot.slane %v2189, %v2193
        %2197 = vrot.lane.b32.xlu0 %v2187, 56
        %v2198 = vpop.permute.xlu0 %2197
        %2199 = vrot.lane.b32.xlu0 %v2194, 56
        %v2200 = vpop.permute.xlu0 %2199
        %vm2201 = vcmask 457728
        %v2202 = vsel %vm2201, %v2198, %v2200
        %v2206 = vmul.bf16 %v2172, %v2198
        %v2207 = vmul.bf16 %v2173, %v2202
        %v2208 = vmul.bf16 %v2174, %v2200
        %2212 = vrot.lane.b32.xlu0 %v2206, 72
        %v2213 = vpop.permute.xlu0 %2212
        %2214 = vrot.lane.b32.xlu0 %v2207, 72
        %v2215 = vpop.permute.xlu0 %2214
        %2216 = vrot.lane.b32.xlu0 %v2208, 72
        %v2217 = vpop.permute.xlu0 %2216
        %vm2218 = vcmask 588800
        %v2219 = vsel %vm2218, %v2213, %v2215
        %v2220 = vsel %vm2218, %v2215, %v2217
        %2223 = vst [vmem:[#allocation3 + $0x230] sm:$0xff] %v2219
        %2224 = vst [vmem:[#allocation3 + $0x238] sm:$0xff] %v2220
        %v2225 = vld [vmem:[#allocation2] sm:$0xff]
        %v2226 = vld [vmem:[#allocation2 + $0x8] sm:$0xff]
        %v2227 = vld [vmem:[#allocation2 + $0x10] sm:$0xff]
        %v2228 = vld [vmem:[#allocation9] sm:$0x11]
        %v2230 = vunpack.c.l.b16 %v2228
        %v2231 = vunpack.c.h.b16 %v2228
        %v2232 = vpack.c.b16 %v2230, %v2230
        %v2233 = vpack.c.b16 %v2231, %v2231
        %v2235 = vpack.i.b16 %v2232, %v2232
        %v2237 = vlaneseq
        %v2238 = vshrl.u32 %v2237, 7
        %v2239 = vsub.s32 0, %v2238
        %v2240 = vrot.slane %v2235, %v2239
        %v2242 = vpack.i.b16 %v2233, %v2233
        %v2244 = vlaneseq
        %v2245 = vshrl.u32 %v2244, 7
        %v2246 = vsub.s32 0, %v2245
        %v2247 = vrot.slane %v2242, %v2246
        %2250 = vrot.lane.b32.xlu0 %v2240, 64
        %v2251 = vpop.permute.xlu0 %2250
        %2252 = vrot.lane.b32.xlu0 %v2247, 64
        %v2253 = vpop.permute.xlu0 %2252
        %vm2254 = vcmask 523264
        %v2255 = vsel %vm2254, %v2251, %v2253
        %v2259 = vmul.bf16 %v2225, %v2251
        %v2260 = vmul.bf16 %v2226, %v2255
        %v2261 = vmul.bf16 %v2227, %v2253
        %2265 = vrot.lane.b32.xlu0 %v2259, 64
        %v2266 = vpop.permute.xlu0 %2265
        %2267 = vrot.lane.b32.xlu0 %v2260, 64
        %v2268 = vpop.permute.xlu0 %2267
        %2269 = vrot.lane.b32.xlu0 %v2261, 64
        %v2270 = vpop.permute.xlu0 %2269
        %v2271 = vsel %vm2254, %v2266, %v2268
        %v2272 = vsel %vm2254, %v2268, %v2270
        %2275 = vst [vmem:[#allocation3 + $0x240] sm:$0xff] %v2271
        %2276 = vst [vmem:[#allocation3 + $0x248] sm:$0xff] %v2272
        %v2277 = vld [vmem:[#allocation2] sm:$0xff]
        %v2278 = vld [vmem:[#allocation2 + $0x8] sm:$0xff]
        %v2279 = vld [vmem:[#allocation2 + $0x10] sm:$0xff]
        %v2280 = vld [vmem:[#allocation9] sm:$0x11]
        %v2282 = vunpack.c.l.b16 %v2280
        %v2283 = vunpack.c.h.b16 %v2280
        %v2284 = vpack.c.b16 %v2282, %v2282
        %v2285 = vpack.c.b16 %v2283, %v2283
        %v2287 = vshrl.u32 %v2284, 16
        %v2288 = vpack.i.b16 %v2287, %v2287
        %v2290 = vlaneseq
        %v2291 = vshrl.u32 %v2290, 7
        %v2292 = vsub.s32 0, %v2291
        %v2293 = vrot.slane %v2288, %v2292
        %v2295 = vshrl.u32 %v2285, 16
        %v2296 = vpack.i.b16 %v2295, %v2295
        %v2298 = vlaneseq
        %v2299 = vshrl.u32 %v2298, 7
        %v2300 = vsub.s32 0, %v2299
        %v2301 = vrot.slane %v2296, %v2300
        %2304 = vrot.lane.b32.xlu0 %v2293, 65
        %v2305 = vpop.permute.xlu0 %2304
        %2306 = vrot.lane.b32.xlu0 %v2301, 65
        %v2307 = vpop.permute.xlu0 %2306
        %vm2308 = vcmask 531456
        %v2309 = vsel %vm2308, %v2305, %v2307
        %v2313 = vmul.bf16 %v2277, %v2305
        %v2314 = vmul.bf16 %v2278, %v2309
        %v2315 = vmul.bf16 %v2279, %v2307
        %2319 = vrot.lane.b32.xlu0 %v2313, 63
        %v2320 = vpop.permute.xlu0 %2319
        %2321 = vrot.lane.b32.xlu0 %v2314, 63
        %v2322 = vpop.permute.xlu0 %2321
        %2323 = vrot.lane.b32.xlu0 %v2315, 63
        %v2324 = vpop.permute.xlu0 %2323
        %vm2325 = vcmask 515072
        %v2326 = vsel %vm2325, %v2320, %v2322
        %v2327 = vsel %vm2325, %v2322, %v2324
        %2330 = vst [vmem:[#allocation3 + $0x250] sm:$0xff] %v2326
        %2331 = vst [vmem:[#allocation3 + $0x258] sm:$0xff] %v2327
        %v2332 = vld [vmem:[#allocation2] sm:$0xff]
        %v2333 = vld [vmem:[#allocation2 + $0x8] sm:$0xff]
        %v2334 = vld [vmem:[#allocation2 + $0x10] sm:$0xff]
        %v2335 = vld [vmem:[#allocation9] sm:$0x22]
        %v2337 = vunpack.c.l.b16 %v2335
        %v2338 = vunpack.c.h.b16 %v2335
        %v2339 = vpack.c.b16 %v2337, %v2337
        %v2340 = vpack.c.b16 %v2338, %v2338
        %v2342 = vpack.i.b16 %v2339, %v2339
        %v2344 = vlaneseq
        %v2345 = vshrl.u32 %v2344, 7
        %v2346 = vsub.s32 1, %v2345
        %v2347 = vrot.slane %v2342, %v2346
        %v2349 = vpack.i.b16 %v2340, %v2340
        %v2351 = vlaneseq
        %v2352 = vshrl.u32 %v2351, 7
        %v2353 = vsub.s32 1, %v2352
        %v2354 = vrot.slane %v2349, %v2353
        %2357 = vrot.lane.b32.xlu0 %v2347, 66
        %v2358 = vpop.permute.xlu0 %2357
        %2359 = vrot.lane.b32.xlu0 %v2354, 66
        %v2360 = vpop.permute.xlu0 %2359
        %vm2361 = vcmask 539648
        %v2362 = vsel %vm2361, %v2358, %v2360
        %v2366 = vmul.bf16 %v2332, %v2358
        %v2367 = vmul.bf16 %v2333, %v2362
        %v2368 = vmul.bf16 %v2334, %v2360
        %2372 = vrot.lane.b32.xlu0 %v2366, 62
        %v2373 = vpop.permute.xlu0 %2372
        %2374 = vrot.lane.b32.xlu0 %v2367, 62
        %v2375 = vpop.permute.xlu0 %2374
        %2376 = vrot.lane.b32.xlu0 %v2368, 62
        %v2377 = vpop.permute.xlu0 %2376
        %vm2378 = vcmask 506880
        %v2379 = vsel %vm2378, %v2373, %v2375
        %v2380 = vsel %vm2378, %v2375, %v2377
        %2383 = vst [vmem:[#allocation3 + $0x260] sm:$0xff] %v2379
        %2384 = vst [vmem:[#allocation3 + $0x268] sm:$0xff] %v2380
        %v2385 = vld [vmem:[#allocation2] sm:$0xff]
        %v2386 = vld [vmem:[#allocation2 + $0x8] sm:$0xff]
        %v2387 = vld [vmem:[#allocation2 + $0x10] sm:$0xff]
        %v2388 = vld [vmem:[#allocation9] sm:$0x22]
        %v2390 = vunpack.c.l.b16 %v2388
        %v2391 = vunpack.c.h.b16 %v2388
        %v2392 = vpack.c.b16 %v2390, %v2390
        %v2393 = vpack.c.b16 %v2391, %v2391
        %v2395 = vshrl.u32 %v2392, 16
        %v2396 = vpack.i.b16 %v2395, %v2395
        %v2398 = vlaneseq
        %v2399 = vshrl.u32 %v2398, 7
        %v2400 = vsub.s32 1, %v2399
        %v2401 = vrot.slane %v2396, %v2400
        %v2403 = vshrl.u32 %v2393, 16
        %v2404 = vpack.i.b16 %v2403, %v2403
        %v2406 = vlaneseq
        %v2407 = vshrl.u32 %v2406, 7
        %v2408 = vsub.s32 1, %v2407
        %v2409 = vrot.slane %v2404, %v2408
        %2412 = vrot.lane.b32.xlu0 %v2401, 67
        %v2413 = vpop.permute.xlu0 %2412
        %2414 = vrot.lane.b32.xlu0 %v2409, 67
        %v2415 = vpop.permute.xlu0 %2414
        %vm2416 = vcmask 547840
        %v2417 = vsel %vm2416, %v2413, %v2415
        %v2421 = vmul.bf16 %v2385, %v2413
        %v2422 = vmul.bf16 %v2386, %v2417
        %v2423 = vmul.bf16 %v2387, %v2415
        %2427 = vrot.lane.b32.xlu0 %v2421, 61
        %v2428 = vpop.permute.xlu0 %2427
        %2429 = vrot.lane.b32.xlu0 %v2422, 61
        %v2430 = vpop.permute.xlu0 %2429
        %2431 = vrot.lane.b32.xlu0 %v2423, 61
        %v2432 = vpop.permute.xlu0 %2431
        %vm2433 = vcmask 498688
        %v2434 = vsel %vm2433, %v2428, %v2430
        %v2435 = vsel %vm2433, %v2430, %v2432
        %2438 = vst [vmem:[#allocation3 + $0x270] sm:$0xff] %v2434
        %2439 = vst [vmem:[#allocation3 + $0x278] sm:$0xff] %v2435
        %v2440 = vld [vmem:[#allocation2] sm:$0xff]
        %v2441 = vld [vmem:[#allocation2 + $0x8] sm:$0xff]
        %v2442 = vld [vmem:[#allocation2 + $0x10] sm:$0xff]
        %v2443 = vld [vmem:[#allocation9] sm:$0x44]
        %v2445 = vunpack.c.l.b16 %v2443
        %v2446 = vunpack.c.h.b16 %v2443
        %v2447 = vpack.c.b16 %v2445, %v2445
        %v2448 = vpack.c.b16 %v2446, %v2446
        %v2450 = vpack.i.b16 %v2447, %v2447
        %v2452 = vlaneseq
        %v2453 = vshrl.u32 %v2452, 7
        %v2454 = vsub.s32 2, %v2453
        %v2455 = vrot.slane %v2450, %v2454
        %v2457 = vpack.i.b16 %v2448, %v2448
        %v2459 = vlaneseq
        %v2460 = vshrl.u32 %v2459, 7
        %v2461 = vsub.s32 2, %v2460
        %v2462 = vrot.slane %v2457, %v2461
        %2465 = vrot.lane.b32.xlu0 %v2455, 68
        %v2466 = vpop.permute.xlu0 %2465
        %2467 = vrot.lane.b32.xlu0 %v2462, 68
        %v2468 = vpop.permute.xlu0 %2467
        %v2469 = vsel %vm279, %v2466, %v2468
        %v2473 = vmul.bf16 %v2440, %v2466
        %v2474 = vmul.bf16 %v2441, %v2469
        %v2475 = vmul.bf16 %v2442, %v2468
        %2479 = vrot.lane.b32.xlu0 %v2473, 60
        %v2480 = vpop.permute.xlu0 %2479
        %2481 = vrot.lane.b32.xlu0 %v2474, 60
        %v2482 = vpop.permute.xlu0 %2481
        %2483 = vrot.lane.b32.xlu0 %v2475, 60
        %v2484 = vpop.permute.xlu0 %2483
        %vm2485 = vcmask 490496
        %v2486 = vsel %vm2485, %v2480, %v2482
        %v2487 = vsel %vm2485, %v2482, %v2484
        %2490 = vst [vmem:[#allocation3 + $0x280] sm:$0xff] %v2486
        %2491 = vst [vmem:[#allocation3 + $0x288] sm:$0xff] %v2487
        %v2492 = vld [vmem:[#allocation2] sm:$0xff]
        %v2493 = vld [vmem:[#allocation2 + $0x8] sm:$0xff]
        %v2494 = vld [vmem:[#allocation2 + $0x10] sm:$0xff]
        %v2495 = vld [vmem:[#allocation9] sm:$0x44]
        %v2497 = vunpack.c.l.b16 %v2495
        %v2498 = vunpack.c.h.b16 %v2495
        %v2499 = vpack.c.b16 %v2497, %v2497
        %v2500 = vpack.c.b16 %v2498, %v2498
        %v2502 = vshrl.u32 %v2499, 16
        %v2503 = vpack.i.b16 %v2502, %v2502
        %v2505 = vlaneseq
        %v2506 = vshrl.u32 %v2505, 7
        %v2507 = vsub.s32 2, %v2506
        %v2508 = vrot.slane %v2503, %v2507
        %v2510 = vshrl.u32 %v2500, 16
        %v2511 = vpack.i.b16 %v2510, %v2510
        %v2513 = vlaneseq
        %v2514 = vshrl.u32 %v2513, 7
        %v2515 = vsub.s32 2, %v2514
        %v2516 = vrot.slane %v2511, %v2515
        %2519 = vrot.lane.b32.xlu0 %v2508, 69
        %v2520 = vpop.permute.xlu0 %2519
        %2521 = vrot.lane.b32.xlu0 %v2516, 69
        %v2522 = vpop.permute.xlu0 %2521
        %vm2523 = vcmask 564224
        %v2524 = vsel %vm2523, %v2520, %v2522
        %v2528 = vmul.bf16 %v2492, %v2520
        %v2529 = vmul.bf16 %v2493, %v2524
        %v2530 = vmul.bf16 %v2494, %v2522
        %2534 = vrot.lane.b32.xlu0 %v2528, 59
        %v2535 = vpop.permute.xlu0 %2534
        %2536 = vrot.lane.b32.xlu0 %v2529, 59
        %v2537 = vpop.permute.xlu0 %2536
        %2538 = vrot.lane.b32.xlu0 %v2530, 59
        %v2539 = vpop.permute.xlu0 %2538
        %vm2540 = vcmask 482304
        %v2541 = vsel %vm2540, %v2535, %v2537
        %v2542 = vsel %vm2540, %v2537, %v2539
        %2545 = vst [vmem:[#allocation3 + $0x290] sm:$0xff] %v2541
        %2546 = vst [vmem:[#allocation3 + $0x298] sm:$0xff] %v2542
        %v2547 = vld [vmem:[#allocation2] sm:$0xff]
        %v2548 = vld [vmem:[#allocation2 + $0x8] sm:$0xff]
        %v2549 = vld [vmem:[#allocation2 + $0x10] sm:$0xff]
        %v2550 = vld [vmem:[#allocation9] sm:$0x88]
        %v2552 = vunpack.c.l.b16 %v2550
        %v2553 = vunpack.c.h.b16 %v2550
        %v2554 = vpack.c.b16 %v2552, %v2552
        %v2555 = vpack.c.b16 %v2553, %v2553
        %v2557 = vpack.i.b16 %v2554, %v2554
        %v2559 = vlaneseq
        %v2560 = vshrl.u32 %v2559, 7
        %v2561 = vsub.s32 3, %v2560
        %v2562 = vrot.slane %v2557, %v2561
        %v2564 = vpack.i.b16 %v2555, %v2555
        %v2566 = vlaneseq
        %v2567 = vshrl.u32 %v2566, 7
        %v2568 = vsub.s32 3, %v2567
        %v2569 = vrot.slane %v2564, %v2568
        %2572 = vrot.lane.b32.xlu0 %v2562, 70
        %v2573 = vpop.permute.xlu0 %2572
        %2574 = vrot.lane.b32.xlu0 %v2569, 70
        %v2575 = vpop.permute.xlu0 %2574
        %vm2576 = vcmask 572416
        %v2577 = vsel %vm2576, %v2573, %v2575
        %v2581 = vmul.bf16 %v2547, %v2573
        %v2582 = vmul.bf16 %v2548, %v2577
        %v2583 = vmul.bf16 %v2549, %v2575
        %2587 = vrot.lane.b32.xlu0 %v2581, 58
        %v2588 = vpop.permute.xlu0 %2587
        %2589 = vrot.lane.b32.xlu0 %v2582, 58
        %v2590 = vpop.permute.xlu0 %2589
        %2591 = vrot.lane.b32.xlu0 %v2583, 58
        %v2592 = vpop.permute.xlu0 %2591
        %vm2593 = vcmask 474112
        %v2594 = vsel %vm2593, %v2588, %v2590
        %v2595 = vsel %vm2593, %v2590, %v2592
        %2598 = vst [vmem:[#allocation3 + $0x2a0] sm:$0xff] %v2594
        %2599 = vst [vmem:[#allocation3 + $0x2a8] sm:$0xff] %v2595
        %v2600 = vld [vmem:[#allocation2] sm:$0xff]
        %v2601 = vld [vmem:[#allocation2 + $0x8] sm:$0xff]
        %v2602 = vld [vmem:[#allocation2 + $0x10] sm:$0xff]
        %v2603 = vld [vmem:[#allocation9] sm:$0x88]
        %v2605 = vunpack.c.l.b16 %v2603
        %v2606 = vunpack.c.h.b16 %v2603
        %v2607 = vpack.c.b16 %v2605, %v2605
        %v2608 = vpack.c.b16 %v2606, %v2606
        %v2610 = vshrl.u32 %v2607, 16
        %v2611 = vpack.i.b16 %v2610, %v2610
        %v2613 = vlaneseq
        %v2614 = vshrl.u32 %v2613, 7
        %v2615 = vsub.s32 3, %v2614
        %v2616 = vrot.slane %v2611, %v2615
        %v2618 = vshrl.u32 %v2608, 16
        %v2619 = vpack.i.b16 %v2618, %v2618
        %v2621 = vlaneseq
        %v2622 = vshrl.u32 %v2621, 7
        %v2623 = vsub.s32 3, %v2622
        %v2624 = vrot.slane %v2619, %v2623
        %2627 = vrot.lane.b32.xlu0 %v2616, 71
        %v2628 = vpop.permute.xlu0 %2627
        %2629 = vrot.lane.b32.xlu0 %v2624, 71
        %v2630 = vpop.permute.xlu0 %2629
        %vm2631 = vcmask 580608
        %v2632 = vsel %vm2631, %v2628, %v2630
        %v2636 = vmul.bf16 %v2600, %v2628
        %v2637 = vmul.bf16 %v2601, %v2632
        %v2638 = vmul.bf16 %v2602, %v2630
        %2642 = vrot.lane.b32.xlu0 %v2636, 57
        %v2643 = vpop.permute.xlu0 %2642
        %2644 = vrot.lane.b32.xlu0 %v2637, 57
        %v2645 = vpop.permute.xlu0 %2644
        %2646 = vrot.lane.b32.xlu0 %v2638, 57
        %v2647 = vpop.permute.xlu0 %2646
        %vm2648 = vcmask 465920
        %v2649 = vsel %vm2648, %v2643, %v2645
        %v2650 = vsel %vm2648, %v2645, %v2647
        %2653 = vst [vmem:[#allocation3 + $0x2b0] sm:$0xff] %v2649
        %2654 = vst [vmem:[#allocation3 + $0x2b8] sm:$0xff] %v2650
        %v2655 = vld [vmem:[#allocation2] sm:$0xff]
        %v2656 = vld [vmem:[#allocation2 + $0x8] sm:$0xff]
        %v2657 = vld [vmem:[#allocation2 + $0x10] sm:$0xff]
        %v2658 = vld [vmem:[#allocation9 + $0x8] sm:$0x11]
        %v2660 = vunpack.c.l.b16 %v2658
        %v2661 = vunpack.c.h.b16 %v2658
        %v2662 = vpack.c.b16 %v2660, %v2660
        %v2663 = vpack.c.b16 %v2661, %v2661
        %v2665 = vpack.i.b16 %v2662, %v2662
        %v2667 = vlaneseq
        %v2668 = vshrl.u32 %v2667, 7
        %v2669 = vsub.s32 0, %v2668
        %v2670 = vrot.slane %v2665, %v2669
        %v2672 = vpack.i.b16 %v2663, %v2663
        %v2674 = vlaneseq
        %v2675 = vshrl.u32 %v2674, 7
        %v2676 = vsub.s32 0, %v2675
        %v2677 = vrot.slane %v2672, %v2676
        %2680 = vrot.lane.b32.xlu0 %v2670, 72
        %v2681 = vpop.permute.xlu0 %2680
        %2682 = vrot.lane.b32.xlu0 %v2677, 72
        %v2683 = vpop.permute.xlu0 %2682
        %v2684 = vsel %vm2218, %v2681, %v2683
        %v2688 = vmul.bf16 %v2655, %v2681
        %v2689 = vmul.bf16 %v2656, %v2684
        %v2690 = vmul.bf16 %v2657, %v2683
        %2694 = vrot.lane.b32.xlu0 %v2688, 56
        %v2695 = vpop.permute.xlu0 %2694
        %2696 = vrot.lane.b32.xlu0 %v2689, 56
        %v2697 = vpop.permute.xlu0 %2696
        %2698 = vrot.lane.b32.xlu0 %v2690, 56
        %v2699 = vpop.permute.xlu0 %2698
        %v2700 = vsel %vm2201, %v2695, %v2697
        %v2701 = vsel %vm2201, %v2697, %v2699
        %2704 = vst [vmem:[#allocation3 + $0x2c0] sm:$0xff] %v2700
        %2705 = vst [vmem:[#allocation3 + $0x2c8] sm:$0xff] %v2701
        %v2706 = vld [vmem:[#allocation2] sm:$0xff]
        %v2707 = vld [vmem:[#allocation2 + $0x8] sm:$0xff]
        %v2708 = vld [vmem:[#allocation2 + $0x10] sm:$0xff]
        %v2709 = vld [vmem:[#allocation9] sm:$0x11]
        %v2711 = vunpack.c.l.b16 %v2709
        %v2712 = vunpack.c.h.b16 %v2709
        %v2713 = vpack.c.b16 %v2711, %v2711
        %v2714 = vpack.c.b16 %v2712, %v2712
        %v2716 = vpack.i.b16 %v2713, %v2713
        %v2718 = vlaneseq
        %v2719 = vshrl.u32 %v2718, 7
        %v2720 = vsub.s32 0, %v2719
        %v2721 = vrot.slane %v2716, %v2720
        %v2723 = vpack.i.b16 %v2714, %v2714
        %v2725 = vlaneseq
        %v2726 = vshrl.u32 %v2725, 7
        %v2727 = vsub.s32 0, %v2726
        %v2728 = vrot.slane %v2723, %v2727
        %2731 = vrot.lane.b32.xlu0 %v2721, 80
        %v2732 = vpop.permute.xlu0 %2731
        %2733 = vrot.lane.b32.xlu0 %v2728, 80
        %v2734 = vpop.permute.xlu0 %2733
        %v2735 = vsel %vm1786, %v2732, %v2734
        %v2739 = vmul.bf16 %v2706, %v2732
        %v2740 = vmul.bf16 %v2707, %v2735
        %v2741 = vmul.bf16 %v2708, %v2734
        %2745 = vrot.lane.b32.xlu0 %v2739, 48
        %v2746 = vpop.permute.xlu0 %2745
        %2747 = vrot.lane.b32.xlu0 %v2740, 48
        %v2748 = vpop.permute.xlu0 %2747
        %2749 = vrot.lane.b32.xlu0 %v2741, 48
        %v2750 = vpop.permute.xlu0 %2749
        %v2751 = vsel %vm1769, %v2746, %v2748
        %v2752 = vsel %vm1769, %v2748, %v2750
        %2755 = vst [vmem:[#allocation3 + $0x2d0] sm:$0xff] %v2751
        %2756 = vst [vmem:[#allocation3 + $0x2d8] sm:$0xff] %v2752
        %v2757 = vld [vmem:[#allocation2] sm:$0xff]
        %v2758 = vld [vmem:[#allocation2 + $0x8] sm:$0xff]
        %v2759 = vld [vmem:[#allocation2 + $0x10] sm:$0xff]
        %v2760 = vld [vmem:[#allocation9] sm:$0x11]
        %v2762 = vunpack.c.l.b16 %v2760
        %v2763 = vunpack.c.h.b16 %v2760
        %v2764 = vpack.c.b16 %v2762, %v2762
        %v2765 = vpack.c.b16 %v2763, %v2763
        %v2767 = vshrl.u32 %v2764, 16
        %v2768 = vpack.i.b16 %v2767, %v2767
        %v2770 = vlaneseq
        %v2771 = vshrl.u32 %v2770, 7
        %v2772 = vsub.s32 0, %v2771
        %v2773 = vrot.slane %v2768, %v2772
        %v2775 = vshrl.u32 %v2765, 16
        %v2776 = vpack.i.b16 %v2775, %v2775
        %v2778 = vlaneseq
        %v2779 = vshrl.u32 %v2778, 7
        %v2780 = vsub.s32 0, %v2779
        %v2781 = vrot.slane %v2776, %v2780
        %2784 = vrot.lane.b32.xlu0 %v2773, 81
        %v2785 = vpop.permute.xlu0 %2784
        %2786 = vrot.lane.b32.xlu0 %v2781, 81
        %v2787 = vpop.permute.xlu0 %2786
        %vm2788 = vcmask 662528
        %v2789 = vsel %vm2788, %v2785, %v2787
        %v2793 = vmul.bf16 %v2757, %v2785
        %v2794 = vmul.bf16 %v2758, %v2789
        %v2795 = vmul.bf16 %v2759, %v2787
        %2799 = vrot.lane.b32.xlu0 %v2793, 47
        %v2800 = vpop.permute.xlu0 %2799
        %2801 = vrot.lane.b32.xlu0 %v2794, 47
        %v2802 = vpop.permute.xlu0 %2801
        %2803 = vrot.lane.b32.xlu0 %v2795, 47
        %v2804 = vpop.permute.xlu0 %2803
        %vm2805 = vcmask 384000
        %v2806 = vsel %vm2805, %v2800, %v2802
        %v2807 = vsel %vm2805, %v2802, %v2804
        %2810 = vst [vmem:[#allocation3 + $0x2e0] sm:$0xff] %v2806
        %2811 = vst [vmem:[#allocation3 + $0x2e8] sm:$0xff] %v2807
        %v2812 = vld [vmem:[#allocation2] sm:$0xff]
        %v2813 = vld [vmem:[#allocation2 + $0x8] sm:$0xff]
        %v2814 = vld [vmem:[#allocation2 + $0x10] sm:$0xff]
        %v2815 = vld [vmem:[#allocation9] sm:$0x22]
        %v2817 = vunpack.c.l.b16 %v2815
        %v2818 = vunpack.c.h.b16 %v2815
        %v2819 = vpack.c.b16 %v2817, %v2817
        %v2820 = vpack.c.b16 %v2818, %v2818
        %v2822 = vpack.i.b16 %v2819, %v2819
        %v2824 = vlaneseq
        %v2825 = vshrl.u32 %v2824, 7
        %v2826 = vsub.s32 1, %v2825
        %v2827 = vrot.slane %v2822, %v2826
        %v2829 = vpack.i.b16 %v2820, %v2820
        %v2831 = vlaneseq
        %v2832 = vshrl.u32 %v2831, 7
        %v2833 = vsub.s32 1, %v2832
        %v2834 = vrot.slane %v2829, %v2833
        %2837 = vrot.lane.b32.xlu0 %v2827, 82
        %v2838 = vpop.permute.xlu0 %2837
        %2839 = vrot.lane.b32.xlu0 %v2834, 82
        %v2840 = vpop.permute.xlu0 %2839
        %vm2841 = vcmask 670720
        %v2842 = vsel %vm2841, %v2838, %v2840
        %v2846 = vmul.bf16 %v2812, %v2838
        %v2847 = vmul.bf16 %v2813, %v2842
        %v2848 = vmul.bf16 %v2814, %v2840
        %2852 = vrot.lane.b32.xlu0 %v2846, 46
        %v2853 = vpop.permute.xlu0 %2852
        %2854 = vrot.lane.b32.xlu0 %v2847, 46
        %v2855 = vpop.permute.xlu0 %2854
        %2856 = vrot.lane.b32.xlu0 %v2848, 46
        %v2857 = vpop.permute.xlu0 %2856
        %vm2858 = vcmask 375808
        %v2859 = vsel %vm2858, %v2853, %v2855
        %v2860 = vsel %vm2858, %v2855, %v2857
        %2863 = vst [vmem:[#allocation3 + $0x2f0] sm:$0xff] %v2859
        %2864 = vst [vmem:[#allocation3 + $0x2f8] sm:$0xff] %v2860
        %v2865 = vld [vmem:[#allocation2] sm:$0xff]
        %v2866 = vld [vmem:[#allocation2 + $0x8] sm:$0xff]
        %v2867 = vld [vmem:[#allocation2 + $0x10] sm:$0xff]
        %v2868 = vld [vmem:[#allocation9] sm:$0x22]
        %v2870 = vunpack.c.l.b16 %v2868
        %v2871 = vunpack.c.h.b16 %v2868
        %v2872 = vpack.c.b16 %v2870, %v2870
        %v2873 = vpack.c.b16 %v2871, %v2871
        %v2875 = vshrl.u32 %v2872, 16
        %v2876 = vpack.i.b16 %v2875, %v2875
        %v2878 = vlaneseq
        %v2879 = vshrl.u32 %v2878, 7
        %v2880 = vsub.s32 1, %v2879
        %v2881 = vrot.slane %v2876, %v2880
        %v2883 = vshrl.u32 %v2873, 16
        %v2884 = vpack.i.b16 %v2883, %v2883
        %v2886 = vlaneseq
        %v2887 = vshrl.u32 %v2886, 7
        %v2888 = vsub.s32 1, %v2887
        %v2889 = vrot.slane %v2884, %v2888
        %2892 = vrot.lane.b32.xlu0 %v2881, 83
        %v2893 = vpop.permute.xlu0 %2892
        %2894 = vrot.lane.b32.xlu0 %v2889, 83
        %v2895 = vpop.permute.xlu0 %2894
        %vm2896 = vcmask 678912
        %v2897 = vsel %vm2896, %v2893, %v2895
        %v2901 = vmul.bf16 %v2865, %v2893
        %v2902 = vmul.bf16 %v2866, %v2897
        %v2903 = vmul.bf16 %v2867, %v2895
        %2907 = vrot.lane.b32.xlu0 %v2901, 45
        %v2908 = vpop.permute.xlu0 %2907
        %2909 = vrot.lane.b32.xlu0 %v2902, 45
        %v2910 = vpop.permute.xlu0 %2909
        %2911 = vrot.lane.b32.xlu0 %v2903, 45
        %v2912 = vpop.permute.xlu0 %2911
        %vm2913 = vcmask 367616
        %v2914 = vsel %vm2913, %v2908, %v2910
        %v2915 = vsel %vm2913, %v2910, %v2912
        %2918 = vst [vmem:[#allocation3 + $0x300] sm:$0xff] %v2914
        %2919 = vst [vmem:[#allocation3 + $0x308] sm:$0xff] %v2915
        %v2920 = vld [vmem:[#allocation2] sm:$0xff]
        %v2921 = vld [vmem:[#allocation2 + $0x8] sm:$0xff]
        %v2922 = vld [vmem:[#allocation2 + $0x10] sm:$0xff]
        %v2923 = vld [vmem:[#allocation9] sm:$0x44]
        %v2925 = vunpack.c.l.b16 %v2923
        %v2926 = vunpack.c.h.b16 %v2923
        %v2927 = vpack.c.b16 %v2925, %v2925
        %v2928 = vpack.c.b16 %v2926, %v2926
        %v2930 = vpack.i.b16 %v2927, %v2927
        %v2932 = vlaneseq
        %v2933 = vshrl.u32 %v2932, 7
        %v2934 = vsub.s32 2, %v2933
        %v2935 = vrot.slane %v2930, %v2934
        %v2937 = vpack.i.b16 %v2928, %v2928
        %v2939 = vlaneseq
        %v2940 = vshrl.u32 %v2939, 7
        %v2941 = vsub.s32 2, %v2940
        %v2942 = vrot.slane %v2937, %v2941
        %2945 = vrot.lane.b32.xlu0 %v2935, 84
        %v2946 = vpop.permute.xlu0 %2945
        %2947 = vrot.lane.b32.xlu0 %v2942, 84
        %v2948 = vpop.permute.xlu0 %2947
        %vm2949 = vcmask 687104
        %v2950 = vsel %vm2949, %v2946, %v2948
        %v2954 = vmul.bf16 %v2920, %v2946
        %v2955 = vmul.bf16 %v2921, %v2950
        %v2956 = vmul.bf16 %v2922, %v2948
        %2960 = vrot.lane.b32.xlu0 %v2954, 44
        %v2961 = vpop.permute.xlu0 %2960
        %2962 = vrot.lane.b32.xlu0 %v2955, 44
        %v2963 = vpop.permute.xlu0 %2962
        %2964 = vrot.lane.b32.xlu0 %v2956, 44
        %v2965 = vpop.permute.xlu0 %2964
        %vm2966 = vcmask 359424
        %v2967 = vsel %vm2966, %v2961, %v2963
        %v2968 = vsel %vm2966, %v2963, %v2965
        %2971 = vst [vmem:[#allocation3 + $0x310] sm:$0xff] %v2967
        %2972 = vst [vmem:[#allocation3 + $0x318] sm:$0xff] %v2968
        %v2973 = vld [vmem:[#allocation2] sm:$0xff]
        %v2974 = vld [vmem:[#allocation2 + $0x8] sm:$0xff]
        %v2975 = vld [vmem:[#allocation2 + $0x10] sm:$0xff]
        %v2976 = vld [vmem:[#allocation9] sm:$0x44]
        %v2978 = vunpack.c.l.b16 %v2976
        %v2979 = vunpack.c.h.b16 %v2976
        %v2980 = vpack.c.b16 %v2978, %v2978
        %v2981 = vpack.c.b16 %v2979, %v2979
        %v2983 = vshrl.u32 %v2980, 16
        %v2984 = vpack.i.b16 %v2983, %v2983
        %v2986 = vlaneseq
        %v2987 = vshrl.u32 %v2986, 7
        %v2988 = vsub.s32 2, %v2987
        %v2989 = vrot.slane %v2984, %v2988
        %v2991 = vshrl.u32 %v2981, 16
        %v2992 = vpack.i.b16 %v2991, %v2991
        %v2994 = vlaneseq
        %v2995 = vshrl.u32 %v2994, 7
        %v2996 = vsub.s32 2, %v2995
        %v2997 = vrot.slane %v2992, %v2996
        %3000 = vrot.lane.b32.xlu0 %v2989, 85
        %v3001 = vpop.permute.xlu0 %3000
        %3002 = vrot.lane.b32.xlu0 %v2997, 85
        %v3003 = vpop.permute.xlu0 %3002
        %vm3004 = vcmask 695296
        %v3005 = vsel %vm3004, %v3001, %v3003
        %v3009 = vmul.bf16 %v2973, %v3001
        %v3010 = vmul.bf16 %v2974, %v3005
        %v3011 = vmul.bf16 %v2975, %v3003
        %3015 = vrot.lane.b32.xlu0 %v3009, 43
        %v3016 = vpop.permute.xlu0 %3015
        %3017 = vrot.lane.b32.xlu0 %v3010, 43
        %v3018 = vpop.permute.xlu0 %3017
        %3019 = vrot.lane.b32.xlu0 %v3011, 43
        %v3020 = vpop.permute.xlu0 %3019
        %vm3021 = vcmask 351232
        %v3022 = vsel %vm3021, %v3016, %v3018
        %v3023 = vsel %vm3021, %v3018, %v3020
        %3026 = vst [vmem:[#allocation3 + $0x320] sm:$0xff] %v3022
        %3027 = vst [vmem:[#allocation3 + $0x328] sm:$0xff] %v3023
        %v3028 = vld [vmem:[#allocation2] sm:$0xff]
        %v3029 = vld [vmem:[#allocation2 + $0x8] sm:$0xff]
        %v3030 = vld [vmem:[#allocation2 + $0x10] sm:$0xff]
        %v3031 = vld [vmem:[#allocation9] sm:$0x88]
        %v3033 = vunpack.c.l.b16 %v3031
        %v3034 = vunpack.c.h.b16 %v3031
        %v3035 = vpack.c.b16 %v3033, %v3033
        %v3036 = vpack.c.b16 %v3034, %v3034
        %v3038 = vpack.i.b16 %v3035, %v3035
        %v3040 = vlaneseq
        %v3041 = vshrl.u32 %v3040, 7
        %v3042 = vsub.s32 3, %v3041
        %v3043 = vrot.slane %v3038, %v3042
        %v3045 = vpack.i.b16 %v3036, %v3036
        %v3047 = vlaneseq
        %v3048 = vshrl.u32 %v3047, 7
        %v3049 = vsub.s32 3, %v3048
        %v3050 = vrot.slane %v3045, %v3049
        %3053 = vrot.lane.b32.xlu0 %v3043, 86
        %v3054 = vpop.permute.xlu0 %3053
        %3055 = vrot.lane.b32.xlu0 %v3050, 86
        %v3056 = vpop.permute.xlu0 %3055
        %vm3057 = vcmask 703488
        %v3058 = vsel %vm3057, %v3054, %v3056
        %v3062 = vmul.bf16 %v3028, %v3054
        %v3063 = vmul.bf16 %v3029, %v3058
        %v3064 = vmul.bf16 %v3030, %v3056
        %3068 = vrot.lane.b32.xlu0 %v3062, 42
        %v3069 = vpop.permute.xlu0 %3068
        %3070 = vrot.lane.b32.xlu0 %v3063, 42
        %v3071 = vpop.permute.xlu0 %3070
        %3072 = vrot.lane.b32.xlu0 %v3064, 42
        %v3073 = vpop.permute.xlu0 %3072
        %vm3074 = vcmask 343040
        %v3075 = vsel %vm3074, %v3069, %v3071
        %v3076 = vsel %vm3074, %v3071, %v3073
        %3079 = vst [vmem:[#allocation3 + $0x330] sm:$0xff] %v3075
        %3080 = vst [vmem:[#allocation3 + $0x338] sm:$0xff] %v3076
        %v3081 = vld [vmem:[#allocation2] sm:$0xff]
        %v3082 = vld [vmem:[#allocation2 + $0x8] sm:$0xff]
        %v3083 = vld [vmem:[#allocation2 + $0x10] sm:$0xff]
        %v3084 = vld [vmem:[#allocation9] sm:$0x88]
        %v3086 = vunpack.c.l.b16 %v3084
        %v3087 = vunpack.c.h.b16 %v3084
        %v3088 = vpack.c.b16 %v3086, %v3086
        %v3089 = vpack.c.b16 %v3087, %v3087
        %v3091 = vshrl.u32 %v3088, 16
        %v3092 = vpack.i.b16 %v3091, %v3091
        %v3094 = vlaneseq
        %v3095 = vshrl.u32 %v3094, 7
        %v3096 = vsub.s32 3, %v3095
        %v3097 = vrot.slane %v3092, %v3096
        %v3099 = vshrl.u32 %v3089, 16
        %v3100 = vpack.i.b16 %v3099, %v3099
        %v3102 = vlaneseq
        %v3103 = vshrl.u32 %v3102, 7
        %v3104 = vsub.s32 3, %v3103
        %v3105 = vrot.slane %v3100, %v3104
        %3108 = vrot.lane.b32.xlu0 %v3097, 87
        %v3109 = vpop.permute.xlu0 %3108
        %3110 = vrot.lane.b32.xlu0 %v3105, 87
        %v3111 = vpop.permute.xlu0 %3110
        %vm3112 = vcmask 711680
        %v3113 = vsel %vm3112, %v3109, %v3111
        %v3117 = vmul.bf16 %v3081, %v3109
        %v3118 = vmul.bf16 %v3082, %v3113
        %v3119 = vmul.bf16 %v3083, %v3111
        %3123 = vrot.lane.b32.xlu0 %v3117, 41
        %v3124 = vpop.permute.xlu0 %3123
        %3125 = vrot.lane.b32.xlu0 %v3118, 41
        %v3126 = vpop.permute.xlu0 %3125
        %3127 = vrot.lane.b32.xlu0 %v3119, 41
        %v3128 = vpop.permute.xlu0 %3127
        %vm3129 = vcmask 334848
        %v3130 = vsel %vm3129, %v3124, %v3126
        %v3131 = vsel %vm3129, %v3126, %v3128
        %3134 = vst [vmem:[#allocation3 + $0x340] sm:$0xff] %v3130
        %3135 = vst [vmem:[#allocation3 + $0x348] sm:$0xff] %v3131
        %v3136 = vld [vmem:[#allocation2] sm:$0xff]
        %v3137 = vld [vmem:[#allocation2 + $0x8] sm:$0xff]
        %v3138 = vld [vmem:[#allocation2 + $0x10] sm:$0xff]
        %v3139 = vld [vmem:[#allocation9 + $0x8] sm:$0x11]
        %v3141 = vunpack.c.l.b16 %v3139
        %v3142 = vunpack.c.h.b16 %v3139
        %v3143 = vpack.c.b16 %v3141, %v3141
        %v3144 = vpack.c.b16 %v3142, %v3142
        %v3146 = vpack.i.b16 %v3143, %v3143
        %v3148 = vlaneseq
        %v3149 = vshrl.u32 %v3148, 7
        %v3150 = vsub.s32 0, %v3149
        %v3151 = vrot.slane %v3146, %v3150
        %v3153 = vpack.i.b16 %v3144, %v3144
        %v3155 = vlaneseq
        %v3156 = vshrl.u32 %v3155, 7
        %v3157 = vsub.s32 0, %v3156
        %v3158 = vrot.slane %v3153, %v3157
        %3161 = vrot.lane.b32.xlu0 %v3151, 88
        %v3162 = vpop.permute.xlu0 %3161
        %3163 = vrot.lane.b32.xlu0 %v3158, 88
        %v3164 = vpop.permute.xlu0 %3163
        %v3165 = vsel %vm1733, %v3162, %v3164
        %v3169 = vmul.bf16 %v3136, %v3162
        %v3170 = vmul.bf16 %v3137, %v3165
        %v3171 = vmul.bf16 %v3138, %v3164
        %3175 = vrot.lane.b32.xlu0 %v3169, 40
        %v3176 = vpop.permute.xlu0 %3175
        %3177 = vrot.lane.b32.xlu0 %v3170, 40
        %v3178 = vpop.permute.xlu0 %3177
        %3179 = vrot.lane.b32.xlu0 %v3171, 40
        %v3180 = vpop.permute.xlu0 %3179
        %v3181 = vsel %vm1716, %v3176, %v3178
        %v3182 = vsel %vm1716, %v3178, %v3180
        %3185 = vst [vmem:[#allocation3 + $0x350] sm:$0xff] %v3181
        %3186 = vst [vmem:[#allocation3 + $0x358] sm:$0xff] %v3182
        %v3187 = vld [vmem:[#allocation2] sm:$0xff]
        %v3188 = vld [vmem:[#allocation2 + $0x8] sm:$0xff]
        %v3189 = vld [vmem:[#allocation2 + $0x10] sm:$0xff]
        %v3190 = vld [vmem:[#allocation9] sm:$0x11]
        %v3192 = vunpack.c.l.b16 %v3190
        %v3193 = vunpack.c.h.b16 %v3190
        %v3194 = vpack.c.b16 %v3192, %v3192
        %v3195 = vpack.c.b16 %v3193, %v3193
        %v3197 = vpack.i.b16 %v3194, %v3194
        %v3199 = vlaneseq
        %v3200 = vshrl.u32 %v3199, 7
        %v3201 = vsub.s32 0, %v3200
        %v3202 = vrot.slane %v3197, %v3201
        %v3204 = vpack.i.b16 %v3195, %v3195
        %v3206 = vlaneseq
        %v3207 = vshrl.u32 %v3206, 7
        %v3208 = vsub.s32 0, %v3207
        %v3209 = vrot.slane %v3204, %v3208
        %3212 = vrot.lane.b32.xlu0 %v3202, 96
        %v3213 = vpop.permute.xlu0 %3212
        %3214 = vrot.lane.b32.xlu0 %v3209, 96
        %v3215 = vpop.permute.xlu0 %3214
        %v3216 = vsel %vm1301, %v3213, %v3215
        %v3220 = vmul.bf16 %v3187, %v3213
        %v3221 = vmul.bf16 %v3188, %v3216
        %v3222 = vmul.bf16 %v3189, %v3215
        %3226 = vrot.lane.b32.xlu0 %v3220, 32
        %v3227 = vpop.permute.xlu0 %3226
        %3228 = vrot.lane.b32.xlu0 %v3221, 32
        %v3229 = vpop.permute.xlu0 %3228
        %3230 = vrot.lane.b32.xlu0 %v3222, 32
        %v3231 = vpop.permute.xlu0 %3230
        %v3232 = vsel %vm1284, %v3227, %v3229
        %v3233 = vsel %vm1284, %v3229, %v3231
        %3236 = vst [vmem:[#allocation3 + $0x360] sm:$0xff] %v3232
        %3237 = vst [vmem:[#allocation3 + $0x368] sm:$0xff] %v3233
        %v3238 = vld [vmem:[#allocation2] sm:$0xff]
        %v3239 = vld [vmem:[#allocation2 + $0x8] sm:$0xff]
        %v3240 = vld [vmem:[#allocation2 + $0x10] sm:$0xff]
        %v3241 = vld [vmem:[#allocation9] sm:$0x11]
        %v3243 = vunpack.c.l.b16 %v3241
        %v3244 = vunpack.c.h.b16 %v3241
        %v3245 = vpack.c.b16 %v3243, %v3243
        %v3246 = vpack.c.b16 %v3244, %v3244
        %v3248 = vshrl.u32 %v3245, 16
        %v3249 = vpack.i.b16 %v3248, %v3248
        %v3251 = vlaneseq
        %v3252 = vshrl.u32 %v3251, 7
        %v3253 = vsub.s32 0, %v3252
        %v3254 = vrot.slane %v3249, %v3253
        %v3256 = vshrl.u32 %v3246, 16
        %v3257 = vpack.i.b16 %v3256, %v3256
        %v3259 = vlaneseq
        %v3260 = vshrl.u32 %v3259, 7
        %v3261 = vsub.s32 0, %v3260
        %v3262 = vrot.slane %v3257, %v3261
        %3265 = vrot.lane.b32.xlu0 %v3254, 97
        %v3266 = vpop.permute.xlu0 %3265
        %3267 = vrot.lane.b32.xlu0 %v3262, 97
        %v3268 = vpop.permute.xlu0 %3267
        %vm3269 = vcmask 793600
        %v3270 = vsel %vm3269, %v3266, %v3268
        %v3274 = vmul.bf16 %v3238, %v3266
        %v3275 = vmul.bf16 %v3239, %v3270
        %v3276 = vmul.bf16 %v3240, %v3268
        %3280 = vrot.lane.b32.xlu0 %v3274, 31
        %v3281 = vpop.permute.xlu0 %3280
        %3282 = vrot.lane.b32.xlu0 %v3275, 31
        %v3283 = vpop.permute.xlu0 %3282
        %3284 = vrot.lane.b32.xlu0 %v3276, 31
        %v3285 = vpop.permute.xlu0 %3284
        %vm3286 = vcmask 252928
        %v3287 = vsel %vm3286, %v3281, %v3283
        %v3288 = vsel %vm3286, %v3283, %v3285
        %3291 = vst [vmem:[#allocation3 + $0x370] sm:$0xff] %v3287
        %3292 = vst [vmem:[#allocation3 + $0x378] sm:$0xff] %v3288
        %v3293 = vld [vmem:[#allocation2] sm:$0xff]
        %v3294 = vld [vmem:[#allocation2 + $0x8] sm:$0xff]
        %v3295 = vld [vmem:[#allocation2 + $0x10] sm:$0xff]
        %v3296 = vld [vmem:[#allocation9] sm:$0x22]
        %v3298 = vunpack.c.l.b16 %v3296
        %v3299 = vunpack.c.h.b16 %v3296
        %v3300 = vpack.c.b16 %v3298, %v3298
        %v3301 = vpack.c.b16 %v3299, %v3299
        %v3303 = vpack.i.b16 %v3300, %v3300
        %v3305 = vlaneseq
        %v3306 = vshrl.u32 %v3305, 7
        %v3307 = vsub.s32 1, %v3306
        %v3308 = vrot.slane %v3303, %v3307
        %v3310 = vpack.i.b16 %v3301, %v3301
        %v3312 = vlaneseq
        %v3313 = vshrl.u32 %v3312, 7
        %v3314 = vsub.s32 1, %v3313
        %v3315 = vrot.slane %v3310, %v3314
        %3318 = vrot.lane.b32.xlu0 %v3308, 98
        %v3319 = vpop.permute.xlu0 %3318
        %3320 = vrot.lane.b32.xlu0 %v3315, 98
        %v3321 = vpop.permute.xlu0 %3320
        %vm3322 = vcmask 801792
        %v3323 = vsel %vm3322, %v3319, %v3321
        %v3327 = vmul.bf16 %v3293, %v3319
        %v3328 = vmul.bf16 %v3294, %v3323
        %v3329 = vmul.bf16 %v3295, %v3321
        %3333 = vrot.lane.b32.xlu0 %v3327, 30
        %v3334 = vpop.permute.xlu0 %3333
        %3335 = vrot.lane.b32.xlu0 %v3328, 30
        %v3336 = vpop.permute.xlu0 %3335
        %3337 = vrot.lane.b32.xlu0 %v3329, 30
        %v3338 = vpop.permute.xlu0 %3337
        %vm3339 = vcmask 244736
        %v3340 = vsel %vm3339, %v3334, %v3336
        %v3341 = vsel %vm3339, %v3336, %v3338
        %3344 = vst [vmem:[#allocation3 + $0x380] sm:$0xff] %v3340
        %3345 = vst [vmem:[#allocation3 + $0x388] sm:$0xff] %v3341
        %v3346 = vld [vmem:[#allocation2] sm:$0xff]
        %v3347 = vld [vmem:[#allocation2 + $0x8] sm:$0xff]
        %v3348 = vld [vmem:[#allocation2 + $0x10] sm:$0xff]
        %v3349 = vld [vmem:[#allocation9] sm:$0x22]
        %v3351 = vunpack.c.l.b16 %v3349
        %v3352 = vunpack.c.h.b16 %v3349
        %v3353 = vpack.c.b16 %v3351, %v3351
        %v3354 = vpack.c.b16 %v3352, %v3352
        %v3356 = vshrl.u32 %v3353, 16
        %v3357 = vpack.i.b16 %v3356, %v3356
        %v3359 = vlaneseq
        %v3360 = vshrl.u32 %v3359, 7
        %v3361 = vsub.s32 1, %v3360
        %v3362 = vrot.slane %v3357, %v3361
        %v3364 = vshrl.u32 %v3354, 16
        %v3365 = vpack.i.b16 %v3364, %v3364
        %v3367 = vlaneseq
        %v3368 = vshrl.u32 %v3367, 7
        %v3369 = vsub.s32 1, %v3368
        %v3370 = vrot.slane %v3365, %v3369
        %3373 = vrot.lane.b32.xlu0 %v3362, 99
        %v3374 = vpop.permute.xlu0 %3373
        %3375 = vrot.lane.b32.xlu0 %v3370, 99
        %v3376 = vpop.permute.xlu0 %3375
        %vm3377 = vcmask 809984
        %v3378 = vsel %vm3377, %v3374, %v3376
        %v3382 = vmul.bf16 %v3346, %v3374
        %v3383 = vmul.bf16 %v3347, %v3378
        %v3384 = vmul.bf16 %v3348, %v3376
        %3388 = vrot.lane.b32.xlu0 %v3382, 29
        %v3389 = vpop.permute.xlu0 %3388
        %3390 = vrot.lane.b32.xlu0 %v3383, 29
        %v3391 = vpop.permute.xlu0 %3390
        %3392 = vrot.lane.b32.xlu0 %v3384, 29
        %v3393 = vpop.permute.xlu0 %3392
        %vm3394 = vcmask 236544
        %v3395 = vsel %vm3394, %v3389, %v3391
        %v3396 = vsel %vm3394, %v3391, %v3393
        %3399 = vst [vmem:[#allocation3 + $0x390] sm:$0xff] %v3395
        %3400 = vst [vmem:[#allocation3 + $0x398] sm:$0xff] %v3396
        %v3401 = vld [vmem:[#allocation2] sm:$0xff]
        %v3402 = vld [vmem:[#allocation2 + $0x8] sm:$0xff]
        %v3403 = vld [vmem:[#allocation2 + $0x10] sm:$0xff]
        %v3404 = vld [vmem:[#allocation9] sm:$0x44]
        %v3406 = vunpack.c.l.b16 %v3404
        %v3407 = vunpack.c.h.b16 %v3404
        %v3408 = vpack.c.b16 %v3406, %v3406
        %v3409 = vpack.c.b16 %v3407, %v3407
        %v3411 = vpack.i.b16 %v3408, %v3408
        %v3413 = vlaneseq
        %v3414 = vshrl.u32 %v3413, 7
        %v3415 = vsub.s32 2, %v3414
        %v3416 = vrot.slane %v3411, %v3415
        %v3418 = vpack.i.b16 %v3409, %v3409
        %v3420 = vlaneseq
        %v3421 = vshrl.u32 %v3420, 7
        %v3422 = vsub.s32 2, %v3421
        %v3423 = vrot.slane %v3418, %v3422
        %3426 = vrot.lane.b32.xlu0 %v3416, 100
        %v3427 = vpop.permute.xlu0 %3426
        %3428 = vrot.lane.b32.xlu0 %v3423, 100
        %v3429 = vpop.permute.xlu0 %3428
        %vm3430 = vcmask 818176
        %v3431 = vsel %vm3430, %v3427, %v3429
        %v3435 = vmul.bf16 %v3401, %v3427
        %v3436 = vmul.bf16 %v3402, %v3431
        %v3437 = vmul.bf16 %v3403, %v3429
        %3441 = vrot.lane.b32.xlu0 %v3435, 28
        %v3442 = vpop.permute.xlu0 %3441
        %3443 = vrot.lane.b32.xlu0 %v3436, 28
        %v3444 = vpop.permute.xlu0 %3443
        %3445 = vrot.lane.b32.xlu0 %v3437, 28
        %v3446 = vpop.permute.xlu0 %3445
        %vm3447 = vcmask 228352
        %v3448 = vsel %vm3447, %v3442, %v3444
        %v3449 = vsel %vm3447, %v3444, %v3446
        %3452 = vst [vmem:[#allocation3 + $0x3a0] sm:$0xff] %v3448
        %3453 = vst [vmem:[#allocation3 + $0x3a8] sm:$0xff] %v3449
        %v3454 = vld [vmem:[#allocation2] sm:$0xff]
        %v3455 = vld [vmem:[#allocation2 + $0x8] sm:$0xff]
        %v3456 = vld [vmem:[#allocation2 + $0x10] sm:$0xff]
        %v3457 = vld [vmem:[#allocation9] sm:$0x44]
        %v3459 = vunpack.c.l.b16 %v3457
        %v3460 = vunpack.c.h.b16 %v3457
        %v3461 = vpack.c.b16 %v3459, %v3459
        %v3462 = vpack.c.b16 %v3460, %v3460
        %v3464 = vshrl.u32 %v3461, 16
        %v3465 = vpack.i.b16 %v3464, %v3464
        %v3467 = vlaneseq
        %v3468 = vshrl.u32 %v3467, 7
        %v3469 = vsub.s32 2, %v3468
        %v3470 = vrot.slane %v3465, %v3469
        %v3472 = vshrl.u32 %v3462, 16
        %v3473 = vpack.i.b16 %v3472, %v3472
        %v3475 = vlaneseq
        %v3476 = vshrl.u32 %v3475, 7
        %v3477 = vsub.s32 2, %v3476
        %v3478 = vrot.slane %v3473, %v3477
        %3481 = vrot.lane.b32.xlu0 %v3470, 101
        %v3482 = vpop.permute.xlu0 %3481
        %3483 = vrot.lane.b32.xlu0 %v3478, 101
        %v3484 = vpop.permute.xlu0 %3483
        %vm3485 = vcmask 826368
        %v3486 = vsel %vm3485, %v3482, %v3484
        %v3490 = vmul.bf16 %v3454, %v3482
        %v3491 = vmul.bf16 %v3455, %v3486
        %v3492 = vmul.bf16 %v3456, %v3484
        %3496 = vrot.lane.b32.xlu0 %v3490, 27
        %v3497 = vpop.permute.xlu0 %3496
        %3498 = vrot.lane.b32.xlu0 %v3491, 27
        %v3499 = vpop.permute.xlu0 %3498
        %3500 = vrot.lane.b32.xlu0 %v3492, 27
        %v3501 = vpop.permute.xlu0 %3500
        %vm3502 = vcmask 220160
        %v3503 = vsel %vm3502, %v3497, %v3499
        %v3504 = vsel %vm3502, %v3499, %v3501
        %3507 = vst [vmem:[#allocation3 + $0x3b0] sm:$0xff] %v3503
        %3508 = vst [vmem:[#allocation3 + $0x3b8] sm:$0xff] %v3504
        %v3509 = vld [vmem:[#allocation2] sm:$0xff]
        %v3510 = vld [vmem:[#allocation2 + $0x8] sm:$0xff]
        %v3511 = vld [vmem:[#allocation2 + $0x10] sm:$0xff]
        %v3512 = vld [vmem:[#allocation9] sm:$0x88]
        %v3514 = vunpack.c.l.b16 %v3512
        %v3515 = vunpack.c.h.b16 %v3512
        %v3516 = vpack.c.b16 %v3514, %v3514
        %v3517 = vpack.c.b16 %v3515, %v3515
        %v3519 = vpack.i.b16 %v3516, %v3516
        %v3521 = vlaneseq
        %v3522 = vshrl.u32 %v3521, 7
        %v3523 = vsub.s32 3, %v3522
        %v3524 = vrot.slane %v3519, %v3523
        %v3526 = vpack.i.b16 %v3517, %v3517
        %v3528 = vlaneseq
        %v3529 = vshrl.u32 %v3528, 7
        %v3530 = vsub.s32 3, %v3529
        %v3531 = vrot.slane %v3526, %v3530
        %3534 = vrot.lane.b32.xlu0 %v3524, 102
        %v3535 = vpop.permute.xlu0 %3534
        %3536 = vrot.lane.b32.xlu0 %v3531, 102
        %v3537 = vpop.permute.xlu0 %3536
        %vm3538 = vcmask 834560
        %v3539 = vsel %vm3538, %v3535, %v3537
        %v3543 = vmul.bf16 %v3509, %v3535
        %v3544 = vmul.bf16 %v3510, %v3539
        %v3545 = vmul.bf16 %v3511, %v3537
        %3549 = vrot.lane.b32.xlu0 %v3543, 26
        %v3550 = vpop.permute.xlu0 %3549
        %3551 = vrot.lane.b32.xlu0 %v3544, 26
        %v3552 = vpop.permute.xlu0 %3551
        %3553 = vrot.lane.b32.xlu0 %v3545, 26
        %v3554 = vpop.permute.xlu0 %3553
        %vm3555 = vcmask 211968
        %v3556 = vsel %vm3555, %v3550, %v3552
        %v3557 = vsel %vm3555, %v3552, %v3554
        %3560 = vst [vmem:[#allocation3 + $0x3c0] sm:$0xff] %v3556
        %3561 = vst [vmem:[#allocation3 + $0x3c8] sm:$0xff] %v3557
        %v3562 = vld [vmem:[#allocation2] sm:$0xff]
        %v3563 = vld [vmem:[#allocation2 + $0x8] sm:$0xff]
        %v3564 = vld [vmem:[#allocation2 + $0x10] sm:$0xff]
        %v3565 = vld [vmem:[#allocation9] sm:$0x88]
        %v3567 = vunpack.c.l.b16 %v3565
        %v3568 = vunpack.c.h.b16 %v3565
        %v3569 = vpack.c.b16 %v3567, %v3567
        %v3570 = vpack.c.b16 %v3568, %v3568
        %v3572 = vshrl.u32 %v3569, 16
        %v3573 = vpack.i.b16 %v3572, %v3572
        %v3575 = vlaneseq
        %v3576 = vshrl.u32 %v3575, 7
        %v3577 = vsub.s32 3, %v3576
        %v3578 = vrot.slane %v3573, %v3577
        %v3580 = vshrl.u32 %v3570, 16
        %v3581 = vpack.i.b16 %v3580, %v3580
        %v3583 = vlaneseq
        %v3584 = vshrl.u32 %v3583, 7
        %v3585 = vsub.s32 3, %v3584
        %v3586 = vrot.slane %v3581, %v3585
        %3589 = vrot.lane.b32.xlu0 %v3578, 103
        %v3590 = vpop.permute.xlu0 %3589
        %3591 = vrot.lane.b32.xlu0 %v3586, 103
        %v3592 = vpop.permute.xlu0 %3591
        %vm3593 = vcmask 842752
        %v3594 = vsel %vm3593, %v3590, %v3592
        %v3598 = vmul.bf16 %v3562, %v3590
        %v3599 = vmul.bf16 %v3563, %v3594
        %v3600 = vmul.bf16 %v3564, %v3592
        %3604 = vrot.lane.b32.xlu0 %v3598, 25
        %v3605 = vpop.permute.xlu0 %3604
        %3606 = vrot.lane.b32.xlu0 %v3599, 25
        %v3607 = vpop.permute.xlu0 %3606
        %3608 = vrot.lane.b32.xlu0 %v3600, 25
        %v3609 = vpop.permute.xlu0 %3608
        %vm3610 = vcmask 203776
        %v3611 = vsel %vm3610, %v3605, %v3607
        %v3612 = vsel %vm3610, %v3607, %v3609
        %3615 = vst [vmem:[#allocation3 + $0x3d0] sm:$0xff] %v3611
        %3616 = vst [vmem:[#allocation3 + $0x3d8] sm:$0xff] %v3612
        %v3617 = vld [vmem:[#allocation2] sm:$0xff]
        %v3618 = vld [vmem:[#allocation2 + $0x8] sm:$0xff]
        %v3619 = vld [vmem:[#allocation2 + $0x10] sm:$0xff]
        %v3620 = vld [vmem:[#allocation9 + $0x8] sm:$0x11]
        %v3622 = vunpack.c.l.b16 %v3620
        %v3623 = vunpack.c.h.b16 %v3620
        %v3624 = vpack.c.b16 %v3622, %v3622
        %v3625 = vpack.c.b16 %v3623, %v3623
        %v3627 = vpack.i.b16 %v3624, %v3624
        %v3629 = vlaneseq
        %v3630 = vshrl.u32 %v3629, 7
        %v3631 = vsub.s32 0, %v3630
        %v3632 = vrot.slane %v3627, %v3631
        %v3634 = vpack.i.b16 %v3625, %v3625
        %v3636 = vlaneseq
        %v3637 = vshrl.u32 %v3636, 7
        %v3638 = vsub.s32 0, %v3637
        %v3639 = vrot.slane %v3634, %v3638
        %3642 = vrot.lane.b32.xlu0 %v3632, 104
        %v3643 = vpop.permute.xlu0 %3642
        %3644 = vrot.lane.b32.xlu0 %v3639, 104
        %v3645 = vpop.permute.xlu0 %3644
        %v3646 = vsel %vm1248, %v3643, %v3645
        %v3650 = vmul.bf16 %v3617, %v3643
        %v3651 = vmul.bf16 %v3618, %v3646
        %v3652 = vmul.bf16 %v3619, %v3645
        %3656 = vrot.lane.b32.xlu0 %v3650, 24
        %v3657 = vpop.permute.xlu0 %3656
        %3658 = vrot.lane.b32.xlu0 %v3651, 24
        %v3659 = vpop.permute.xlu0 %3658
        %3660 = vrot.lane.b32.xlu0 %v3652, 24
        %v3661 = vpop.permute.xlu0 %3660
        %v3662 = vsel %vm1231, %v3657, %v3659
        %v3663 = vsel %vm1231, %v3659, %v3661
        %3666 = vst [vmem:[#allocation3 + $0x3e0] sm:$0xff] %v3662
        %3667 = vst [vmem:[#allocation3 + $0x3e8] sm:$0xff] %v3663
        %v3668 = vld [vmem:[#allocation2] sm:$0xff]
        %v3669 = vld [vmem:[#allocation2 + $0x8] sm:$0xff]
        %v3670 = vld [vmem:[#allocation2 + $0x10] sm:$0xff]
        %v3671 = vld [vmem:[#allocation9] sm:$0x11]
        %v3673 = vunpack.c.l.b16 %v3671
        %v3674 = vunpack.c.h.b16 %v3671
        %v3675 = vpack.c.b16 %v3673, %v3673
        %v3676 = vpack.c.b16 %v3674, %v3674
        %v3678 = vpack.i.b16 %v3675, %v3675
        %v3680 = vlaneseq
        %v3681 = vshrl.u32 %v3680, 7
        %v3682 = vsub.s32 0, %v3681
        %v3683 = vrot.slane %v3678, %v3682
        %v3685 = vpack.i.b16 %v3676, %v3676
        %v3687 = vlaneseq
        %v3688 = vshrl.u32 %v3687, 7
        %v3689 = vsub.s32 0, %v3688
        %v3690 = vrot.slane %v3685, %v3689
        %3693 = vrot.lane.b32.xlu0 %v3683, 112
        %v3694 = vpop.permute.xlu0 %3693
        %3695 = vrot.lane.b32.xlu0 %v3690, 112
        %v3696 = vpop.permute.xlu0 %3695
        %v3697 = vsel %vm816, %v3694, %v3696
        %v3701 = vmul.bf16 %v3668, %v3694
        %v3702 = vmul.bf16 %v3669, %v3697
        %v3703 = vmul.bf16 %v3670, %v3696
        %3707 = vrot.lane.b32.xlu0 %v3701, 16
        %v3708 = vpop.permute.xlu0 %3707
        %3709 = vrot.lane.b32.xlu0 %v3702, 16
        %v3710 = vpop.permute.xlu0 %3709
        %3711 = vrot.lane.b32.xlu0 %v3703, 16
        %v3712 = vpop.permute.xlu0 %3711
        %v3713 = vsel %vm799, %v3708, %v3710
        %v3714 = vsel %vm799, %v3710, %v3712
        %3717 = vst [vmem:[#allocation3 + $0x3f0] sm:$0xff] %v3713
        %3718 = vst [vmem:[#allocation3 + $0x3f8] sm:$0xff] %v3714
        %v3719 = vld [vmem:[#allocation2] sm:$0xff]
        %v3720 = vld [vmem:[#allocation2 + $0x8] sm:$0xff]
        %v3721 = vld [vmem:[#allocation2 + $0x10] sm:$0xff]
        %v3722 = vld [vmem:[#allocation9] sm:$0x11]
        %v3724 = vunpack.c.l.b16 %v3722
        %v3725 = vunpack.c.h.b16 %v3722
        %v3726 = vpack.c.b16 %v3724, %v3724
        %v3727 = vpack.c.b16 %v3725, %v3725
        %v3729 = vshrl.u32 %v3726, 16
        %v3730 = vpack.i.b16 %v3729, %v3729
        %v3732 = vlaneseq
        %v3733 = vshrl.u32 %v3732, 7
        %v3734 = vsub.s32 0, %v3733
        %v3735 = vrot.slane %v3730, %v3734
        %v3737 = vshrl.u32 %v3727, 16
        %v3738 = vpack.i.b16 %v3737, %v3737
        %v3740 = vlaneseq
        %v3741 = vshrl.u32 %v3740, 7
        %v3742 = vsub.s32 0, %v3741
        %v3743 = vrot.slane %v3738, %v3742
        %3746 = vrot.lane.b32.xlu0 %v3735, 113
        %v3747 = vpop.permute.xlu0 %3746
        %3748 = vrot.lane.b32.xlu0 %v3743, 113
        %v3749 = vpop.permute.xlu0 %3748
        %vm3750 = vcmask 924672
        %v3751 = vsel %vm3750, %v3747, %v3749
        %v3755 = vmul.bf16 %v3719, %v3747
        %v3756 = vmul.bf16 %v3720, %v3751
        %v3757 = vmul.bf16 %v3721, %v3749
        %3761 = vrot.lane.b32.xlu0 %v3755, 15
        %v3762 = vpop.permute.xlu0 %3761
        %3763 = vrot.lane.b32.xlu0 %v3756, 15
        %v3764 = vpop.permute.xlu0 %3763
        %3765 = vrot.lane.b32.xlu0 %v3757, 15
        %v3766 = vpop.permute.xlu0 %3765
        %vm3767 = vcmask 121856
        %v3768 = vsel %vm3767, %v3762, %v3764
        %v3769 = vsel %vm3767, %v3764, %v3766
        %3772 = vst [vmem:[#allocation3 + $0x400] sm:$0xff] %v3768
        %3773 = vst [vmem:[#allocation3 + $0x408] sm:$0xff] %v3769
        %v3774 = vld [vmem:[#allocation2] sm:$0xff]
        %v3775 = vld [vmem:[#allocation2 + $0x8] sm:$0xff]
        %v3776 = vld [vmem:[#allocation2 + $0x10] sm:$0xff]
        %v3777 = vld [vmem:[#allocation9] sm:$0x22]
        %v3779 = vunpack.c.l.b16 %v3777
        %v3780 = vunpack.c.h.b16 %v3777
        %v3781 = vpack.c.b16 %v3779, %v3779
        %v3782 = vpack.c.b16 %v3780, %v3780
        %v3784 = vpack.i.b16 %v3781, %v3781
        %v3786 = vlaneseq
        %v3787 = vshrl.u32 %v3786, 7
        %v3788 = vsub.s32 1, %v3787
        %v3789 = vrot.slane %v3784, %v3788
        %v3791 = vpack.i.b16 %v3782, %v3782
        %v3793 = vlaneseq
        %v3794 = vshrl.u32 %v3793, 7
        %v3795 = vsub.s32 1, %v3794
        %v3796 = vrot.slane %v3791, %v3795
        %3799 = vrot.lane.b32.xlu0 %v3789, 114
        %v3800 = vpop.permute.xlu0 %3799
        %3801 = vrot.lane.b32.xlu0 %v3796, 114
        %v3802 = vpop.permute.xlu0 %3801
        %vm3803 = vcmask 932864
        %v3804 = vsel %vm3803, %v3800, %v3802
        %v3808 = vmul.bf16 %v3774, %v3800
        %v3809 = vmul.bf16 %v3775, %v3804
        %v3810 = vmul.bf16 %v3776, %v3802
        %3814 = vrot.lane.b32.xlu0 %v3808, 14
        %v3815 = vpop.permute.xlu0 %3814
        %3816 = vrot.lane.b32.xlu0 %v3809, 14
        %v3817 = vpop.permute.xlu0 %3816
        %3818 = vrot.lane.b32.xlu0 %v3810, 14
        %v3819 = vpop.permute.xlu0 %3818
        %vm3820 = vcmask 113664
        %v3821 = vsel %vm3820, %v3815, %v3817
        %v3822 = vsel %vm3820, %v3817, %v3819
        %3825 = vst [vmem:[#allocation3 + $0x410] sm:$0xff] %v3821
        %3826 = vst [vmem:[#allocation3 + $0x418] sm:$0xff] %v3822
        %v3827 = vld [vmem:[#allocation2] sm:$0xff]
        %v3828 = vld [vmem:[#allocation2 + $0x8] sm:$0xff]
        %v3829 = vld [vmem:[#allocation2 + $0x10] sm:$0xff]
        %v3830 = vld [vmem:[#allocation9] sm:$0x22]
        %v3832 = vunpack.c.l.b16 %v3830
        %v3833 = vunpack.c.h.b16 %v3830
        %v3834 = vpack.c.b16 %v3832, %v3832
        %v3835 = vpack.c.b16 %v3833, %v3833
        %v3837 = vshrl.u32 %v3834, 16
        %v3838 = vpack.i.b16 %v3837, %v3837
        %v3840 = vlaneseq
        %v3841 = vshrl.u32 %v3840, 7
        %v3842 = vsub.s32 1, %v3841
        %v3843 = vrot.slane %v3838, %v3842
        %v3845 = vshrl.u32 %v3835, 16
        %v3846 = vpack.i.b16 %v3845, %v3845
        %v3848 = vlaneseq
        %v3849 = vshrl.u32 %v3848, 7
        %v3850 = vsub.s32 1, %v3849
        %v3851 = vrot.slane %v3846, %v3850
        %3854 = vrot.lane.b32.xlu0 %v3843, 115
        %v3855 = vpop.permute.xlu0 %3854
        %3856 = vrot.lane.b32.xlu0 %v3851, 115
        %v3857 = vpop.permute.xlu0 %3856
        %vm3858 = vcmask 941056
        %v3859 = vsel %vm3858, %v3855, %v3857
        %v3863 = vmul.bf16 %v3827, %v3855
        %v3864 = vmul.bf16 %v3828, %v3859
        %v3865 = vmul.bf16 %v3829, %v3857
        %3869 = vrot.lane.b32.xlu0 %v3863, 13
        %v3870 = vpop.permute.xlu0 %3869
        %3871 = vrot.lane.b32.xlu0 %v3864, 13
        %v3872 = vpop.permute.xlu0 %3871
        %3873 = vrot.lane.b32.xlu0 %v3865, 13
        %v3874 = vpop.permute.xlu0 %3873
        %vm3875 = vcmask 105472
        %v3876 = vsel %vm3875, %v3870, %v3872
        %v3877 = vsel %vm3875, %v3872, %v3874
        %3880 = vst [vmem:[#allocation3 + $0x420] sm:$0xff] %v3876
        %3881 = vst [vmem:[#allocation3 + $0x428] sm:$0xff] %v3877
        %v3882 = vld [vmem:[#allocation2] sm:$0xff]
        %v3883 = vld [vmem:[#allocation2 + $0x8] sm:$0xff]
        %v3884 = vld [vmem:[#allocation2 + $0x10] sm:$0xff]
        %v3885 = vld [vmem:[#allocation9] sm:$0x44]
        %v3887 = vunpack.c.l.b16 %v3885
        %v3888 = vunpack.c.h.b16 %v3885
        %v3889 = vpack.c.b16 %v3887, %v3887
        %v3890 = vpack.c.b16 %v3888, %v3888
        %v3892 = vpack.i.b16 %v3889, %v3889
        %v3894 = vlaneseq
        %v3895 = vshrl.u32 %v3894, 7
        %v3896 = vsub.s32 2, %v3895
        %v3897 = vrot.slane %v3892, %v3896
        %v3899 = vpack.i.b16 %v3890, %v3890
        %v3901 = vlaneseq
        %v3902 = vshrl.u32 %v3901, 7
        %v3903 = vsub.s32 2, %v3902
        %v3904 = vrot.slane %v3899, %v3903
        %3907 = vrot.lane.b32.xlu0 %v3897, 116
        %v3908 = vpop.permute.xlu0 %3907
        %3909 = vrot.lane.b32.xlu0 %v3904, 116
        %v3910 = vpop.permute.xlu0 %3909
        %vm3911 = vcmask 949248
        %v3912 = vsel %vm3911, %v3908, %v3910
        %v3916 = vmul.bf16 %v3882, %v3908
        %v3917 = vmul.bf16 %v3883, %v3912
        %v3918 = vmul.bf16 %v3884, %v3910
        %3922 = vrot.lane.b32.xlu0 %v3916, 12
        %v3923 = vpop.permute.xlu0 %3922
        %3924 = vrot.lane.b32.xlu0 %v3917, 12
        %v3925 = vpop.permute.xlu0 %3924
        %3926 = vrot.lane.b32.xlu0 %v3918, 12
        %v3927 = vpop.permute.xlu0 %3926
        %vm3928 = vcmask 97280
        %v3929 = vsel %vm3928, %v3923, %v3925
        %v3930 = vsel %vm3928, %v3925, %v3927
        %3933 = vst [vmem:[#allocation3 + $0x430] sm:$0xff] %v3929
        %3934 = vst [vmem:[#allocation3 + $0x438] sm:$0xff] %v3930
        %v3935 = vld [vmem:[#allocation2] sm:$0xff]
        %v3936 = vld [vmem:[#allocation2 + $0x8] sm:$0xff]
        %v3937 = vld [vmem:[#allocation2 + $0x10] sm:$0xff]
        %v3938 = vld [vmem:[#allocation9] sm:$0x44]
        %v3940 = vunpack.c.l.b16 %v3938
        %v3941 = vunpack.c.h.b16 %v3938
        %v3942 = vpack.c.b16 %v3940, %v3940
        %v3943 = vpack.c.b16 %v3941, %v3941
        %v3945 = vshrl.u32 %v3942, 16
        %v3946 = vpack.i.b16 %v3945, %v3945
        %v3948 = vlaneseq
        %v3949 = vshrl.u32 %v3948, 7
        %v3950 = vsub.s32 2, %v3949
        %v3951 = vrot.slane %v3946, %v3950
        %v3953 = vshrl.u32 %v3943, 16
        %v3954 = vpack.i.b16 %v3953, %v3953
        %v3956 = vlaneseq
        %v3957 = vshrl.u32 %v3956, 7
        %v3958 = vsub.s32 2, %v3957
        %v3959 = vrot.slane %v3954, %v3958
        %3962 = vrot.lane.b32.xlu0 %v3951, 117
        %v3963 = vpop.permute.xlu0 %3962
        %3964 = vrot.lane.b32.xlu0 %v3959, 117
        %v3965 = vpop.permute.xlu0 %3964
        %vm3966 = vcmask 957440
        %v3967 = vsel %vm3966, %v3963, %v3965
        %v3971 = vmul.bf16 %v3935, %v3963
        %v3972 = vmul.bf16 %v3936, %v3967
        %v3973 = vmul.bf16 %v3937, %v3965
        %3977 = vrot.lane.b32.xlu0 %v3971, 11
        %v3978 = vpop.permute.xlu0 %3977
        %3979 = vrot.lane.b32.xlu0 %v3972, 11
        %v3980 = vpop.permute.xlu0 %3979
        %3981 = vrot.lane.b32.xlu0 %v3973, 11
        %v3982 = vpop.permute.xlu0 %3981
        %vm3983 = vcmask 89088
        %v3984 = vsel %vm3983, %v3978, %v3980
        %v3985 = vsel %vm3983, %v3980, %v3982
        %3988 = vst [vmem:[#allocation3 + $0x440] sm:$0xff] %v3984
        %3989 = vst [vmem:[#allocation3 + $0x448] sm:$0xff] %v3985
        %v3990 = vld [vmem:[#allocation2] sm:$0xff]
        %v3991 = vld [vmem:[#allocation2 + $0x8] sm:$0xff]
        %v3992 = vld [vmem:[#allocation2 + $0x10] sm:$0xff]
        %v3993 = vld [vmem:[#allocation9] sm:$0x88]
        %v3995 = vunpack.c.l.b16 %v3993
        %v3996 = vunpack.c.h.b16 %v3993
        %v3997 = vpack.c.b16 %v3995, %v3995
        %v3998 = vpack.c.b16 %v3996, %v3996
        %v4000 = vpack.i.b16 %v3997, %v3997
        %v4002 = vlaneseq
        %v4003 = vshrl.u32 %v4002, 7
        %v4004 = vsub.s32 3, %v4003
        %v4005 = vrot.slane %v4000, %v4004
        %v4007 = vpack.i.b16 %v3998, %v3998
        %v4009 = vlaneseq
        %v4010 = vshrl.u32 %v4009, 7
        %v4011 = vsub.s32 3, %v4010
        %v4012 = vrot.slane %v4007, %v4011
        %4015 = vrot.lane.b32.xlu0 %v4005, 118
        %v4016 = vpop.permute.xlu0 %4015
        %4017 = vrot.lane.b32.xlu0 %v4012, 118
        %v4018 = vpop.permute.xlu0 %4017
        %vm4019 = vcmask 965632
        %v4020 = vsel %vm4019, %v4016, %v4018
        %v4024 = vmul.bf16 %v3990, %v4016
        %v4025 = vmul.bf16 %v3991, %v4020
        %v4026 = vmul.bf16 %v3992, %v4018
        %4030 = vrot.lane.b32.xlu0 %v4024, 10
        %v4031 = vpop.permute.xlu0 %4030
        %4032 = vrot.lane.b32.xlu0 %v4025, 10
        %v4033 = vpop.permute.xlu0 %4032
        %4034 = vrot.lane.b32.xlu0 %v4026, 10
        %v4035 = vpop.permute.xlu0 %4034
        %vm4036 = vcmask 80896
        %v4037 = vsel %vm4036, %v4031, %v4033
        %v4038 = vsel %vm4036, %v4033, %v4035
        %4041 = vst [vmem:[#allocation3 + $0x450] sm:$0xff] %v4037
        %4042 = vst [vmem:[#allocation3 + $0x458] sm:$0xff] %v4038
        %v4043 = vld [vmem:[#allocation2] sm:$0xff]
        %v4044 = vld [vmem:[#allocation2 + $0x8] sm:$0xff]
        %v4045 = vld [vmem:[#allocation2 + $0x10] sm:$0xff]
        %v4046 = vld [vmem:[#allocation9] sm:$0x88]
        %v4048 = vunpack.c.l.b16 %v4046
        %v4049 = vunpack.c.h.b16 %v4046
        %v4050 = vpack.c.b16 %v4048, %v4048
        %v4051 = vpack.c.b16 %v4049, %v4049
        %v4053 = vshrl.u32 %v4050, 16
        %v4054 = vpack.i.b16 %v4053, %v4053
        %v4056 = vlaneseq
        %v4057 = vshrl.u32 %v4056, 7
        %v4058 = vsub.s32 3, %v4057
        %v4059 = vrot.slane %v4054, %v4058
        %v4061 = vshrl.u32 %v4051, 16
        %v4062 = vpack.i.b16 %v4061, %v4061
        %v4064 = vlaneseq
        %v4065 = vshrl.u32 %v4064, 7
        %v4066 = vsub.s32 3, %v4065
        %v4067 = vrot.slane %v4062, %v4066
        %4070 = vrot.lane.b32.xlu0 %v4059, 119
        %v4071 = vpop.permute.xlu0 %4070
        %4072 = vrot.lane.b32.xlu0 %v4067, 119
        %v4073 = vpop.permute.xlu0 %4072
        %vm4074 = vcmask 973824
        %v4075 = vsel %vm4074, %v4071, %v4073
        %v4079 = vmul.bf16 %v4043, %v4071
        %v4080 = vmul.bf16 %v4044, %v4075
        %v4081 = vmul.bf16 %v4045, %v4073
        %4085 = vrot.lane.b32.xlu0 %v4079, 9
        %v4086 = vpop.permute.xlu0 %4085
        %4087 = vrot.lane.b32.xlu0 %v4080, 9
        %v4088 = vpop.permute.xlu0 %4087
        %4089 = vrot.lane.b32.xlu0 %v4081, 9
        %v4090 = vpop.permute.xlu0 %4089
        %vm4091 = vcmask 72704
        %v4092 = vsel %vm4091, %v4086, %v4088
        %v4093 = vsel %vm4091, %v4088, %v4090
        %4096 = vst [vmem:[#allocation3 + $0x460] sm:$0xff] %v4092
        %4097 = vst [vmem:[#allocation3 + $0x468] sm:$0xff] %v4093
        %v4098 = vld [vmem:[#allocation2] sm:$0xff]
        %v4099 = vld [vmem:[#allocation2 + $0x8] sm:$0xff]
        %v4100 = vld [vmem:[#allocation2 + $0x10] sm:$0xff]
        %v4101 = vld [vmem:[#allocation9 + $0x8] sm:$0x11]
        %v4103 = vunpack.c.l.b16 %v4101
        %v4104 = vunpack.c.h.b16 %v4101
        %v4105 = vpack.c.b16 %v4103, %v4103
        %v4106 = vpack.c.b16 %v4104, %v4104
        %v4108 = vpack.i.b16 %v4105, %v4105
        %v4110 = vlaneseq
        %v4111 = vshrl.u32 %v4110, 7
        %v4112 = vsub.s32 0, %v4111
        %v4113 = vrot.slane %v4108, %v4112
        %v4115 = vpack.i.b16 %v4106, %v4106
        %v4117 = vlaneseq
        %v4118 = vshrl.u32 %v4117, 7
        %v4119 = vsub.s32 0, %v4118
        %v4120 = vrot.slane %v4115, %v4119
        %4123 = vrot.lane.b32.xlu0 %v4113, 120
        %v4124 = vpop.permute.xlu0 %4123
        %4125 = vrot.lane.b32.xlu0 %v4120, 120
        %v4126 = vpop.permute.xlu0 %4125
        %v4127 = vsel %vm763, %v4124, %v4126
        %v4131 = vmul.bf16 %v4098, %v4124
        %v4132 = vmul.bf16 %v4099, %v4127
        %v4133 = vmul.bf16 %v4100, %v4126
        %4137 = vrot.lane.b32.xlu0 %v4131, 8
        %v4138 = vpop.permute.xlu0 %4137
        %4139 = vrot.lane.b32.xlu0 %v4132, 8
        %v4140 = vpop.permute.xlu0 %4139
        %4141 = vrot.lane.b32.xlu0 %v4133, 8
        %v4142 = vpop.permute.xlu0 %4141
        %v4143 = vsel %vm746, %v4138, %v4140
        %v4144 = vsel %vm746, %v4140, %v4142
        %4147 = vst [vmem:[#allocation3 + $0x470] sm:$0xff] %v4143
        %4148 = vst [vmem:[#allocation3 + $0x478] sm:$0xff] %v4144
        %v4149 = vld [vmem:[#allocation2 + $0x8] sm:$0xff]
        %v4150 = vld [vmem:[#allocation2 + $0x10] sm:$0xff]
        %v4151 = vld [vmem:[#allocation9] sm:$0x11]
        %v4153 = vunpack.c.l.b16 %v4151
        %v4154 = vunpack.c.h.b16 %v4151
        %v4155 = vpack.c.b16 %v4153, %v4153
        %v4156 = vpack.c.b16 %v4154, %v4154
        %v4158 = vpack.i.b16 %v4155, %v4155
        %v4160 = vlaneseq
        %v4161 = vshrl.u32 %v4160, 7
        %v4162 = vsub.s32 0, %v4161
        %v4163 = vrot.slane %v4158, %v4162
        %v4165 = vpack.i.b16 %v4156, %v4156
        %v4167 = vlaneseq
        %v4168 = vshrl.u32 %v4167, 7
        %v4169 = vsub.s32 0, %v4168
        %v4170 = vrot.slane %v4165, %v4169
        %v4171 = vmul.bf16 %v4149, %v4163
        %v4172 = vmul.bf16 %v4150, %v4170
        %4173 = vst [vmem:[#allocation3 + $0x480] sm:$0xff] %v4171
        %4174 = vst [vmem:[#allocation3 + $0x488] sm:$0xff] %v4172
        %v4175 = vld [vmem:[#allocation2 + $0x8] sm:$0xff]
        %v4176 = vld [vmem:[#allocation2 + $0x10] sm:$0xff]
        %v4177 = vld [vmem:[#allocation2 + $0x18] sm:$0xff]
        %v4178 = vld [vmem:[#allocation9] sm:$0x11]
        %v4180 = vunpack.c.l.b16 %v4178
        %v4181 = vunpack.c.h.b16 %v4178
        %v4182 = vpack.c.b16 %v4180, %v4180
        %v4183 = vpack.c.b16 %v4181, %v4181
        %v4185 = vshrl.u32 %v4182, 16
        %v4186 = vpack.i.b16 %v4185, %v4185
        %v4188 = vlaneseq
        %v4189 = vshrl.u32 %v4188, 7
        %v4190 = vsub.s32 0, %v4189
        %v4191 = vrot.slane %v4186, %v4190
        %v4193 = vshrl.u32 %v4183, 16
        %v4194 = vpack.i.b16 %v4193, %v4193
        %v4196 = vlaneseq
        %v4197 = vshrl.u32 %v4196, 7
        %v4198 = vsub.s32 0, %v4197
        %v4199 = vrot.slane %v4194, %v4198
        %4202 = vrot.lane.b32.xlu0 %v4191, 1
        %v4203 = vpop.permute.xlu0 %4202
        %4204 = vrot.lane.b32.xlu0 %v4199, 1
        %v4205 = vpop.permute.xlu0 %4204
        %v4206 = vsel %vm369, %v4203, %v4205
        %v4210 = vmul.bf16 %v4175, %v4203
        %v4211 = vmul.bf16 %v4176, %v4206
        %v4212 = vmul.bf16 %v4177, %v4205
        %4216 = vrot.lane.b32.xlu0 %v4210, 127
        %v4217 = vpop.permute.xlu0 %4216
        %4218 = vrot.lane.b32.xlu0 %v4211, 127
        %v4219 = vpop.permute.xlu0 %4218
        %4220 = vrot.lane.b32.xlu0 %v4212, 127
        %v4221 = vpop.permute.xlu0 %4220
        %v4222 = vsel %vm386, %v4217, %v4219
        %v4223 = vsel %vm386, %v4219, %v4221
        %4226 = vst [vmem:[#allocation3 + $0x490] sm:$0xff] %v4222
        %4227 = vst [vmem:[#allocation3 + $0x498] sm:$0xff] %v4223
        %v4228 = vld [vmem:[#allocation2 + $0x8] sm:$0xff]
        %v4229 = vld [vmem:[#allocation2 + $0x10] sm:$0xff]
        %v4230 = vld [vmem:[#allocation2 + $0x18] sm:$0xff]
        %v4231 = vld [vmem:[#allocation9] sm:$0x22]
        %v4233 = vunpack.c.l.b16 %v4231
        %v4234 = vunpack.c.h.b16 %v4231
        %v4235 = vpack.c.b16 %v4233, %v4233
        %v4236 = vpack.c.b16 %v4234, %v4234
        %v4238 = vpack.i.b16 %v4235, %v4235
        %v4240 = vlaneseq
        %v4241 = vshrl.u32 %v4240, 7
        %v4242 = vsub.s32 1, %v4241
        %v4243 = vrot.slane %v4238, %v4242
        %v4245 = vpack.i.b16 %v4236, %v4236
        %v4247 = vlaneseq
        %v4248 = vshrl.u32 %v4247, 7
        %v4249 = vsub.s32 1, %v4248
        %v4250 = vrot.slane %v4245, %v4249
        %4253 = vrot.lane.b32.xlu0 %v4243, 2
        %v4254 = vpop.permute.xlu0 %4253
        %4255 = vrot.lane.b32.xlu0 %v4250, 2
        %v4256 = vpop.permute.xlu0 %4255
        %v4257 = vsel %vm422, %v4254, %v4256
        %v4261 = vmul.bf16 %v4228, %v4254
        %v4262 = vmul.bf16 %v4229, %v4257
        %v4263 = vmul.bf16 %v4230, %v4256
        %4267 = vrot.lane.b32.xlu0 %v4261, 126
        %v4268 = vpop.permute.xlu0 %4267
        %4269 = vrot.lane.b32.xlu0 %v4262, 126
        %v4270 = vpop.permute.xlu0 %4269
        %4271 = vrot.lane.b32.xlu0 %v4263, 126
        %v4272 = vpop.permute.xlu0 %4271
        %v4273 = vsel %vm439, %v4268, %v4270
        %v4274 = vsel %vm439, %v4270, %v4272
        %4277 = vst [vmem:[#allocation3 + $0x4a0] sm:$0xff] %v4273
        %4278 = vst [vmem:[#allocation3 + $0x4a8] sm:$0xff] %v4274
        %v4279 = vld [vmem:[#allocation2 + $0x8] sm:$0xff]
        %v4280 = vld [vmem:[#allocation2 + $0x10] sm:$0xff]
        %v4281 = vld [vmem:[#allocation2 + $0x18] sm:$0xff]
        %v4282 = vld [vmem:[#allocation9] sm:$0x22]
        %v4284 = vunpack.c.l.b16 %v4282
        %v4285 = vunpack.c.h.b16 %v4282
        %v4286 = vpack.c.b16 %v4284, %v4284
        %v4287 = vpack.c.b16 %v4285, %v4285
        %v4289 = vshrl.u32 %v4286, 16
        %v4290 = vpack.i.b16 %v4289, %v4289
        %v4292 = vlaneseq
        %v4293 = vshrl.u32 %v4292, 7
        %v4294 = vsub.s32 1, %v4293
        %v4295 = vrot.slane %v4290, %v4294
        %v4297 = vshrl.u32 %v4287, 16
        %v4298 = vpack.i.b16 %v4297, %v4297
        %v4300 = vlaneseq
        %v4301 = vshrl.u32 %v4300, 7
        %v4302 = vsub.s32 1, %v4301
        %v4303 = vrot.slane %v4298, %v4302
        %4306 = vrot.lane.b32.xlu0 %v4295, 3
        %v4307 = vpop.permute.xlu0 %4306
        %4308 = vrot.lane.b32.xlu0 %v4303, 3
        %v4309 = vpop.permute.xlu0 %4308
        %v4310 = vsel %vm477, %v4307, %v4309
        %v4314 = vmul.bf16 %v4279, %v4307
        %v4315 = vmul.bf16 %v4280, %v4310
        %v4316 = vmul.bf16 %v4281, %v4309
        %4320 = vrot.lane.b32.xlu0 %v4314, 125
        %v4321 = vpop.permute.xlu0 %4320
        %4322 = vrot.lane.b32.xlu0 %v4315, 125
        %v4323 = vpop.permute.xlu0 %4322
        %4324 = vrot.lane.b32.xlu0 %v4316, 125
        %v4325 = vpop.permute.xlu0 %4324
        %v4326 = vsel %vm494, %v4321, %v4323
        %v4327 = vsel %vm494, %v4323, %v4325
        %4330 = vst [vmem:[#allocation3 + $0x4b0] sm:$0xff] %v4326
        %4331 = vst [vmem:[#allocation3 + $0x4b8] sm:$0xff] %v4327
        %v4332 = vld [vmem:[#allocation2 + $0x8] sm:$0xff]
        %v4333 = vld [vmem:[#allocation2 + $0x10] sm:$0xff]
        %v4334 = vld [vmem:[#allocation2 + $0x18] sm:$0xff]
        %v4335 = vld [vmem:[#allocation9] sm:$0x44]
        %v4337 = vunpack.c.l.b16 %v4335
        %v4338 = vunpack.c.h.b16 %v4335
        %v4339 = vpack.c.b16 %v4337, %v4337
        %v4340 = vpack.c.b16 %v4338, %v4338
        %v4342 = vpack.i.b16 %v4339, %v4339
        %v4344 = vlaneseq
        %v4345 = vshrl.u32 %v4344, 7
        %v4346 = vsub.s32 2, %v4345
        %v4347 = vrot.slane %v4342, %v4346
        %v4349 = vpack.i.b16 %v4340, %v4340
        %v4351 = vlaneseq
        %v4352 = vshrl.u32 %v4351, 7
        %v4353 = vsub.s32 2, %v4352
        %v4354 = vrot.slane %v4349, %v4353
        %4357 = vrot.lane.b32.xlu0 %v4347, 4
        %v4358 = vpop.permute.xlu0 %4357
        %4359 = vrot.lane.b32.xlu0 %v4354, 4
        %v4360 = vpop.permute.xlu0 %4359
        %v4361 = vsel %vm530, %v4358, %v4360
        %v4365 = vmul.bf16 %v4332, %v4358
        %v4366 = vmul.bf16 %v4333, %v4361
        %v4367 = vmul.bf16 %v4334, %v4360
        %4371 = vrot.lane.b32.xlu0 %v4365, 124
        %v4372 = vpop.permute.xlu0 %4371
        %4373 = vrot.lane.b32.xlu0 %v4366, 124
        %v4374 = vpop.permute.xlu0 %4373
        %4375 = vrot.lane.b32.xlu0 %v4367, 124
        %v4376 = vpop.permute.xlu0 %4375
        %v4377 = vsel %vm547, %v4372, %v4374
        %v4378 = vsel %vm547, %v4374, %v4376
        %4381 = vst [vmem:[#allocation3 + $0x4c0] sm:$0xff] %v4377
        %4382 = vst [vmem:[#allocation3 + $0x4c8] sm:$0xff] %v4378
        %v4383 = vld [vmem:[#allocation2 + $0x8] sm:$0xff]
        %v4384 = vld [vmem:[#allocation2 + $0x10] sm:$0xff]
        %v4385 = vld [vmem:[#allocation2 + $0x18] sm:$0xff]
        %v4386 = vld [vmem:[#allocation9] sm:$0x44]
        %v4388 = vunpack.c.l.b16 %v4386
        %v4389 = vunpack.c.h.b16 %v4386
        %v4390 = vpack.c.b16 %v4388, %v4388
        %v4391 = vpack.c.b16 %v4389, %v4389
        %v4393 = vshrl.u32 %v4390, 16
        %v4394 = vpack.i.b16 %v4393, %v4393
        %v4396 = vlaneseq
        %v4397 = vshrl.u32 %v4396, 7
        %v4398 = vsub.s32 2, %v4397
        %v4399 = vrot.slane %v4394, %v4398
        %v4401 = vshrl.u32 %v4391, 16
        %v4402 = vpack.i.b16 %v4401, %v4401
        %v4404 = vlaneseq
        %v4405 = vshrl.u32 %v4404, 7
        %v4406 = vsub.s32 2, %v4405
        %v4407 = vrot.slane %v4402, %v4406
        %4410 = vrot.lane.b32.xlu0 %v4399, 5
        %v4411 = vpop.permute.xlu0 %4410
        %4412 = vrot.lane.b32.xlu0 %v4407, 5
        %v4413 = vpop.permute.xlu0 %4412
        %v4414 = vsel %vm585, %v4411, %v4413
        %v4418 = vmul.bf16 %v4383, %v4411
        %v4419 = vmul.bf16 %v4384, %v4414
        %v4420 = vmul.bf16 %v4385, %v4413
        %4424 = vrot.lane.b32.xlu0 %v4418, 123
        %v4425 = vpop.permute.xlu0 %4424
        %4426 = vrot.lane.b32.xlu0 %v4419, 123
        %v4427 = vpop.permute.xlu0 %4426
        %4428 = vrot.lane.b32.xlu0 %v4420, 123
        %v4429 = vpop.permute.xlu0 %4428
        %v4430 = vsel %vm602, %v4425, %v4427
        %v4431 = vsel %vm602, %v4427, %v4429
        %4434 = vst [vmem:[#allocation3 + $0x4d0] sm:$0xff] %v4430
        %4435 = vst [vmem:[#allocation3 + $0x4d8] sm:$0xff] %v4431
        %v4436 = vld [vmem:[#allocation2 + $0x8] sm:$0xff]
        %v4437 = vld [vmem:[#allocation2 + $0x10] sm:$0xff]
        %v4438 = vld [vmem:[#allocation2 + $0x18] sm:$0xff]
        %v4439 = vld [vmem:[#allocation9] sm:$0x88]
        %v4441 = vunpack.c.l.b16 %v4439
        %v4442 = vunpack.c.h.b16 %v4439
        %v4443 = vpack.c.b16 %v4441, %v4441
        %v4444 = vpack.c.b16 %v4442, %v4442
        %v4446 = vpack.i.b16 %v4443, %v4443
        %v4448 = vlaneseq
        %v4449 = vshrl.u32 %v4448, 7
        %v4450 = vsub.s32 3, %v4449
        %v4451 = vrot.slane %v4446, %v4450
        %v4453 = vpack.i.b16 %v4444, %v4444
        %v4455 = vlaneseq
        %v4456 = vshrl.u32 %v4455, 7
        %v4457 = vsub.s32 3, %v4456
        %v4458 = vrot.slane %v4453, %v4457
        %4461 = vrot.lane.b32.xlu0 %v4451, 6
        %v4462 = vpop.permute.xlu0 %4461
        %4463 = vrot.lane.b32.xlu0 %v4458, 6
        %v4464 = vpop.permute.xlu0 %4463
        %v4465 = vsel %vm638, %v4462, %v4464
        %v4469 = vmul.bf16 %v4436, %v4462
        %v4470 = vmul.bf16 %v4437, %v4465
        %v4471 = vmul.bf16 %v4438, %v4464
        %4475 = vrot.lane.b32.xlu0 %v4469, 122
        %v4476 = vpop.permute.xlu0 %4475
        %4477 = vrot.lane.b32.xlu0 %v4470, 122
        %v4478 = vpop.permute.xlu0 %4477
        %4479 = vrot.lane.b32.xlu0 %v4471, 122
        %v4480 = vpop.permute.xlu0 %4479
        %v4481 = vsel %vm655, %v4476, %v4478
        %v4482 = vsel %vm655, %v4478, %v4480
        %4485 = vst [vmem:[#allocation3 + $0x4e0] sm:$0xff] %v4481
        %4486 = vst [vmem:[#allocation3 + $0x4e8] sm:$0xff] %v4482
        %v4487 = vld [vmem:[#allocation2 + $0x8] sm:$0xff]
        %v4488 = vld [vmem:[#allocation2 + $0x10] sm:$0xff]
        %v4489 = vld [vmem:[#allocation2 + $0x18] sm:$0xff]
        %v4490 = vld [vmem:[#allocation9] sm:$0x88]
        %v4492 = vunpack.c.l.b16 %v4490
        %v4493 = vunpack.c.h.b16 %v4490
        %v4494 = vpack.c.b16 %v4492, %v4492
        %v4495 = vpack.c.b16 %v4493, %v4493
        %v4497 = vshrl.u32 %v4494, 16
        %v4498 = vpack.i.b16 %v4497, %v4497
        %v4500 = vlaneseq
        %v4501 = vshrl.u32 %v4500, 7
        %v4502 = vsub.s32 3, %v4501
        %v4503 = vrot.slane %v4498, %v4502
        %v4505 = vshrl.u32 %v4495, 16
        %v4506 = vpack.i.b16 %v4505, %v4505
        %v4508 = vlaneseq
        %v4509 = vshrl.u32 %v4508, 7
        %v4510 = vsub.s32 3, %v4509
        %v4511 = vrot.slane %v4506, %v4510
        %4514 = vrot.lane.b32.xlu0 %v4503, 7
        %v4515 = vpop.permute.xlu0 %4514
        %4516 = vrot.lane.b32.xlu0 %v4511, 7
        %v4517 = vpop.permute.xlu0 %4516
        %v4518 = vsel %vm693, %v4515, %v4517
        %v4522 = vmul.bf16 %v4487, %v4515
        %v4523 = vmul.bf16 %v4488, %v4518
        %v4524 = vmul.bf16 %v4489, %v4517
        %4528 = vrot.lane.b32.xlu0 %v4522, 121
        %v4529 = vpop.permute.xlu0 %4528
        %4530 = vrot.lane.b32.xlu0 %v4523, 121
        %v4531 = vpop.permute.xlu0 %4530
        %4532 = vrot.lane.b32.xlu0 %v4524, 121
        %v4533 = vpop.permute.xlu0 %4532
        %v4534 = vsel %vm710, %v4529, %v4531
        %v4535 = vsel %vm710, %v4531, %v4533
        %4538 = vst [vmem:[#allocation3 + $0x4f0] sm:$0xff] %v4534
        %4539 = vst [vmem:[#allocation3 + $0x4f8] sm:$0xff] %v4535
        %v4540 = vld [vmem:[#allocation2 + $0x8] sm:$0xff]
        %v4541 = vld [vmem:[#allocation2 + $0x10] sm:$0xff]
        %v4542 = vld [vmem:[#allocation2 + $0x18] sm:$0xff]
        %v4543 = vld [vmem:[#allocation9 + $0x8] sm:$0x11]
        %v4545 = vunpack.c.l.b16 %v4543
        %v4546 = vunpack.c.h.b16 %v4543
        %v4547 = vpack.c.b16 %v4545, %v4545
        %v4548 = vpack.c.b16 %v4546, %v4546
        %v4550 = vpack.i.b16 %v4547, %v4547
        %v4552 = vlaneseq
        %v4553 = vshrl.u32 %v4552, 7
        %v4554 = vsub.s32 0, %v4553
        %v4555 = vrot.slane %v4550, %v4554
        %v4557 = vpack.i.b16 %v4548, %v4548
        %v4559 = vlaneseq
        %v4560 = vshrl.u32 %v4559, 7
        %v4561 = vsub.s32 0, %v4560
        %v4562 = vrot.slane %v4557, %v4561
        %4565 = vrot.lane.b32.xlu0 %v4555, 8
        %v4566 = vpop.permute.xlu0 %4565
        %4567 = vrot.lane.b32.xlu0 %v4562, 8
        %v4568 = vpop.permute.xlu0 %4567
        %v4569 = vsel %vm746, %v4566, %v4568
        %v4573 = vmul.bf16 %v4540, %v4566
        %v4574 = vmul.bf16 %v4541, %v4569
        %v4575 = vmul.bf16 %v4542, %v4568
        %4579 = vrot.lane.b32.xlu0 %v4573, 120
        %v4580 = vpop.permute.xlu0 %4579
        %4581 = vrot.lane.b32.xlu0 %v4574, 120
        %v4582 = vpop.permute.xlu0 %4581
        %4583 = vrot.lane.b32.xlu0 %v4575, 120
        %v4584 = vpop.permute.xlu0 %4583
        %v4585 = vsel %vm763, %v4580, %v4582
        %v4586 = vsel %vm763, %v4582, %v4584
        %4589 = vst [vmem:[#allocation3 + $0x500] sm:$0xff] %v4585
        %4590 = vst [vmem:[#allocation3 + $0x508] sm:$0xff] %v4586
        %v4591 = vld [vmem:[#allocation7] sm:$0xff]
        %v4592 = vld [vmem:[#allocation7 + $0x8] sm:$0xff]
        %v4593 = vld [vmem:[#allocation7 + $0x10] sm:$0xff]
        %v4594 = vld [vmem:[#allocation7 + $0x18] sm:$0xff]
        %v4595 = vld [vmem:[#allocation7 + $0x20] sm:$0xff]
        %v4596 = vld [vmem:[#allocation7 + $0x28] sm:$0xf]
        %v4597 = vld [vmem:[#allocation7 + $0x2c] sm:$0xff]
        %v4598 = vld [vmem:[#allocation7 + $0x34] sm:$0xff]
        %v4599 = vld [vmem:[#allocation7 + $0x3c] sm:$0xff]
        %v4600 = vld [vmem:[#allocation7 + $0x44] sm:$0xff]
        %v4601 = vld [vmem:[#allocation7 + $0x4c] sm:$0xff]
        %v4602 = vld [vmem:[#allocation7 + $0x54] sm:$0xf]
        %v4603 = vld [vmem:[#allocation7 + $0x58] sm:$0xff]
        %v4604 = vld [vmem:[#allocation7 + $0x60] sm:$0xff]
        %v4605 = vld [vmem:[#allocation7 + $0x68] sm:$0xff]
        %v4606 = vld [vmem:[#allocation7 + $0x70] sm:$0xff]
        %v4607 = vld [vmem:[#allocation7 + $0x78] sm:$0xff]
        %v4608 = vld [vmem:[#allocation7 + $0x80] sm:$0xf]
        %v4609 = vld [vmem:[#allocation7 + $0x84] sm:$0xff]
        %v4610 = vld [vmem:[#allocation7 + $0x8c] sm:$0xff]
        %v4611 = vld [vmem:[#allocation7 + $0x94] sm:$0xff]
        %v4612 = vld [vmem:[#allocation7 + $0x9c] sm:$0xff]
        %v4613 = vld [vmem:[#allocation7 + $0xa4] sm:$0xff]
        %v4614 = vld [vmem:[#allocation7 + $0xac] sm:$0xf]
        %v4615 = vld [vmem:[#allocation7 + $0xb0] sm:$0xff]
        %v4616 = vld [vmem:[#allocation7 + $0xb8] sm:$0xff]
        %v4617 = vld [vmem:[#allocation7 + $0xc0] sm:$0xff]
        %v4618 = vld [vmem:[#allocation7 + $0xc8] sm:$0xff]
        %v4619 = vld [vmem:[#allocation7 + $0xd0] sm:$0xff]
        %v4620 = vld [vmem:[#allocation7 + $0xd8] sm:$0xf]
        %v4621 = vld [vmem:[#allocation7 + $0xdc] sm:$0xff]
        %v4622 = vld [vmem:[#allocation7 + $0xe4] sm:$0xff]
        %v4623 = vld [vmem:[#allocation7 + $0xec] sm:$0xff]
        %v4624 = vld [vmem:[#allocation7 + $0xf4] sm:$0xff]
        %v4625 = vld [vmem:[#allocation7 + $0xfc] sm:$0xff]
        %v4626 = vld [vmem:[#allocation7 + $0x104] sm:$0xf]
        %v4627 = vld [vmem:[#allocation7 + $0x108] sm:$0xff]
        %v4628 = vld [vmem:[#allocation7 + $0x110] sm:$0xff]
        %v4629 = vld [vmem:[#allocation7 + $0x118] sm:$0xff]
        %v4630 = vld [vmem:[#allocation7 + $0x120] sm:$0xff]
        %v4631 = vld [vmem:[#allocation7 + $0x128] sm:$0xff]
        %v4632 = vld [vmem:[#allocation7 + $0x130] sm:$0xf]
        %v4633 = vld [vmem:[#allocation7 + $0x134] sm:$0xff]
        %v4634 = vld [vmem:[#allocation7 + $0x13c] sm:$0xff]
        %v4635 = vld [vmem:[#allocation7 + $0x144] sm:$0xff]
        %v4636 = vld [vmem:[#allocation7 + $0x14c] sm:$0xff]
        %v4637 = vld [vmem:[#allocation7 + $0x154] sm:$0xff]
        %v4638 = vld [vmem:[#allocation7 + $0x15c] sm:$0xf]
        %v4639 = vld [vmem:[#allocation3] sm:$0xff]
        %v4640 = vld [vmem:[#allocation3 + $0x8] sm:$0xff]
        %v4641 = vld [vmem:[#allocation3 + $0x10] sm:$0xff]
        %v4642 = vld [vmem:[#allocation3 + $0x18] sm:$0xff]
        %v4643 = vld [vmem:[#allocation3 + $0x20] sm:$0xff]
        %v4644 = vld [vmem:[#allocation3 + $0x28] sm:$0xff]
        %v4645 = vld [vmem:[#allocation3 + $0x30] sm:$0xff]
        %v4646 = vld [vmem:[#allocation3 + $0x38] sm:$0xff]
        %v4647 = vld [vmem:[#allocation3 + $0x40] sm:$0xff]
        %v4648 = vld [vmem:[#allocation3 + $0x48] sm:$0xff]
        %v4649 = vld [vmem:[#allocation3 + $0x50] sm:$0xff]
        %v4650 = vld [vmem:[#allocation3 + $0x58] sm:$0xff]
        %v4651 = vld [vmem:[#allocation3 + $0x60] sm:$0xff]
        %v4652 = vld [vmem:[#allocation3 + $0x68] sm:$0xff]
        %v4653 = vld [vmem:[#allocation3 + $0x70] sm:$0xff]
        %v4654 = vld [vmem:[#allocation3 + $0x78] sm:$0xff]
        %v4655 = vld [vmem:[#allocation3 + $0x80] sm:$0xff]
        %v4656 = vld [vmem:[#allocation3 + $0x88] sm:$0xff]
        %v4657 = vld [vmem:[#allocation3 + $0x90] sm:$0xff]
        %v4658 = vld [vmem:[#allocation3 + $0x98] sm:$0xff]
        %v4659 = vld [vmem:[#allocation3 + $0xa0] sm:$0xff]
        %v4660 = vld [vmem:[#allocation3 + $0xa8] sm:$0xff]
        %v4661 = vld [vmem:[#allocation3 + $0xb0] sm:$0xff]
        %v4662 = vld [vmem:[#allocation3 + $0xb8] sm:$0xff]
        %v4663 = vld [vmem:[#allocation3 + $0xc0] sm:$0xff]
        %v4664 = vld [vmem:[#allocation3 + $0xc8] sm:$0xff]
        %v4665 = vld [vmem:[#allocation3 + $0xd0] sm:$0xff]
        %v4666 = vld [vmem:[#allocation3 + $0xd8] sm:$0xff]
        %v4667 = vld [vmem:[#allocation3 + $0xe0] sm:$0xff]
        %v4668 = vld [vmem:[#allocation3 + $0xe8] sm:$0xff]
        %v4669 = vld [vmem:[#allocation3 + $0xf0] sm:$0xff]
        %v4670 = vld [vmem:[#allocation3 + $0xf8] sm:$0xff]
        %v4671 = vld [vmem:[#allocation3 + $0x100] sm:$0xff]
        %v4672 = vld [vmem:[#allocation3 + $0x108] sm:$0xff]
        %v4673 = vld [vmem:[#allocation3 + $0x110] sm:$0xff]
        %v4674 = vld [vmem:[#allocation3 + $0x118] sm:$0xff]
        %v4675 = vld [vmem:[#allocation3 + $0x120] sm:$0xff]
        %v4676 = vld [vmem:[#allocation3 + $0x128] sm:$0xff]
        %v4677 = vld [vmem:[#allocation3 + $0x130] sm:$0xff]
        %v4678 = vld [vmem:[#allocation3 + $0x138] sm:$0xff]
        %v4679 = vld [vmem:[#allocation3 + $0x140] sm:$0xff]
        %v4680 = vld [vmem:[#allocation3 + $0x148] sm:$0xff]
        %v4681 = vld [vmem:[#allocation3 + $0x150] sm:$0xff]
        %v4682 = vld [vmem:[#allocation3 + $0x158] sm:$0xff]
        %v4683 = vld [vmem:[#allocation3 + $0x160] sm:$0xff]
        %v4684 = vld [vmem:[#allocation3 + $0x168] sm:$0xff]
        %v4685 = vld [vmem:[#allocation3 + $0x170] sm:$0xff]
        %v4686 = vld [vmem:[#allocation3 + $0x178] sm:$0xff]
        %v4687 = vld [vmem:[#allocation3 + $0x180] sm:$0xff]
        %v4688 = vld [vmem:[#allocation3 + $0x188] sm:$0xff]
        %v4689 = vld [vmem:[#allocation3 + $0x190] sm:$0xff]
        %v4690 = vld [vmem:[#allocation3 + $0x198] sm:$0xff]
        %v4691 = vld [vmem:[#allocation3 + $0x1a0] sm:$0xff]
        %v4692 = vld [vmem:[#allocation3 + $0x1a8] sm:$0xff]
        %v4693 = vld [vmem:[#allocation3 + $0x1b0] sm:$0xff]
        %v4694 = vld [vmem:[#allocation3 + $0x1b8] sm:$0xff]
        %v4695 = vld [vmem:[#allocation3 + $0x1c0] sm:$0xff]
        %v4696 = vld [vmem:[#allocation3 + $0x1c8] sm:$0xff]
        %v4697 = vld [vmem:[#allocation3 + $0x1d0] sm:$0xff]
        %v4698 = vld [vmem:[#allocation3 + $0x1d8] sm:$0xff]
        %v4699 = vld [vmem:[#allocation3 + $0x1e0] sm:$0xff]
        %v4700 = vld [vmem:[#allocation3 + $0x1e8] sm:$0xff]
        %v4701 = vld [vmem:[#allocation3 + $0x1f0] sm:$0xff]
        %v4702 = vld [vmem:[#allocation3 + $0x1f8] sm:$0xff]
        %v4703 = vld [vmem:[#allocation3 + $0x200] sm:$0xff]
        %v4704 = vld [vmem:[#allocation3 + $0x208] sm:$0xff]
        %v4705 = vld [vmem:[#allocation3 + $0x210] sm:$0xff]
        %v4706 = vld [vmem:[#allocation3 + $0x218] sm:$0xff]
        %v4707 = vld [vmem:[#allocation3 + $0x220] sm:$0xff]
        %v4708 = vld [vmem:[#allocation3 + $0x228] sm:$0xff]
        %v4709 = vld [vmem:[#allocation3 + $0x230] sm:$0xff]
        %v4710 = vld [vmem:[#allocation3 + $0x238] sm:$0xff]
        %v4711 = vld [vmem:[#allocation3 + $0x240] sm:$0xff]
        %v4712 = vld [vmem:[#allocation3 + $0x248] sm:$0xff]
        %v4713 = vld [vmem:[#allocation3 + $0x250] sm:$0xff]
        %v4714 = vld [vmem:[#allocation3 + $0x258] sm:$0xff]
        %v4715 = vld [vmem:[#allocation3 + $0x260] sm:$0xff]
        %v4716 = vld [vmem:[#allocation3 + $0x268] sm:$0xff]
        %v4717 = vld [vmem:[#allocation3 + $0x270] sm:$0xff]
        %v4718 = vld [vmem:[#allocation3 + $0x278] sm:$0xff]
        %v4719 = vld [vmem:[#allocation3 + $0x280] sm:$0xff]
        %v4720 = vld [vmem:[#allocation3 + $0x288] sm:$0xff]
        %v4721 = vld [vmem:[#allocation3 + $0x290] sm:$0xff]
        %v4722 = vld [vmem:[#allocation3 + $0x298] sm:$0xff]
        %v4723 = vld [vmem:[#allocation3 + $0x2a0] sm:$0xff]
        %v4724 = vld [vmem:[#allocation3 + $0x2a8] sm:$0xff]
        %v4725 = vld [vmem:[#allocation3 + $0x2b0] sm:$0xff]
        %v4726 = vld [vmem:[#allocation3 + $0x2b8] sm:$0xff]
        %v4727 = vld [vmem:[#allocation3 + $0x2c0] sm:$0xff]
        %v4728 = vld [vmem:[#allocation3 + $0x2c8] sm:$0xff]
        %v4729 = vld [vmem:[#allocation3 + $0x2d0] sm:$0xff]
        %v4730 = vld [vmem:[#allocation3 + $0x2d8] sm:$0xff]
        %v4731 = vld [vmem:[#allocation3 + $0x2e0] sm:$0xff]
        %v4732 = vld [vmem:[#allocation3 + $0x2e8] sm:$0xff]
        %v4733 = vld [vmem:[#allocation3 + $0x2f0] sm:$0xff]
        %v4734 = vld [vmem:[#allocation3 + $0x2f8] sm:$0xff]
        %v4735 = vld [vmem:[#allocation3 + $0x300] sm:$0xff]
        %v4736 = vld [vmem:[#allocation3 + $0x308] sm:$0xff]
        %v4737 = vld [vmem:[#allocation3 + $0x310] sm:$0xff]
        %v4738 = vld [vmem:[#allocation3 + $0x318] sm:$0xff]
        %v4739 = vld [vmem:[#allocation3 + $0x320] sm:$0xff]
        %v4740 = vld [vmem:[#allocation3 + $0x328] sm:$0xff]
        %v4741 = vld [vmem:[#allocation3 + $0x330] sm:$0xff]
        %v4742 = vld [vmem:[#allocation3 + $0x338] sm:$0xff]
        %v4743 = vld [vmem:[#allocation3 + $0x340] sm:$0xff]
        %v4744 = vld [vmem:[#allocation3 + $0x348] sm:$0xff]
        %v4745 = vld [vmem:[#allocation3 + $0x350] sm:$0xff]
        %v4746 = vld [vmem:[#allocation3 + $0x358] sm:$0xff]
        %v4747 = vld [vmem:[#allocation3 + $0x360] sm:$0xff]
        %v4748 = vld [vmem:[#allocation3 + $0x368] sm:$0xff]
        %v4749 = vld [vmem:[#allocation3 + $0x370] sm:$0xff]
        %v4750 = vld [vmem:[#allocation3 + $0x378] sm:$0xff]
        %v4751 = vld [vmem:[#allocation3 + $0x380] sm:$0xff]
        %v4752 = vld [vmem:[#allocation3 + $0x388] sm:$0xff]
        %v4753 = vld [vmem:[#allocation3 + $0x390] sm:$0xff]
        %v4754 = vld [vmem:[#allocation3 + $0x398] sm:$0xff]
        %v4755 = vld [vmem:[#allocation3 + $0x3a0] sm:$0xff]
        %v4756 = vld [vmem:[#allocation3 + $0x3a8] sm:$0xff]
        %v4757 = vld [vmem:[#allocation3 + $0x3b0] sm:$0xff]
        %v4758 = vld [vmem:[#allocation3 + $0x3b8] sm:$0xff]
        %v4759 = vld [vmem:[#allocation3 + $0x3c0] sm:$0xff]
        %v4760 = vld [vmem:[#allocation3 + $0x3c8] sm:$0xff]
        %v4761 = vld [vmem:[#allocation3 + $0x3d0] sm:$0xff]
        %v4762 = vld [vmem:[#allocation3 + $0x3d8] sm:$0xff]
        %v4763 = vld [vmem:[#allocation3 + $0x3e0] sm:$0xff]
        %v4764 = vld [vmem:[#allocation3 + $0x3e8] sm:$0xff]
        %v4765 = vld [vmem:[#allocation3 + $0x3f0] sm:$0xff]
        %v4766 = vld [vmem:[#allocation3 + $0x3f8] sm:$0xff]
        %v4767 = vld [vmem:[#allocation3 + $0x400] sm:$0xff]
        %v4768 = vld [vmem:[#allocation3 + $0x408] sm:$0xff]
        %v4769 = vld [vmem:[#allocation3 + $0x410] sm:$0xff]
        %v4770 = vld [vmem:[#allocation3 + $0x418] sm:$0xff]
        %v4771 = vld [vmem:[#allocation3 + $0x420] sm:$0xff]
        %v4772 = vld [vmem:[#allocation3 + $0x428] sm:$0xff]
        %v4773 = vld [vmem:[#allocation3 + $0x430] sm:$0xff]
        %v4774 = vld [vmem:[#allocation3 + $0x438] sm:$0xff]
        %v4775 = vld [vmem:[#allocation3 + $0x440] sm:$0xff]
        %v4776 = vld [vmem:[#allocation3 + $0x448] sm:$0xff]
        %v4777 = vld [vmem:[#allocation3 + $0x450] sm:$0xff]
        %v4778 = vld [vmem:[#allocation3 + $0x458] sm:$0xff]
        %v4779 = vld [vmem:[#allocation3 + $0x460] sm:$0xff]
        %v4780 = vld [vmem:[#allocation3 + $0x468] sm:$0xff]
        %v4781 = vld [vmem:[#allocation3 + $0x470] sm:$0xff]
        %v4782 = vld [vmem:[#allocation3 + $0x478] sm:$0xff]
        %v4783 = vld [vmem:[#allocation3 + $0x480] sm:$0xff]
        %v4784 = vld [vmem:[#allocation3 + $0x488] sm:$0xff]
        %v4785 = vld [vmem:[#allocation3 + $0x490] sm:$0xff]
        %v4786 = vld [vmem:[#allocation3 + $0x498] sm:$0xff]
        %v4787 = vld [vmem:[#allocation3 + $0x4a0] sm:$0xff]
        %v4788 = vld [vmem:[#allocation3 + $0x4a8] sm:$0xff]
        %v4789 = vld [vmem:[#allocation3 + $0x4b0] sm:$0xff]
        %v4790 = vld [vmem:[#allocation3 + $0x4b8] sm:$0xff]
        %v4791 = vld [vmem:[#allocation3 + $0x4c0] sm:$0xff]
        %v4792 = vld [vmem:[#allocation3 + $0x4c8] sm:$0xff]
        %v4793 = vld [vmem:[#allocation3 + $0x4d0] sm:$0xff]
        %v4794 = vld [vmem:[#allocation3 + $0x4d8] sm:$0xff]
        %v4795 = vld [vmem:[#allocation3 + $0x4e0] sm:$0xff]
        %v4796 = vld [vmem:[#allocation3 + $0x4e8] sm:$0xff]
        %v4797 = vld [vmem:[#allocation3 + $0x4f0] sm:$0xff]
        %v4798 = vld [vmem:[#allocation3 + $0x4f8] sm:$0xff]
        %v4799 = vld [vmem:[#allocation3 + $0x500] sm:$0xff]
        %v4800 = vld [vmem:[#allocation3 + $0x508] sm:$0xff]
        %v4801 = vld [vmem:[#allocation3 + $0x510] sm:$0xff]
        %v4802 = vld [vmem:[#allocation3 + $0x518] sm:$0xff]
        %v4803 = vld [vmem:[#allocation3 + $0x520] sm:$0xff]
        %v4804 = vld [vmem:[#allocation3 + $0x528] sm:$0xff]
        %v4805 = vld [vmem:[#allocation3 + $0x530] sm:$0xff]
        %v4806 = vld [vmem:[#allocation3 + $0x538] sm:$0xff]
        %v4807 = vld [vmem:[#allocation3 + $0x540] sm:$0xff]
        %v4808 = vld [vmem:[#allocation3 + $0x548] sm:$0xff]
        %v4809 = vld [vmem:[#allocation3 + $0x550] sm:$0xff]
        %v4810 = vld [vmem:[#allocation3 + $0x558] sm:$0xff]
        %v4811 = vld [vmem:[#allocation3 + $0x560] sm:$0xff]
        %v4812 = vld [vmem:[#allocation3 + $0x568] sm:$0xff]
        %v4813 = vld [vmem:[#allocation3 + $0x570] sm:$0xff]
        %v4814 = vld [vmem:[#allocation3 + $0x578] sm:$0xff]
        %v4863 = vunpack.c.l.b16 %v4591
        %v4864 = vunpack.c.h.b16 %v4591
        %v4865 = vunpack.c.l.b16 %v4592
        %v4866 = vunpack.c.h.b16 %v4592
        %v4867 = vunpack.c.l.b16 %v4593
        %v4868 = vunpack.c.h.b16 %v4593
        %v4869 = vunpack.c.l.b16 %v4594
        %v4870 = vunpack.c.h.b16 %v4594
        %v4871 = vunpack.c.l.b16 %v4595
        %v4872 = vunpack.c.h.b16 %v4595
        %v4873 = vunpack.c.l.b16 %v4596
        %v4874 = vunpack.c.l.b16 %v4597
        %v4875 = vunpack.c.h.b16 %v4597
        %v4876 = vunpack.c.l.b16 %v4598
        %v4877 = vunpack.c.h.b16 %v4598
        %v4878 = vunpack.c.l.b16 %v4599
        %v4879 = vunpack.c.h.b16 %v4599
        %v4880 = vunpack.c.l.b16 %v4600
        %v4881 = vunpack.c.h.b16 %v4600
        %v4882 = vunpack.c.l.b16 %v4601
        %v4883 = vunpack.c.h.b16 %v4601
        %v4884 = vunpack.c.l.b16 %v4602
        %v4885 = vunpack.c.l.b16 %v4603
        %v4886 = vunpack.c.h.b16 %v4603
        %v4887 = vunpack.c.l.b16 %v4604
        %v4888 = vunpack.c.h.b16 %v4604
        %v4889 = vunpack.c.l.b16 %v4605
        %v4890 = vunpack.c.h.b16 %v4605
        %v4891 = vunpack.c.l.b16 %v4606
        %v4892 = vunpack.c.h.b16 %v4606
        %v4893 = vunpack.c.l.b16 %v4607
        %v4894 = vunpack.c.h.b16 %v4607
        %v4895 = vunpack.c.l.b16 %v4608
        %v4896 = vunpack.c.l.b16 %v4609
        %v4897 = vunpack.c.h.b16 %v4609
        %v4898 = vunpack.c.l.b16 %v4610
        %v4899 = vunpack.c.h.b16 %v4610
        %v4900 = vunpack.c.l.b16 %v4611
        %v4901 = vunpack.c.h.b16 %v4611
        %v4902 = vunpack.c.l.b16 %v4612
        %v4903 = vunpack.c.h.b16 %v4612
        %v4904 = vunpack.c.l.b16 %v4613
        %v4905 = vunpack.c.h.b16 %v4613
        %v4906 = vunpack.c.l.b16 %v4614
        %v4907 = vunpack.c.l.b16 %v4615
        %v4908 = vunpack.c.h.b16 %v4615
        %v4909 = vunpack.c.l.b16 %v4616
        %v4910 = vunpack.c.h.b16 %v4616
        %v4911 = vunpack.c.l.b16 %v4617
        %v4912 = vunpack.c.h.b16 %v4617
        %v4913 = vunpack.c.l.b16 %v4618
        %v4914 = vunpack.c.h.b16 %v4618
        %v4915 = vunpack.c.l.b16 %v4619
        %v4916 = vunpack.c.h.b16 %v4619
        %v4917 = vunpack.c.l.b16 %v4620
        %v4918 = vunpack.c.l.b16 %v4621
        %v4919 = vunpack.c.h.b16 %v4621
        %v4920 = vunpack.c.l.b16 %v4622
        %v4921 = vunpack.c.h.b16 %v4622
        %v4922 = vunpack.c.l.b16 %v4623
        %v4923 = vunpack.c.h.b16 %v4623
        %v4924 = vunpack.c.l.b16 %v4624
        %v4925 = vunpack.c.h.b16 %v4624
        %v4926 = vunpack.c.l.b16 %v4625
        %v4927 = vunpack.c.h.b16 %v4625
        %v4928 = vunpack.c.l.b16 %v4626
        %v4929 = vunpack.c.l.b16 %v4627
        %v4930 = vunpack.c.h.b16 %v4627
        %v4931 = vunpack.c.l.b16 %v4628
        %v4932 = vunpack.c.h.b16 %v4628
        %v4933 = vunpack.c.l.b16 %v4629
        %v4934 = vunpack.c.h.b16 %v4629
        %v4935 = vunpack.c.l.b16 %v4630
        %v4936 = vunpack.c.h.b16 %v4630
        %v4937 = vunpack.c.l.b16 %v4631
        %v4938 = vunpack.c.h.b16 %v4631
        %v4939 = vunpack.c.l.b16 %v4632
        %v4940 = vunpack.c.l.b16 %v4633
        %v4941 = vunpack.c.h.b16 %v4633
        %v4942 = vunpack.c.l.b16 %v4634
        %v4943 = vunpack.c.h.b16 %v4634
        %v4944 = vunpack.c.l.b16 %v4635
        %v4945 = vunpack.c.h.b16 %v4635
        %v4946 = vunpack.c.l.b16 %v4636
        %v4947 = vunpack.c.h.b16 %v4636
        %v4948 = vunpack.c.l.b16 %v4637
        %v4949 = vunpack.c.h.b16 %v4637
        %v4950 = vunpack.c.l.b16 %v4638
        %v4951 = vpack.c.b16 %v4874, %v4863
        %v4952 = vpack.c.b16 %v4875, %v4864
        %v4953 = vpack.c.b16 %v4876, %v4865
        %v4954 = vpack.c.b16 %v4877, %v4866
        %v4955 = vpack.c.b16 %v4878, %v4867
        %v4956 = vpack.c.b16 %v4879, %v4868
        %v4957 = vpack.c.b16 %v4880, %v4869
        %v4958 = vpack.c.b16 %v4881, %v4870
        %v4959 = vpack.c.b16 %v4882, %v4871
        %v4960 = vpack.c.b16 %v4883, %v4872
        %v4961 = vpack.c.b16 %v4884, %v4873
        %v4962 = vpack.c.b16 %v4896, %v4885
        %v4963 = vpack.c.b16 %v4897, %v4886
        %v4964 = vpack.c.b16 %v4898, %v4887
        %v4965 = vpack.c.b16 %v4899, %v4888
        %v4966 = vpack.c.b16 %v4900, %v4889
        %v4967 = vpack.c.b16 %v4901, %v4890
        %v4968 = vpack.c.b16 %v4902, %v4891
        %v4969 = vpack.c.b16 %v4903, %v4892
        %v4970 = vpack.c.b16 %v4904, %v4893
        %v4971 = vpack.c.b16 %v4905, %v4894
        %v4972 = vpack.c.b16 %v4906, %v4895
        %v4973 = vpack.c.b16 %v4918, %v4907
        %v4974 = vpack.c.b16 %v4919, %v4908
        %v4975 = vpack.c.b16 %v4920, %v4909
        %v4976 = vpack.c.b16 %v4921, %v4910
        %v4977 = vpack.c.b16 %v4922, %v4911
        %v4978 = vpack.c.b16 %v4923, %v4912
        %v4979 = vpack.c.b16 %v4924, %v4913
        %v4980 = vpack.c.b16 %v4925, %v4914
        %v4981 = vpack.c.b16 %v4926, %v4915
        %v4982 = vpack.c.b16 %v4927, %v4916
        %v4983 = vpack.c.b16 %v4928, %v4917
        %v4984 = vpack.c.b16 %v4940, %v4929
        %v4985 = vpack.c.b16 %v4941, %v4930
        %v4986 = vpack.c.b16 %v4942, %v4931
        %v4987 = vpack.c.b16 %v4943, %v4932
        %v4988 = vpack.c.b16 %v4944, %v4933
        %v4989 = vpack.c.b16 %v4945, %v4934
        %v4990 = vpack.c.b16 %v4946, %v4935
        %v4991 = vpack.c.b16 %v4947, %v4936
        %v4992 = vpack.c.b16 %v4948, %v4937
        %v4993 = vpack.c.b16 %v4949, %v4938
        %v4994 = vpack.c.b16 %v4950, %v4939
        %5039 = vmatprep.subr.bf16.mxu0 %v4640
        %5040 = vmatpush1.bf16.msra.mxu0 %v4639
        %5041 = vmatprep.subr.bf16.mxu0 %v4642
        %5042 = vmatpush1.bf16.msra.mxu0 %v4641
        %5043 = vmatprep.subr.bf16.mxu0 %v4644
        %5044 = vmatpush1.bf16.msra.mxu0 %v4643
        %5045 = vmatprep.subr.bf16.mxu0 %v4646
        %5046 = vmatpush1.bf16.msra.mxu0 %v4645
        %5047 = vmatprep.subr.bf16.mxu0 %v4648
        %5048 = vmatpush1.bf16.msra.mxu0 %v4647
        %5049 = vmatprep.subr.bf16.mxu0 %v4650
        %5050 = vmatpush1.bf16.msra.mxu0 %v4649
        %5051 = vmatprep.subr.bf16.mxu0 %v4652
        %5052 = vmatpush1.bf16.msra.mxu0 %v4651
        %5053 = vmatprep.subr.bf16.mxu0 %v4654
        %5054 = vmatpush1.bf16.msra.mxu0 %v4653
        %5055 = vmatprep.subr.bf16.mxu0 %v4656
        %5056 = vmatpush1.bf16.msra.mxu0 %v4655
        %5057 = vmatprep.subr.bf16.mxu0 %v4658
        %5058 = vmatpush1.bf16.msra.mxu0 %v4657
        %5059 = vmatprep.subr.bf16.mxu0 %v4660
        %5060 = vmatpush1.bf16.msra.mxu0 %v4659
        %5061 = vmatprep.subr.bf16.mxu0 %v4662
        %5062 = vmatpush1.bf16.msra.mxu0 %v4661
        %5063 = vmatprep.subr.bf16.mxu0 %v4664
        %5064 = vmatpush1.bf16.msra.mxu0 %v4663
        %5065 = vmatprep.subr.bf16.mxu0 %v4666
        %5066 = vmatpush1.bf16.msra.mxu0 %v4665
        %5067 = vmatprep.subr.bf16.mxu0 %v4668
        %5068 = vmatpush1.bf16.msra.mxu0 %v4667
        %5069 = vmatprep.subr.bf16.mxu0 %v4670
        %5070 = vmatpush1.bf16.msra.mxu0 %v4669
        %5071 = vmatprep.mubr.bf16.mxu0 %v4952
        %5072 = vmatmul.mubr.bf16.gmra.mrb[0].mxu0 %v4951
        %v5073 = vpop.f32.mrb[0].mxu0
        %v5074 = vadd.f32 0.0, %v5073
        %v5075 = vpop.f32.mrb[0].mxu0
        %v5076 = vadd.f32 0.0, %v5075
        %v5077 = vpop.f32.mrb[0].mxu0
        %v5078 = vadd.f32 0.0, %v5077
        %v5079 = vpop.f32.mrb[0].mxu0
        %v5080 = vadd.f32 0.0, %v5079
        %5081 = vmatprep.mubr.bf16.mxu0 %v4963
        %5082 = vmatmul.mubr.bf16.gmra.mrb[0].mxu0 %v4962
        %v5083 = vpop.f32.mrb[0].mxu0
        %v5084 = vadd.f32 0.0, %v5083
        %v5085 = vpop.f32.mrb[0].mxu0
        %v5086 = vadd.f32 0.0, %v5085
        %v5087 = vpop.f32.mrb[0].mxu0
        %v5088 = vadd.f32 0.0, %v5087
        %v5089 = vpop.f32.mrb[0].mxu0
        %v5090 = vadd.f32 0.0, %v5089
        %5091 = vmatprep.mubr.bf16.mxu0 %v4974
        %5092 = vmatmul.mubr.bf16.gmra.mrb[0].mxu0 %v4973
        %v5093 = vpop.f32.mrb[0].mxu0
        %v5094 = vadd.f32 0.0, %v5093
        %v5095 = vpop.f32.mrb[0].mxu0
        %v5096 = vadd.f32 0.0, %v5095
        %v5097 = vpop.f32.mrb[0].mxu0
        %v5098 = vadd.f32 0.0, %v5097
        %v5099 = vpop.f32.mrb[0].mxu0
        %v5100 = vadd.f32 0.0, %v5099
        %5101 = vmatprep.mubr.bf16.mxu0 %v4985
        %5102 = vmatmul.mubr.bf16.gmra.mrb[0].mxu0 %v4984
        %v5103 = vpop.f32.mrb[0].mxu0
        %v5104 = vadd.f32 0.0, %v5103
        %v5105 = vpop.f32.mrb[0].mxu0
        %v5106 = vadd.f32 0.0, %v5105
        %v5107 = vpop.f32.mrb[0].mxu0
        %v5108 = vadd.f32 0.0, %v5107
        %v5109 = vpop.f32.mrb[0].mxu0
        %v5110 = vadd.f32 0.0, %v5109
        %5111 = vdwg.mxu0
        %5112 = vmatprep.subr.bf16.mxu0 %v4672
        %5113 = vmatpush1.bf16.msra.mxu0 %v4671
        %5114 = vmatprep.subr.bf16.mxu0 %v4674
        %5115 = vmatpush1.bf16.msra.mxu0 %v4673
        %5116 = vmatprep.subr.bf16.mxu0 %v4676
        %5117 = vmatpush1.bf16.msra.mxu0 %v4675
        %5118 = vmatprep.subr.bf16.mxu0 %v4678
        %5119 = vmatpush1.bf16.msra.mxu0 %v4677
        %5120 = vmatprep.subr.bf16.mxu0 %v4680
        %5121 = vmatpush1.bf16.msra.mxu0 %v4679
        %5122 = vmatprep.subr.bf16.mxu0 %v4682
        %5123 = vmatpush1.bf16.msra.mxu0 %v4681
        %5124 = vmatprep.subr.bf16.mxu0 %v4684
        %5125 = vmatpush1.bf16.msra.mxu0 %v4683
        %5126 = vmatprep.subr.bf16.mxu0 %v4686
        %5127 = vmatpush1.bf16.msra.mxu0 %v4685
        %5128 = vmatprep.subr.bf16.mxu0 %v4688
        %5129 = vmatpush1.bf16.msra.mxu0 %v4687
        %5130 = vmatprep.subr.bf16.mxu0 %v4690
        %5131 = vmatpush1.bf16.msra.mxu0 %v4689
        %5132 = vmatprep.subr.bf16.mxu0 %v4692
        %5133 = vmatpush1.bf16.msra.mxu0 %v4691
        %5134 = vmatprep.subr.bf16.mxu0 %v4694
        %5135 = vmatpush1.bf16.msra.mxu0 %v4693
        %5136 = vmatprep.subr.bf16.mxu0 %v4696
        %5137 = vmatpush1.bf16.msra.mxu0 %v4695
        %5138 = vmatprep.subr.bf16.mxu0 %v4698
        %5139 = vmatpush1.bf16.msra.mxu0 %v4697
        %5140 = vmatprep.subr.bf16.mxu0 %v4700
        %5141 = vmatpush1.bf16.msra.mxu0 %v4699
        %5142 = vmatprep.subr.bf16.mxu0 %v4702
        %5143 = vmatpush1.bf16.msra.mxu0 %v4701
        %5144 = vmatprep.mubr.bf16.mxu0 %v4954
        %5145 = vmatmul.mubr.bf16.gmra.mrb[0].mxu0 %v4953
        %v5146 = vpop.f32.mrb[0].mxu0
        %v5147 = vadd.f32 %v5074, %v5146
        %v5148 = vpop.f32.mrb[0].mxu0
        %v5149 = vadd.f32 %v5076, %v5148
        %v5150 = vpop.f32.mrb[0].mxu0
        %v5151 = vadd.f32 %v5078, %v5150
        %v5152 = vpop.f32.mrb[0].mxu0
        %v5153 = vadd.f32 %v5080, %v5152
        %5154 = vmatprep.mubr.bf16.mxu0 %v4965
        %5155 = vmatmul.mubr.bf16.gmra.mrb[0].mxu0 %v4964
        %v5156 = vpop.f32.mrb[0].mxu0
        %v5157 = vadd.f32 %v5084, %v5156
        %v5158 = vpop.f32.mrb[0].mxu0
        %v5159 = vadd.f32 %v5086, %v5158
        %v5160 = vpop.f32.mrb[0].mxu0
        %v5161 = vadd.f32 %v5088, %v5160
        %v5162 = vpop.f32.mrb[0].mxu0
        %v5163 = vadd.f32 %v5090, %v5162
        %5164 = vmatprep.mubr.bf16.mxu0 %v4976
        %5165 = vmatmul.mubr.bf16.gmra.mrb[0].mxu0 %v4975
        %v5166 = vpop.f32.mrb[0].mxu0
        %v5167 = vadd.f32 %v5094, %v5166
        %v5168 = vpop.f32.mrb[0].mxu0
        %v5169 = vadd.f32 %v5096, %v5168
        %v5170 = vpop.f32.mrb[0].mxu0
        %v5171 = vadd.f32 %v5098, %v5170
        %v5172 = vpop.f32.mrb[0].mxu0
        %v5173 = vadd.f32 %v5100, %v5172
        %5174 = vmatprep.mubr.bf16.mxu0 %v4987
        %5175 = vmatmul.mubr.bf16.gmra.mrb[0].mxu0 %v4986
        %v5176 = vpop.f32.mrb[0].mxu0
        %v5177 = vadd.f32 %v5104, %v5176
        %v5178 = vpop.f32.mrb[0].mxu0
        %v5179 = vadd.f32 %v5106, %v5178
        %v5180 = vpop.f32.mrb[0].mxu0
        %v5181 = vadd.f32 %v5108, %v5180
        %v5182 = vpop.f32.mrb[0].mxu0
        %v5183 = vadd.f32 %v5110, %v5182
        %5184 = vdwg.mxu0
        %5185 = vmatprep.subr.bf16.mxu0 %v4704
        %5186 = vmatpush1.bf16.msra.mxu0 %v4703
        %5187 = vmatprep.subr.bf16.mxu0 %v4706
        %5188 = vmatpush1.bf16.msra.mxu0 %v4705
        %5189 = vmatprep.subr.bf16.mxu0 %v4708
        %5190 = vmatpush1.bf16.msra.mxu0 %v4707
        %5191 = vmatprep.subr.bf16.mxu0 %v4710
        %5192 = vmatpush1.bf16.msra.mxu0 %v4709
        %5193 = vmatprep.subr.bf16.mxu0 %v4712
        %5194 = vmatpush1.bf16.msra.mxu0 %v4711
        %5195 = vmatprep.subr.bf16.mxu0 %v4714
        %5196 = vmatpush1.bf16.msra.mxu0 %v4713
        %5197 = vmatprep.subr.bf16.mxu0 %v4716
        %5198 = vmatpush1.bf16.msra.mxu0 %v4715
        %5199 = vmatprep.subr.bf16.mxu0 %v4718
        %5200 = vmatpush1.bf16.msra.mxu0 %v4717
        %5201 = vmatprep.subr.bf16.mxu0 %v4720
        %5202 = vmatpush1.bf16.msra.mxu0 %v4719
        %5203 = vmatprep.subr.bf16.mxu0 %v4722
        %5204 = vmatpush1.bf16.msra.mxu0 %v4721
        %5205 = vmatprep.subr.bf16.mxu0 %v4724
        %5206 = vmatpush1.bf16.msra.mxu0 %v4723
        %5207 = vmatprep.subr.bf16.mxu0 %v4726
        %5208 = vmatpush1.bf16.msra.mxu0 %v4725
        %5209 = vmatprep.subr.bf16.mxu0 %v4728
        %5210 = vmatpush1.bf16.msra.mxu0 %v4727
        %5211 = vmatprep.subr.bf16.mxu0 %v4730
        %5212 = vmatpush1.bf16.msra.mxu0 %v4729
        %5213 = vmatprep.subr.bf16.mxu0 %v4732
        %5214 = vmatpush1.bf16.msra.mxu0 %v4731
        %5215 = vmatprep.subr.bf16.mxu0 %v4734
        %5216 = vmatpush1.bf16.msra.mxu0 %v4733
        %5217 = vmatprep.mubr.bf16.mxu0 %v4956
        %5218 = vmatmul.mubr.bf16.gmra.mrb[0].mxu0 %v4955
        %v5219 = vpop.f32.mrb[0].mxu0
        %v5220 = vadd.f32 %v5147, %v5219
        %v5221 = vpop.f32.mrb[0].mxu0
        %v5222 = vadd.f32 %v5149, %v5221
        %v5223 = vpop.f32.mrb[0].mxu0
        %v5224 = vadd.f32 %v5151, %v5223
        %v5225 = vpop.f32.mrb[0].mxu0
        %v5226 = vadd.f32 %v5153, %v5225
        %5227 = vmatprep.mubr.bf16.mxu0 %v4967
        %5228 = vmatmul.mubr.bf16.gmra.mrb[0].mxu0 %v4966
        %v5229 = vpop.f32.mrb[0].mxu0
        %v5230 = vadd.f32 %v5157, %v5229
        %v5231 = vpop.f32.mrb[0].mxu0
        %v5232 = vadd.f32 %v5159, %v5231
        %v5233 = vpop.f32.mrb[0].mxu0
        %v5234 = vadd.f32 %v5161, %v5233
        %v5235 = vpop.f32.mrb[0].mxu0
        %v5236 = vadd.f32 %v5163, %v5235
        %5237 = vmatprep.mubr.bf16.mxu0 %v4978
        %5238 = vmatmul.mubr.bf16.gmra.mrb[0].mxu0 %v4977
        %v5239 = vpop.f32.mrb[0].mxu0
        %v5240 = vadd.f32 %v5167, %v5239
        %v5241 = vpop.f32.mrb[0].mxu0
        %v5242 = vadd.f32 %v5169, %v5241
        %v5243 = vpop.f32.mrb[0].mxu0
        %v5244 = vadd.f32 %v5171, %v5243
        %v5245 = vpop.f32.mrb[0].mxu0
        %v5246 = vadd.f32 %v5173, %v5245
        %5247 = vmatprep.mubr.bf16.mxu0 %v4989
        %5248 = vmatmul.mubr.bf16.gmra.mrb[0].mxu0 %v4988
        %v5249 = vpop.f32.mrb[0].mxu0
        %v5250 = vadd.f32 %v5177, %v5249
        %v5251 = vpop.f32.mrb[0].mxu0
        %v5252 = vadd.f32 %v5179, %v5251
        %v5253 = vpop.f32.mrb[0].mxu0
        %v5254 = vadd.f32 %v5181, %v5253
        %v5255 = vpop.f32.mrb[0].mxu0
        %v5256 = vadd.f32 %v5183, %v5255
        %5257 = vdwg.mxu0
        %5258 = vmatprep.subr.bf16.mxu0 %v4736
        %5259 = vmatpush1.bf16.msra.mxu0 %v4735
        %5260 = vmatprep.subr.bf16.mxu0 %v4738
        %5261 = vmatpush1.bf16.msra.mxu0 %v4737
        %5262 = vmatprep.subr.bf16.mxu0 %v4740
        %5263 = vmatpush1.bf16.msra.mxu0 %v4739
        %5264 = vmatprep.subr.bf16.mxu0 %v4742
        %5265 = vmatpush1.bf16.msra.mxu0 %v4741
        %5266 = vmatprep.subr.bf16.mxu0 %v4744
        %5267 = vmatpush1.bf16.msra.mxu0 %v4743
        %5268 = vmatprep.subr.bf16.mxu0 %v4746
        %5269 = vmatpush1.bf16.msra.mxu0 %v4745
        %5270 = vmatprep.subr.bf16.mxu0 %v4748
        %5271 = vmatpush1.bf16.msra.mxu0 %v4747
        %5272 = vmatprep.subr.bf16.mxu0 %v4750
        %5273 = vmatpush1.bf16.msra.mxu0 %v4749
        %5274 = vmatprep.subr.bf16.mxu0 %v4752
        %5275 = vmatpush1.bf16.msra.mxu0 %v4751
        %5276 = vmatprep.subr.bf16.mxu0 %v4754
        %5277 = vmatpush1.bf16.msra.mxu0 %v4753
        %5278 = vmatprep.subr.bf16.mxu0 %v4756
        %5279 = vmatpush1.bf16.msra.mxu0 %v4755
        %5280 = vmatprep.subr.bf16.mxu0 %v4758
        %5281 = vmatpush1.bf16.msra.mxu0 %v4757
        %5282 = vmatprep.subr.bf16.mxu0 %v4760
        %5283 = vmatpush1.bf16.msra.mxu0 %v4759
        %5284 = vmatprep.subr.bf16.mxu0 %v4762
        %5285 = vmatpush1.bf16.msra.mxu0 %v4761
        %5286 = vmatprep.subr.bf16.mxu0 %v4764
        %5287 = vmatpush1.bf16.msra.mxu0 %v4763
        %5288 = vmatprep.subr.bf16.mxu0 %v4766
        %5289 = vmatpush1.bf16.msra.mxu0 %v4765
        %5290 = vmatprep.mubr.bf16.mxu0 %v4958
        %5291 = vmatmul.mubr.bf16.gmra.mrb[0].mxu0 %v4957
        %v5292 = vpop.f32.mrb[0].mxu0
        %v5293 = vadd.f32 %v5220, %v5292
        %v5294 = vpop.f32.mrb[0].mxu0
        %v5295 = vadd.f32 %v5222, %v5294
        %v5296 = vpop.f32.mrb[0].mxu0
        %v5297 = vadd.f32 %v5224, %v5296
        %v5298 = vpop.f32.mrb[0].mxu0
        %v5299 = vadd.f32 %v5226, %v5298
        %5300 = vmatprep.mubr.bf16.mxu0 %v4969
        %5301 = vmatmul.mubr.bf16.gmra.mrb[0].mxu0 %v4968
        %v5302 = vpop.f32.mrb[0].mxu0
        %v5303 = vadd.f32 %v5230, %v5302
        %v5304 = vpop.f32.mrb[0].mxu0
        %v5305 = vadd.f32 %v5232, %v5304
        %v5306 = vpop.f32.mrb[0].mxu0
        %v5307 = vadd.f32 %v5234, %v5306
        %v5308 = vpop.f32.mrb[0].mxu0
        %v5309 = vadd.f32 %v5236, %v5308
        %5310 = vmatprep.mubr.bf16.mxu0 %v4980
        %5311 = vmatmul.mubr.bf16.gmra.mrb[0].mxu0 %v4979
        %v5312 = vpop.f32.mrb[0].mxu0
        %v5313 = vadd.f32 %v5240, %v5312
        %v5314 = vpop.f32.mrb[0].mxu0
        %v5315 = vadd.f32 %v5242, %v5314
        %v5316 = vpop.f32.mrb[0].mxu0
        %v5317 = vadd.f32 %v5244, %v5316
        %v5318 = vpop.f32.mrb[0].mxu0
        %v5319 = vadd.f32 %v5246, %v5318
        %5320 = vmatprep.mubr.bf16.mxu0 %v4991
        %5321 = vmatmul.mubr.bf16.gmra.mrb[0].mxu0 %v4990
        %v5322 = vpop.f32.mrb[0].mxu0
        %v5323 = vadd.f32 %v5250, %v5322
        %v5324 = vpop.f32.mrb[0].mxu0
        %v5325 = vadd.f32 %v5252, %v5324
        %v5326 = vpop.f32.mrb[0].mxu0
        %v5327 = vadd.f32 %v5254, %v5326
        %v5328 = vpop.f32.mrb[0].mxu0
        %v5329 = vadd.f32 %v5256, %v5328
        %5330 = vdwg.mxu0
        %5331 = vmatprep.subr.bf16.mxu0 %v4768
        %5332 = vmatpush1.bf16.msra.mxu0 %v4767
        %5333 = vmatprep.subr.bf16.mxu0 %v4770
        %5334 = vmatpush1.bf16.msra.mxu0 %v4769
        %5335 = vmatprep.subr.bf16.mxu0 %v4772
        %5336 = vmatpush1.bf16.msra.mxu0 %v4771
        %5337 = vmatprep.subr.bf16.mxu0 %v4774
        %5338 = vmatpush1.bf16.msra.mxu0 %v4773
        %5339 = vmatprep.subr.bf16.mxu0 %v4776
        %5340 = vmatpush1.bf16.msra.mxu0 %v4775
        %5341 = vmatprep.subr.bf16.mxu0 %v4778
        %5342 = vmatpush1.bf16.msra.mxu0 %v4777
        %5343 = vmatprep.subr.bf16.mxu0 %v4780
        %5344 = vmatpush1.bf16.msra.mxu0 %v4779
        %5345 = vmatprep.subr.bf16.mxu0 %v4782
        %5346 = vmatpush1.bf16.msra.mxu0 %v4781
        %5347 = vmatprep.subr.bf16.mxu0 %v4784
        %5348 = vmatpush1.bf16.msra.mxu0 %v4783
        %5349 = vmatprep.subr.bf16.mxu0 %v4786
        %5350 = vmatpush1.bf16.msra.mxu0 %v4785
        %5351 = vmatprep.subr.bf16.mxu0 %v4788
        %5352 = vmatpush1.bf16.msra.mxu0 %v4787
        %5353 = vmatprep.subr.bf16.mxu0 %v4790
        %5354 = vmatpush1.bf16.msra.mxu0 %v4789
        %5355 = vmatprep.subr.bf16.mxu0 %v4792
        %5356 = vmatpush1.bf16.msra.mxu0 %v4791
        %5357 = vmatprep.subr.bf16.mxu0 %v4794
        %5358 = vmatpush1.bf16.msra.mxu0 %v4793
        %5359 = vmatprep.subr.bf16.mxu0 %v4796
        %5360 = vmatpush1.bf16.msra.mxu0 %v4795
        %5361 = vmatprep.subr.bf16.mxu0 %v4798
        %5362 = vmatpush1.bf16.msra.mxu0 %v4797
        %5363 = vmatprep.mubr.bf16.mxu0 %v4960
        %5364 = vmatmul.mubr.bf16.gmra.mrb[0].mxu0 %v4959
        %v5365 = vpop.f32.mrb[0].mxu0
        %v5366 = vadd.f32 %v5293, %v5365
        %v5367 = vpop.f32.mrb[0].mxu0
        %v5368 = vadd.f32 %v5295, %v5367
        %v5369 = vpop.f32.mrb[0].mxu0
        %v5370 = vadd.f32 %v5297, %v5369
        %v5371 = vpop.f32.mrb[0].mxu0
        %v5372 = vadd.f32 %v5299, %v5371
        %5373 = vmatprep.mubr.bf16.mxu0 %v4971
        %5374 = vmatmul.mubr.bf16.gmra.mrb[0].mxu0 %v4970
        %v5375 = vpop.f32.mrb[0].mxu0
        %v5376 = vadd.f32 %v5303, %v5375
        %v5377 = vpop.f32.mrb[0].mxu0
        %v5378 = vadd.f32 %v5305, %v5377
        %v5379 = vpop.f32.mrb[0].mxu0
        %v5380 = vadd.f32 %v5307, %v5379
        %v5381 = vpop.f32.mrb[0].mxu0
        %v5382 = vadd.f32 %v5309, %v5381
        %5383 = vmatprep.mubr.bf16.mxu0 %v4982
        %5384 = vmatmul.mubr.bf16.gmra.mrb[0].mxu0 %v4981
        %v5385 = vpop.f32.mrb[0].mxu0
        %v5386 = vadd.f32 %v5313, %v5385
        %v5387 = vpop.f32.mrb[0].mxu0
        %v5388 = vadd.f32 %v5315, %v5387
        %v5389 = vpop.f32.mrb[0].mxu0
        %v5390 = vadd.f32 %v5317, %v5389
        %v5391 = vpop.f32.mrb[0].mxu0
        %v5392 = vadd.f32 %v5319, %v5391
        %5393 = vmatprep.mubr.bf16.mxu0 %v4993
        %5394 = vmatmul.mubr.bf16.gmra.mrb[0].mxu0 %v4992
        %v5395 = vpop.f32.mrb[0].mxu0
        %v5396 = vadd.f32 %v5323, %v5395
        %v5397 = vpop.f32.mrb[0].mxu0
        %v5398 = vadd.f32 %v5325, %v5397
        %v5399 = vpop.f32.mrb[0].mxu0
        %v5400 = vadd.f32 %v5327, %v5399
        %v5401 = vpop.f32.mrb[0].mxu0
        %v5402 = vadd.f32 %v5329, %v5401
        %5403 = vdwg.mxu0
        %5404 = vmatprep.subr.bf16.mxu0 %v4800
        %5405 = vmatpush1.bf16.msra.mxu0 %v4799
        %5406 = vmatprep.subr.bf16.mxu0 %v4802
        %5407 = vmatpush1.bf16.msra.mxu0 %v4801
        %5408 = vmatprep.subr.bf16.mxu0 %v4804
        %5409 = vmatpush1.bf16.msra.mxu0 %v4803
        %5410 = vmatprep.subr.bf16.mxu0 %v4806
        %5411 = vmatpush1.bf16.msra.mxu0 %v4805
        %5412 = vmatprep.subr.bf16.mxu0 %v4808
        %5413 = vmatpush1.bf16.msra.mxu0 %v4807
        %5414 = vmatprep.subr.bf16.mxu0 %v4810
        %5415 = vmatpush1.bf16.msra.mxu0 %v4809
        %5416 = vmatprep.subr.bf16.mxu0 %v4812
        %5417 = vmatpush1.bf16.msra.mxu0 %v4811
        %5418 = vmatprep.subr.bf16.mxu0 %v4814
        %5419 = vmatpush1.bf16.msra.mxu0 %v4813
        %5420 = vmatprep.subr.bf16.mxu0 0
        %5421 = vmatpush1.bf16.msra.mxu0 0
        %5422 = vmatprep.subr.bf16.mxu0 0
        %5423 = vmatpush1.bf16.msra.mxu0 0
        %5424 = vmatprep.subr.bf16.mxu0 0
        %5425 = vmatpush1.bf16.msra.mxu0 0
        %5426 = vmatprep.subr.bf16.mxu0 0
        %5427 = vmatpush1.bf16.msra.mxu0 0
        %5428 = vmatprep.subr.bf16.mxu0 0
        %5429 = vmatpush1.bf16.msra.mxu0 0
        %5430 = vmatprep.subr.bf16.mxu0 0
        %5431 = vmatpush1.bf16.msra.mxu0 0
        %5432 = vmatprep.subr.bf16.mxu0 0
        %5433 = vmatpush1.bf16.msra.mxu0 0
        %5434 = vmatprep.subr.bf16.mxu0 0
        %5435 = vmatpush1.bf16.msra.mxu0 0
        %5436 = vmatprep.mubr.bf16.mxu0 0
        %5437 = vmatmul.mubr.bf16.gmra.mrb[0].mxu0 %v4961
        %v5438 = vpop.f32.mrb[0].mxu0
        %v5439 = vadd.f32 %v5366, %v5438
        %v5440 = vpop.f32.mrb[0].mxu0
        %v5441 = vadd.f32 %v5368, %v5440
        %v5442 = vpop.f32.mrb[0].mxu0
        %v5443 = vadd.f32 %v5370, %v5442
        %v5444 = vpop.f32.mrb[0].mxu0
        %v5445 = vadd.f32 %v5372, %v5444
        %5446 = vmatprep.mubr.bf16.mxu0 0
        %5447 = vmatmul.mubr.bf16.gmra.mrb[0].mxu0 %v4972
        %v5448 = vpop.f32.mrb[0].mxu0
        %v5449 = vadd.f32 %v5376, %v5448
        %v5450 = vpop.f32.mrb[0].mxu0
        %v5451 = vadd.f32 %v5378, %v5450
        %v5452 = vpop.f32.mrb[0].mxu0
        %v5453 = vadd.f32 %v5380, %v5452
        %v5454 = vpop.f32.mrb[0].mxu0
        %v5455 = vadd.f32 %v5382, %v5454
        %5456 = vmatprep.mubr.bf16.mxu0 0
        %5457 = vmatmul.mubr.bf16.gmra.mrb[0].mxu0 %v4983
        %v5458 = vpop.f32.mrb[0].mxu0
        %v5459 = vadd.f32 %v5386, %v5458
        %v5460 = vpop.f32.mrb[0].mxu0
        %v5461 = vadd.f32 %v5388, %v5460
        %v5462 = vpop.f32.mrb[0].mxu0
        %v5463 = vadd.f32 %v5390, %v5462
        %v5464 = vpop.f32.mrb[0].mxu0
        %v5465 = vadd.f32 %v5392, %v5464
        %5466 = vmatprep.mubr.bf16.mxu0 0
        %5467 = vmatmul.mubr.bf16.gmra.mrb[0].mxu0 %v4994
        %v5468 = vpop.f32.mrb[0].mxu0
        %v5469 = vadd.f32 %v5396, %v5468
        %v5470 = vpop.f32.mrb[0].mxu0
        %v5471 = vadd.f32 %v5398, %v5470
        %v5472 = vpop.f32.mrb[0].mxu0
        %v5473 = vadd.f32 %v5400, %v5472
        %v5474 = vpop.f32.mrb[0].mxu0
        %v5475 = vadd.f32 %v5402, %v5474
        %5476 = vdwg.mxu0
        %5477 = vst [vmem:[%s245] sm:$0xff] %v5439
        %5478 = vst [vmem:[%s245 + $0x8] sm:$0xff] %v5441
        %5479 = vst [vmem:[%s245 + $0x10] sm:$0xff] %v5443
        %5480 = vst [vmem:[%s245 + $0x18] sm:$0xff] %v5445
        %5481 = vst [vmem:[%s245 + $0x20] sm:$0xff] %v5449
        %5482 = vst [vmem:[%s245 + $0x28] sm:$0xff] %v5451
        %5483 = vst [vmem:[%s245 + $0x30] sm:$0xff] %v5453
        %5484 = vst [vmem:[%s245 + $0x38] sm:$0xff] %v5455
        %5485 = vst [vmem:[%s245 + $0x40] sm:$0xff] %v5459
        %5486 = vst [vmem:[%s245 + $0x48] sm:$0xff] %v5461
        %5487 = vst [vmem:[%s245 + $0x50] sm:$0xff] %v5463
        %5488 = vst [vmem:[%s245 + $0x58] sm:$0xff] %v5465
        %5489 = vst [vmem:[%s245 + $0x60] sm:$0xff] %v5469
        %5490 = vst [vmem:[%s245 + $0x68] sm:$0xff] %v5471
        %5491 = vst [vmem:[%s245 + $0x70] sm:$0xff] %v5473
        %5492 = vst [vmem:[%s245 + $0x78] sm:$0xff] %v5475
        %v5493 = vadd.f32 %v5439, %v5441
        %5494 = vadd.xlane.f32.xlu0 %v5493
        %v5495 = vpop.xlane.xlu0 %5494
        %v5496 = vadd.f32 %v5443, %v5445
        %5497 = vadd.xlane.f32.xlu0 %v5496
        %v5498 = vpop.xlane.xlu0 %5497
        %v5499 = vadd.f32 %v5449, %v5451
        %5500 = vadd.xlane.f32.xlu0 %v5499
        %v5501 = vpop.xlane.xlu0 %5500
        %v5502 = vadd.f32 %v5453, %v5455
        %5503 = vadd.xlane.f32.xlu0 %v5502
        %v5504 = vpop.xlane.xlu0 %5503
        %v5505 = vadd.f32 %v5459, %v5461
        %5506 = vadd.xlane.f32.xlu0 %v5505
        %v5507 = vpop.xlane.xlu0 %5506
        %v5508 = vadd.f32 %v5463, %v5465
        %5509 = vadd.xlane.f32.xlu0 %v5508
        %v5510 = vpop.xlane.xlu0 %5509
        %v5511 = vadd.f32 %v5469, %v5471
        %5512 = vadd.xlane.f32.xlu0 %v5511
        %v5513 = vpop.xlane.xlu0 %5512
        %v5514 = vadd.f32 %v5473, %v5475
        %5515 = vadd.xlane.f32.xlu0 %v5514
        %v5516 = vpop.xlane.xlu0 %5515
        %v5517 = vrcp.pop 256.0
        %v5518 = vmul.f32 %v5495, %v5517
        %v5519 = vmul.f32 %v5498, %v5517
        %v5520 = vmul.f32 %v5501, %v5517
        %v5521 = vmul.f32 %v5504, %v5517
        %v5522 = vmul.f32 %v5507, %v5517
        %v5523 = vmul.f32 %v5510, %v5517
        %v5524 = vmul.f32 %v5513, %v5517
        %v5525 = vmul.f32 %v5516, %v5517
        %vm5526 = vcmask 7168
        %5527 = vst.msk [vmem:[%s257] sm:$0xff] %vm5526, %v5518
        %5528 = vst.msk [vmem:[%s257 + $0x8] sm:$0xff] %vm5526, %v5519
        %5529 = vst.msk [vmem:[%s257 + $0x10] sm:$0xff] %vm5526, %v5520
        %5530 = vst.msk [vmem:[%s257 + $0x18] sm:$0xff] %vm5526, %v5521
        %5531 = vst.msk [vmem:[%s257 + $0x20] sm:$0xff] %vm5526, %v5522
        %5532 = vst.msk [vmem:[%s257 + $0x28] sm:$0xff] %vm5526, %v5523
        %5533 = vst.msk [vmem:[%s257 + $0x30] sm:$0xff] %vm5526, %v5524
        %5534 = vst.msk [vmem:[%s257 + $0x38] sm:$0xff] %vm5526, %v5525
        %s5535 = sand.u32 %s99, 1
        %s5536 = scalar_lea.sflag [#allocation6], %s5535
        %s5537 = sand.u32 %s99, 1
        %s5538 = smul.addr %s5537, 128
        %s5539 = scalar_lea.vmem [#allocation10], %s5538
        %p5540 = scmp.lt.s32.totalorder %s23, 1
        %s5541 = scalar_select %p5540, %s23, 1
        %s5542 = smul.addr %s5541, 8
        %s5543 = smul.addr %s5542, 8
        %s5544 = scalar_lea.vmem %s4, %s5543
        // Predicated region
        $region45: #{tpu_custom_call.1} parent=31 // pred_check
          %p5545 = pneg %p109
        $region46: #{tpu_custom_call.1} parent=31 // pred_check_branch
          %5547 = sbr.rel (%p5545) target = $region48
        $region47: #{tpu_custom_call.1} parent=31 // pred_region
          %s5549 = ssub.s32 2048, 2048
          %5550 = vsyncadd %s5536, %s5549
          %s5551 = smul.addr %s23, 16
          %s5552 = smul.addr %s5551, 128
          %s5553 = scalar_lea.hbm %s3, %s5552
          %s5554 = sshll.u32 %s5539, 4
          %s5555 = int_to_ptr.vmem [resolvable:$true] %s5554
          %5560 = dma.vmem_to_hbm [thread:$0]  %s5555, 2048, %s5553, %s5536, 256, 256, 16
        $region48: #{tpu_custom_call.1} parent=31 // pred_fallthru
          _
        // Predicated region
        $region49: #{tpu_custom_call.1} parent=31 // pred_check
          %p5561 = pneg %p135
        $region50: #{tpu_custom_call.1} parent=31 // pred_check_branch
          %5563 = sbr.rel (%p5561) target = $region52
        $region51: #{tpu_custom_call.1} parent=31 // pred_region
          _
        $region52: #{tpu_custom_call.1} parent=31 // pred_fallthru
          _
      $region32: #{tpu_custom_call.1} parent=5 // pred_fallthru
        _
      %p5564 = scmp.le.s32.totalorder 2, %s18
      // Predicated region
      $region53: #{tpu_custom_call.1} parent=5 // pred_check
        %p5565 = pneg %p5564
      $region54: #{tpu_custom_call.1} parent=5 // pred_check_branch
        %5567 = sbr.rel (%p5565) target = $region56
      $region55: #{tpu_custom_call.1} parent=5 // pred_region
        %s5568 = ssub.s32 %s18, 2
        // Predicated region
        $region57: #{tpu_custom_call.1} parent=55 // pred_check
          %p5569 = pneg %p115
        $region58: #{tpu_custom_call.1} parent=55 // pred_check_branch
          %5571 = sbr.rel (%p5569) target = $region60
        $region59: #{tpu_custom_call.1} parent=55 // pred_region
          %s5572 = sand.u32 %s100, 1
          %s5573 = scalar_lea.sflag [#allocation6], %s5572
          %s5574 = sand.u32 %s100, 1
          %s5575 = smul.addr %s5574, 128
          %s5576 = scalar_lea.vmem [#allocation10], %s5575
          %5577 = dma.done %s5573, 2048
        $region60: #{tpu_custom_call.1} parent=55 // pred_fallthru
          _
        // Predicated region
        $region61: #{tpu_custom_call.1} parent=55 // pred_check
          %p5578 = pneg %p141
        $region62: #{tpu_custom_call.1} parent=55 // pred_check_branch
          %5580 = sbr.rel (%p5578) target = $region64
        $region63: #{tpu_custom_call.1} parent=55 // pred_region
          %p5581 = scmp.lt.s32.totalorder %s24, 1
          %s5582 = scalar_select %p5581, %s24, 1
          %s5583 = smul.addr %s5582, 8
          %s5584 = smul.addr %s5583, 8
          %s5585 = scalar_lea.vmem %s4, %s5584
        $region64: #{tpu_custom_call.1} parent=55 // pred_fallthru
          _
      $region56: #{tpu_custom_call.1} parent=5 // pred_fallthru
        _
    $region6: #{tpu_custom_call.1} parent=1 // loop_footer
      %s22 = sadd.s32 1, %s18
    $region7: #{tpu_custom_call.1} parent=1 // loop_footer_branch
      %17 = sbr.rel target = $region3
    $region8: #{tpu_custom_call.1} parent=1 // loop_exit
      _
    %5586 = vsyncpa [#allocation5], 1
    %s5587 = scalar_lea.sflag [#allocation5], 1
    %5588 = vsyncpa %s5587, 1
    %5589 = vsyncpa [#allocation8], 1
    %5590 = vsyncpa [#allocation6], 1
    %s5591 = scalar_lea.sflag [#allocation6], 1
    %5592 = vsyncpa %s5591, 1

</llo_original>
